<compile_context>
chip_gen: v7x
topology: tpu7x:2x2x1
jax: 0.10.0
libtpu: 0.0.40
codegen_flags: <defaults>
</compile_context>

<pallas_src>
import jax
import jax.numpy as jnp
from jax.experimental import pallas as pl
from jax.experimental.pallas import tpu as pltpu


def _round_up(x, m):
  return (x + m - 1) // m * m


def _default_bm():
  try:
    kind = jax.devices()[0].device_kind.lower()
  except Exception:
    return 128
  # v5e-and-older MXUs are 128 rows deep -> bm=128 already fills M.
  if any(t in kind for t in ("v5 lite", "v5e", "v5lite", "v4", "v3", "v2")):
    return 128
  return 256  # v6e / v7x: 256-row MXU; also halves per-step fixed overhead.


def _complex_tucker_kernel(x_ref, w_ref, sa_ref, sb_ref, fa_ref, fb_ref,
                           post_ref, out_ref):
  x = x_ref[...]                                              # [bm, Kp]
  # Entity contraction with bn0/bn1 folded in: [real_p | imag_p].
  p = jnp.dot(x, w_ref[...], preferred_element_type=jnp.float32)    # [bm, 2RE]
  # Relation coefficients broadcast across E-wide segments (bn3/bn4 folded).
  ca = jnp.dot(x, sa_ref[...], preferred_element_type=jnp.float32)  # [ra | -rb]
  cb = jnp.dot(x, sb_ref[...], preferred_element_type=jnp.float32)  # [rb |  ra]
  # Complex combine + fold the 2R segments back to E lanes. bn5/bn6 scales are
  # folded into Fa/Fb columns; each product feeds the MXU immediately so only
  # p/ca/cb stay live.
  out = jnp.dot(ca * p, fa_ref[...], preferred_element_type=jnp.float32)
  out = out + jnp.dot(cb * p, fb_ref[...], preferred_element_type=jnp.float32)
  post = post_ref[...]
  out = out + post[0:1, :]                  # output BN shift: [o5 | o6 | 0]
  alpha = post[1:2, :]                      # PReLU slope per lane: [a | b | 1]
  out_ref[...] = jnp.where(out >= 0.0, out, alpha * out)


def prepare_complex_tucker_params(wa, wb, bn_scales, bn_shifts,
                                  alpha_a, alpha_b):
  """Builds the fused constant matrices.  Call ONCE at model init
  (parameter-side constant folding, hoisted out of the per-call path)."""
  R, E, _ = wa.shape
  RE = R * E
  kp = _round_up(2 * E + 2 * R + 1, 128)     # packed input width (lane-dense)
  ow = _round_up(2 * E, 128)                 # packed output width (lane-dense)

  s0, s1, s3, s4, s5, s6 = [s.reshape(1, -1).astype(jnp.float32)
                            for s in bn_scales]
  o0, o1, o3, o4, o5, o6 = [o.reshape(1, -1).astype(jnp.float32)
                            for o in bn_shifts]
  wa = wa.astype(jnp.float32)
  wb = wb.astype(jnp.float32)

  # WaF[e, k*E + j] = Wa[k, e, j]
  waf = jnp.transpose(wa, (1, 0, 2)).reshape(E, RE)
  wbf = jnp.transpose(wb, (1, 0, 2)).reshape(E, RE)

  # Wfull: X @ Wfull = [real_p | imag_p] with bn0/bn1 folded in.
  w_ha = jnp.concatenate([s0.T * waf, s0.T * wbf], axis=1)            # rows 0:E
  w_hb = jnp.concatenate([-(s1.T * wbf), s1.T * waf], axis=1)         # rows E:2E
  w_bias = jnp.concatenate([o0 @ waf - o1 @ wbf, o0 @ wbf + o1 @ waf], axis=1)
  wfull = jnp.zeros((kp, 2 * RE), jnp.float32)
  wfull = wfull.at[0:E].set(w_ha)
  wfull = wfull.at[E:2 * E].set(w_hb)
  wfull = wfull.at[2 * E + 2 * R].set(w_bias[0])

  # Relation expand matrix: Sexp[k, k*E + j] = 1.
  sexp = jnp.repeat(jnp.eye(R, dtype=jnp.float32), E, axis=1)         # [R, RE]
  zre = jnp.zeros((R, RE), jnp.float32)

  # SA: X @ SA = [ r_a_n | -r_b_n ] broadcast across segments (bn3/bn4 folded).
  sa = jnp.zeros((kp, 2 * RE), jnp.float32)
  sa = sa.at[2 * E:2 * E + R].set(jnp.concatenate([s3.T * sexp, zre], axis=1))
  sa = sa.at[2 * E + R:2 * E + 2 * R].set(
      jnp.concatenate([zre, -(s4.T * sexp)], axis=1))
  sa = sa.at[2 * E + 2 * R].set(
      jnp.concatenate([o3 @ sexp, -(o4 @ sexp)], axis=1)[0])

  # SB: X @ SB = [ r_b_n | r_a_n ] broadcast across segments.
  sb = jnp.zeros((kp, 2 * RE), jnp.float32)
  sb = sb.at[2 * E:2 * E + R].set(jnp.concatenate([zre, s3.T * sexp], axis=1))
  sb = sb.at[2 * E + R:2 * E + 2 * R].set(
      jnp.concatenate([s4.T * sexp, zre], axis=1))
  sb = sb.at[2 * E + 2 * R].set(
      jnp.concatenate([o4 @ sexp, o3 @ sexp], axis=1)[0])

  # Fold matrices: sum the 2R segments of (C * P) back down to E lanes.
  # Fa targets output lanes 0:E (t_a), Fb lanes E:2E (t_b); bn5/bn6 scales are
  # folded into the columns.
  t2 = jnp.tile(jnp.eye(E, dtype=jnp.float32), (2 * R, 1))            # [2RE, E]
  fa = jnp.zeros((2 * RE, ow), jnp.float32).at[:, 0:E].set(t2 * s5)
  fb = jnp.zeros((2 * RE, ow), jnp.float32).at[:, E:2 * E].set(t2 * s6)

  shift = jnp.zeros((ow,), jnp.float32)
  shift = shift.at[0:E].set(o5[0]).at[E:2 * E].set(o6[0])
  alpha = jnp.ones((ow,), jnp.float32)
  alpha = alpha.at[0:E].set(jnp.reshape(alpha_a, ()))
  alpha = alpha.at[E:2 * E].set(jnp.reshape(alpha_b, ()))
  post = jnp.zeros((8, ow), jnp.float32)
  post = post.at[0].set(shift).at[1].set(alpha)

  return dict(wfull=wfull, sa=sa, sb=sb, fa=fa, fb=fb, post=post,
              E=E, R=R, kp=kp, ow=ow)


def complex_tucker_forward(params, ha, hb, ra, rb, *, bm=None):
  E, R = params["E"], params["R"]
  kp, ow = params["kp"], params["ow"]
  RE = R * E
  B = ha.shape[0]

  if bm is None:
    bm = _default_bm()
  bm_eff = min(bm, _round_up(B, 8))
  # Keep >= 2 grid steps when the batch allows it, so the "parallel" batch
  # axis can shard across v7x's two TensorCores.
  if bm_eff >= B and B > 8:
    bm_eff = max(8, _round_up((B + 1) // 2, 8))
  b_pad = _round_up(B, bm_eff)

  # Pack [ha | hb | ra | rb | 1 | 0-pad] into one lane-dense slab.
  ones = jnp.ones((B, 1), jnp.float32)
  x = jnp.concatenate([ha, hb, ra, rb, ones], axis=1).astype(jnp.float32)
  x = jnp.pad(x, ((0, b_pad - B), (0, kp - x.shape[1])))

  const2 = lambda shape: pl.BlockSpec(shape, lambda i: (0, 0))
  grid_spec = pltpu.PrefetchScalarGridSpec(
      num_scalar_prefetch=0,
      grid=(b_pad // bm_eff,),
      in_specs=[
          pl.BlockSpec((bm_eff, kp), lambda i: (i, 0)),   # packed batch tile
          const2((kp, 2 * RE)),                           # Wfull (VMEM-resident)
          const2((kp, 2 * RE)),                           # SA
          const2((kp, 2 * RE)),                           # SB
          const2((2 * RE, ow)),                           # Fa
          const2((2 * RE, ow)),                           # Fb
          const2((8, ow)),                                # shift / alpha rows
      ],
      out_specs=pl.BlockSpec((bm_eff, ow), lambda i: (i, 0)),
  )

  flops = 2 * b_pad * (3 * kp * 2 * RE + 2 * (2 * RE) * ow)
  bytes_accessed = 4 * (b_pad * (kp + ow)
                        + 3 * kp * 2 * RE + 2 * (2 * RE) * ow + 8 * ow)
  cost = pl.CostEstimate(flops=flops, transcendentals=0,
                         bytes_accessed=bytes_accessed)

  out = pl.pallas_call(
      _complex_tucker_kernel,
      out_shape=jax.ShapeDtypeStruct((b_pad, ow), jnp.float32),
      grid_spec=grid_spec,
      compiler_params=pltpu.CompilerParams(
          dimension_semantics=("parallel",),
          vmem_limit_bytes=32 * 1024 * 1024),
      cost_estimate=cost,
  )(x, params["wfull"], params["sa"], params["sb"],
    params["fa"], params["fb"], params["post"])

  return out[:B, 0:E], out[:B, E:2 * E]


def _reference(ha, hb, ra, rb, wa, wb, bn_scales, bn_shifts, alpha_a, alpha_b):
  s0, s1, s3, s4, s5, s6 = bn_scales
  o0, o1, o3, o4, o5, o6 = bn_shifts
  ha_n = ha * s0 + o0
  hb_n = hb * s1 + o1
  ra_n = ra * s3 + o3
  rb_n = rb * s4 + o4

  def core(h, r, W):  # CoreTuckER (eval: dropout = identity)
    return jnp.einsum('be,bk,kej->bj', h, r, W,
                      precision=jax.lax.Precision.HIGHEST)

  ta = (core(ha_n, ra_n, wa) - core(ha_n, rb_n, wb)
        - core(hb_n, ra_n, wb) - core(hb_n, rb_n, wa))
  tb = (core(ha_n, ra_n, wb) + core(ha_n, rb_n, wa)
        + core(hb_n, ra_n, wa) - core(hb_n, rb_n, wb))
  ta = ta * s5 + o5
  tb = tb * s6 + o6
  ta = jnp.where(ta >= 0.0, ta, alpha_a[0, 0] * ta)
  tb = jnp.where(tb >= 0.0, tb, alpha_b[0, 0] * tb)
  return ta, tb


def _bn_affine(key, dim):
  k1, k2, k3, k4 = jax.random.split(key, 4)
  gamma = jax.random.uniform(k1, (dim,), jnp.float32, 0.5, 1.5)
  beta = 0.1 * jax.random.normal(k2, (dim,), jnp.float32)
  mean = 0.1 * jax.random.normal(k3, (dim,), jnp.float32)
  var = jax.random.uniform(k4, (dim,), jnp.float32, 0.5, 1.5)
  eps = 1e-5
  scale = gamma / jnp.sqrt(var + eps)
  shift = beta - mean * scale
  return scale.reshape(1, dim), shift.reshape(1, dim)


if __name__ == "__main__":
  B, E, R = 256, 32, 16   # batch, entity_dim, relation_dim

  key = jax.random.PRNGKey(0)
  keys = jax.random.split(key, 12)

  ha = jax.random.normal(keys[0], (B, E), jnp.float32)
  hb = jax.random.normal(keys[1], (B, E), jnp.float32)
  ra = jax.random.normal(keys[2], (B, R), jnp.float32)
  rb = jax.random.normal(keys[3], (B, R), jnp.float32)

  # CoreTuckER.W ~ uniform(-0.01, 0.01, (R, E, E)) for each of Wa, Wb
  wa = jax.random.uniform(keys[4], (R, E, E), jnp.float32, -0.01, 0.01)
  wb = jax.random.uniform(keys[5], (R, E, E), jnp.float32, -0.01, 0.01)

  s0, o0 = _bn_affine(keys[6], E)    # bn0
  s1, o1 = _bn_affine(keys[7], E)    # bn1
  s3, o3 = _bn_affine(keys[8], R)    # bn3
  s4, o4 = _bn_affine(keys[9], R)    # bn4
  s5, o5 = _bn_affine(keys[10], E)   # bn5
  s6, o6 = _bn_affine(keys[11], E)   # bn6
  bn_scales = (s0, s1, s3, s4, s5, s6)
  bn_shifts = (o0, o1, o3, o4, o5, o6)

  alpha_a = jnp.full((1, 1), 0.25, jnp.float32)   # nn.PReLU() default
  alpha_b = jnp.full((1, 1), 0.25, jnp.float32)

  params = prepare_complex_tucker_params(wa, wb, bn_scales, bn_shifts,
                                         alpha_a, alpha_b)
  ta, tb = complex_tucker_forward(params, ha, hb, ra, rb)
  ta = jax.block_until_ready(ta)
  tb = jax.block_until_ready(tb)

  ta_ref, tb_ref = _reference(ha, hb, ra, rb, wa, wb,
                              bn_scales, bn_shifts, alpha_a, alpha_b)
  assert ta.shape == (B, E) and tb.shape == (B, E)
  assert jnp.allclose(ta, ta_ref, rtol=2e-4, atol=2e-5), \
      float(jnp.max(jnp.abs(ta - ta_ref)))
  assert jnp.allclose(tb, tb_ref, rtol=2e-4, atol=2e-5), \
      float(jnp.max(jnp.abs(tb - tb_ref)))

  print("KERNEL_OK")
</pallas_src>

<mosaic_0001>
module attributes {stable_mosaic.version = 11 : i64} {
  func.func @_complex_tucker_kernel(%arg0: i32, %arg1: memref<128x128xf32, #tpu.memory_space<vmem>>, %arg2: memref<128x1024xf32, #tpu.memory_space<vmem>>, %arg3: memref<128x1024xf32, #tpu.memory_space<vmem>>, %arg4: memref<128x1024xf32, #tpu.memory_space<vmem>>, %arg5: memref<1024x128xf32, #tpu.memory_space<vmem>>, %arg6: memref<1024x128xf32, #tpu.memory_space<vmem>>, %arg7: memref<8x128xf32, #tpu.memory_space<vmem>>, %arg8: memref<128x128xf32, #tpu.memory_space<vmem>>) attributes {dimension_semantics = [#tpu.dimension_semantics<parallel>], iteration_bounds = array<i64: 2>, scalar_prefetch = 0 : i64, scratch_operands = 0 : i64, tpu.core_type = #tpu.core_type<tc>, window_params = [{transform_indices = @transform_0, window_bounds = array<i64: 128, 128>}, {pipeline_mode = #tpu.pipeline_mode<synchronous>, transform_indices = @transform_1, window_bounds = array<i64: 128, 1024>}, {pipeline_mode = #tpu.pipeline_mode<synchronous>, transform_indices = @transform_2, window_bounds = array<i64: 128, 1024>}, {pipeline_mode = #tpu.pipeline_mode<synchronous>, transform_indices = @transform_3, window_bounds = array<i64: 128, 1024>}, {pipeline_mode = #tpu.pipeline_mode<synchronous>, transform_indices = @transform_4, window_bounds = array<i64: 1024, 128>}, {pipeline_mode = #tpu.pipeline_mode<synchronous>, transform_indices = @transform_5, window_bounds = array<i64: 1024, 128>}, {pipeline_mode = #tpu.pipeline_mode<synchronous>, transform_indices = @transform_6, window_bounds = array<i64: 8, 128>}, {transform_indices = @transform_7, window_bounds = array<i64: 128, 128>}]} {
    %c0 = arith.constant 0 : index
    %c0_0 = arith.constant 0 : index
    %0 = vector.load %arg1[%c0, %c0_0] : memref<128x128xf32, #tpu.memory_space<vmem>>, vector<128x128xf32>
    %c0_1 = arith.constant 0 : index
    %c0_2 = arith.constant 0 : index
    %1 = vector.load %arg2[%c0_1, %c0_2] : memref<128x1024xf32, #tpu.memory_space<vmem>>, vector<128x1024xf32>
    %cst = arith.constant dense<0.000000e+00> : vector<128x1024xf32>
    %2 = tpu.matmul %0, %1, %cst {dimension_numbers = #tpu.dot_dimension_numbers<[1], [0], [0], [1], [0, 0, 1, 1], [], []>} : vector<128x128xf32>, vector<128x1024xf32>, vector<128x1024xf32> -> vector<128x1024xf32>
    %c0_3 = arith.constant 0 : index
    %c0_4 = arith.constant 0 : index
    %3 = vector.load %arg3[%c0_3, %c0_4] : memref<128x1024xf32, #tpu.memory_space<vmem>>, vector<128x1024xf32>
    %cst_5 = arith.constant dense<0.000000e+00> : vector<128x1024xf32>
    %4 = tpu.matmul %0, %3, %cst_5 {dimension_numbers = #tpu.dot_dimension_numbers<[1], [0], [0], [1], [0, 0, 1, 1], [], []>} : vector<128x128xf32>, vector<128x1024xf32>, vector<128x1024xf32> -> vector<128x1024xf32>
    %c0_6 = arith.constant 0 : index
    %c0_7 = arith.constant 0 : index
    %5 = vector.load %arg4[%c0_6, %c0_7] : memref<128x1024xf32, #tpu.memory_space<vmem>>, vector<128x1024xf32>
    %cst_8 = arith.constant dense<0.000000e+00> : vector<128x1024xf32>
    %6 = tpu.matmul %0, %5, %cst_8 {dimension_numbers = #tpu.dot_dimension_numbers<[1], [0], [0], [1], [0, 0, 1, 1], [], []>} : vector<128x128xf32>, vector<128x1024xf32>, vector<128x1024xf32> -> vector<128x1024xf32>
    %7 = arith.mulf %4, %2 : vector<128x1024xf32>
    %c0_9 = arith.constant 0 : index
    %c0_10 = arith.constant 0 : index
    %8 = vector.load %arg5[%c0_9, %c0_10] : memref<1024x128xf32, #tpu.memory_space<vmem>>, vector<1024x128xf32>
    %cst_11 = arith.constant dense<0.000000e+00> : vector<128x128xf32>
    %9 = tpu.matmul %7, %8, %cst_11 {dimension_numbers = #tpu.dot_dimension_numbers<[1], [0], [0], [1], [0, 0, 1, 1], [], []>} : vector<128x1024xf32>, vector<1024x128xf32>, vector<128x128xf32> -> vector<128x128xf32>
    %10 = arith.mulf %6, %2 : vector<128x1024xf32>
    %c0_12 = arith.constant 0 : index
    %c0_13 = arith.constant 0 : index
    %11 = vector.load %arg6[%c0_12, %c0_13] : memref<1024x128xf32, #tpu.memory_space<vmem>>, vector<1024x128xf32>
    %cst_14 = arith.constant dense<0.000000e+00> : vector<128x128xf32>
    %12 = tpu.matmul %10, %11, %cst_14 {dimension_numbers = #tpu.dot_dimension_numbers<[1], [0], [0], [1], [0, 0, 1, 1], [], []>} : vector<128x1024xf32>, vector<1024x128xf32>, vector<128x128xf32> -> vector<128x128xf32>
    %13 = arith.addf %9, %12 : vector<128x128xf32>
    %c0_15 = arith.constant 0 : index
    %c0_16 = arith.constant 0 : index
    %14 = vector.load %arg7[%c0_15, %c0_16] : memref<8x128xf32, #tpu.memory_space<vmem>>, vector<8x128xf32>
    %15 = vector.extract_strided_slice %14 {offsets = [0, 0], sizes = [1, 128], strides = [1, 1]} : vector<8x128xf32> to vector<1x128xf32>
    %16 = vector.broadcast %15 : vector<1x128xf32> to vector<128x128xf32>
    %17 = arith.addf %13, %16 : vector<128x128xf32>
    %18 = vector.extract_strided_slice %14 {offsets = [1, 0], sizes = [1, 128], strides = [1, 1]} : vector<8x128xf32> to vector<1x128xf32>
    %cst_17 = arith.constant 0.000000e+00 : f32
    %19 = vector.broadcast %cst_17 : f32 to vector<128x128xf32>
    %20 = arith.cmpf oge, %17, %19 : vector<128x128xf32>
    %21 = vector.broadcast %18 : vector<1x128xf32> to vector<128x128xf32>
    %22 = arith.mulf %21, %17 : vector<128x128xf32>
    %23 = arith.select %20, %17, %22 : vector<128x128xi1>, vector<128x128xf32>
    %c0_18 = arith.constant 0 : index
    %c0_19 = arith.constant 0 : index
    %24 = vector.load %arg8[%c0_18, %c0_19] : memref<128x128xf32, #tpu.memory_space<vmem>>, vector<128x128xf32>
    tpu.vector_store %arg8[%c0_18, %c0_19], %23 {strides = array<i32>} : memref<128x128xf32, #tpu.memory_space<vmem>>, vector<128x128xf32>,
    return
  }
  func.func @transform_0(%arg0: i32) -> (i32, i32) {
    %c0_i32 = arith.constant 0 : i32
    %c0_i32_0 = arith.constant 0 : i32
    return %arg0, %c0_i32 : i32, i32
  }
  func.func @transform_1(%arg0: i32) -> (i32, i32) {
    %c0_i32 = arith.constant 0 : i32
    %c0_i32_0 = arith.constant 0 : i32
    %c0_i32_1 = arith.constant 0 : i32
    return %c0_i32, %c0_i32_0 : i32, i32
  }
  func.func @transform_2(%arg0: i32) -> (i32, i32) {
    %c0_i32 = arith.constant 0 : i32
    %c0_i32_0 = arith.constant 0 : i32
    %c0_i32_1 = arith.constant 0 : i32
    return %c0_i32, %c0_i32_0 : i32, i32
  }
  func.func @transform_3(%arg0: i32) -> (i32, i32) {
    %c0_i32 = arith.constant 0 : i32
    %c0_i32_0 = arith.constant 0 : i32
    %c0_i32_1 = arith.constant 0 : i32
    return %c0_i32, %c0_i32_0 : i32, i32
  }
  func.func @transform_4(%arg0: i32) -> (i32, i32) {
    %c0_i32 = arith.constant 0 : i32
    %c0_i32_0 = arith.constant 0 : i32
    %c0_i32_1 = arith.constant 0 : i32
    return %c0_i32, %c0_i32_0 : i32, i32
  }
  func.func @transform_5(%arg0: i32) -> (i32, i32) {
    %c0_i32 = arith.constant 0 : i32
    %c0_i32_0 = arith.constant 0 : i32
    %c0_i32_1 = arith.constant 0 : i32
    return %c0_i32, %c0_i32_0 : i32, i32
  }
  func.func @transform_6(%arg0: i32) -> (i32, i32) {
    %c0_i32 = arith.constant 0 : i32
    %c0_i32_0 = arith.constant 0 : i32
    %c0_i32_1 = arith.constant 0 : i32
    return %c0_i32, %c0_i32_0 : i32, i32
  }
  func.func @transform_7(%arg0: i32) -> (i32, i32) {
    %c0_i32 = arith.constant 0 : i32
    %c0_i32_0 = arith.constant 0 : i32
    return %arg0, %c0_i32 : i32, i32
  }
}

</mosaic_0001>

<llo_original>
// kernel: tpu_custom_call.1
$region0: #{tpu_custom_call.1}
  #allocation0 [shape = 'u32[]', space=smem, size = 0x4, offset = 0x4, fixed_abs, tag = 'smem constant byte address 0x4 - core index']
  #allocation1 [shape = 'u32[144,128]{1,0:T(1,128)}', space=vmem, size = 0x12000, scoped, tag = 'internal scratch']
  %s0 = inlined_call_operand.hbm [shape: f32[256,128], index: 0, kind: input, shape index: {}]
  %s1 = inlined_call_operand.hbm [shape: f32[128,1024], index: 1, kind: input, shape index: {}]
  %s2 = inlined_call_operand.hbm [shape: f32[128,1024], index: 2, kind: input, shape index: {}]
  %s3 = inlined_call_operand.hbm [shape: f32[128,1024], index: 3, kind: input, shape index: {}]
  %s4 = inlined_call_operand.hbm [shape: f32[1024,128], index: 4, kind: input, shape index: {}]
  %s5 = inlined_call_operand.hbm [shape: f32[1024,128], index: 5, kind: input, shape index: {}]
  %s6 = inlined_call_operand.vmem [shape: f32[8,128], index: 6, kind: input, shape index: {}]
  %s7 = inlined_call_operand.hbm [shape: f32[256,128], index: 7, kind: output, shape index: {}]
  %s8 = sld [smem:[#allocation0]]
  $region85: #{tpu_custom_call.1} parent=0
    _
  %s10 = ssub.s32 1, %s8
  %s11 = scalar_select 0, %s10, %s8
  $region1: #{tpu_custom_call.1} parent=0
    #allocation2 [shape = 'u8[131072]{0}', space=vmem, size = 0x20000, scoped, tag = 'input window, operand 0']
    #allocation3 [shape = 's32[2]{0}', space=sflag, size = 0x8, scoped, tag = 'scoped memory for tpu_custom_call.1']
    #allocation4 [shape = 's32[2]{0}', space=sflag, size = 0x8, scoped, tag = 'scoped memory for tpu_custom_call.1']
    #allocation5 [shape = 'u8[524288]{0}', space=vmem, size = 0x80000, scoped, tag = 'input window, operand 1, single buffered']
    #allocation6 [shape = 's32[1]{0}', space=sflag, size = 0x4, scoped, tag = 'scoped memory for tpu_custom_call.1']
    #allocation7 [shape = 'u8[524288]{0}', space=vmem, size = 0x80000, scoped, tag = 'input window, operand 2, single buffered']
    #allocation8 [shape = 'u8[524288]{0}', space=vmem, size = 0x80000, scoped, tag = 'input window, operand 3, single buffered']
    #allocation9 [shape = 's32[1]{0}', space=sflag, size = 0x4, scoped, tag = 'scoped memory for tpu_custom_call.1']
    #allocation10 [shape = 'u8[524288]{0}', space=vmem, size = 0x80000, scoped, tag = 'input window, operand 4, single buffered']
    #allocation11 [shape = 'u8[524288]{0}', space=vmem, size = 0x80000, scoped, tag = 'input window, operand 5, single buffered']
    #allocation12 [shape = 's32[1]{0}', space=sflag, size = 0x4, scoped, tag = 'scoped memory for tpu_custom_call.1']
    #allocation13 [shape = 'u8[131072]{0}', space=vmem, size = 0x20000, scoped, tag = 'output window, operand 0']
    %12 = vsyncpa [#allocation3], 0
    %s13 = scalar_lea.sflag [#allocation3], 1
    %14 = vsyncpa %s13, 0
    %15 = vsyncpa [#allocation6], 0
    %16 = vsyncpa [#allocation9], 0
    %17 = vsyncpa [#allocation12], 0
    %18 = vsyncpa [#allocation4], 0
    %s19 = scalar_lea.sflag [#allocation4], 1
    %20 = vsyncpa %s19, 0
    loop: start=0, step=1, limit=4
    $region2: #{tpu_custom_call.1} parent=1 // loop_pre_header
      _
    $region3: #{tpu_custom_call.1} parent=1 // loop_header
      %s22 = sphi 0, %s26
      %p23 = scmp.ge.s32.totalorder %s22, 4
      %s32 = sphi 0, %s34
      %s35 = sphi 0, %s32
      %s36 = sphi 0, %s35
      %s52 = sphi 0, %s36
      %s56 = sphi 0, %s56
      %s58 = sphi 0, %s56
      %s59 = sphi 0, %s58
      %s73 = sphi 0, %s59
      %s77 = sphi 0, %s77
      %s79 = sphi 0, %s77
      %s80 = sphi 0, %s79
      %s94 = sphi 0, %s80
      %s98 = sphi 0, %s98
      %s100 = sphi 0, %s98
      %s101 = sphi 0, %s100
      %s115 = sphi 0, %s101
      %s119 = sphi 0, %s119
      %s121 = sphi 0, %s119
      %s122 = sphi 0, %s121
      %s136 = sphi 0, %s122
      %s140 = sphi 0, %s140
      %s142 = sphi 0, %s140
      %s143 = sphi 0, %s142
      %s157 = sphi 0, %s143
      %s161 = sphi 0, %s161
      %s163 = sphi 0, %s161
      %s164 = sphi 0, %s163
      %s178 = sphi 0, %s164
      %s184 = sphi 0, %s186
      %s187 = sphi 0, %s184
      %s188 = sphi 0, %s187
      %s204 = sphi 0, %s188
    $region4: #{tpu_custom_call.1} parent=1 // loop_header_branch
      %25 = sbr.rel (%p23) target = $region8
    $region5: #{tpu_custom_call.1} parent=1 // loop_body
      %s27 = ssub.s32 %s22, 1
      %s28 = ssub.s32 %s22, 2
      %s29 = sadd.s32 %s22, 1
      %s30 = ssub.s32 %s22, %s29
      %p31 = scmp.eq.s32.totalorder %s30, 0
      %s33 = sadd.s32 %s32, 1
      %s34 = scalar_select %p31, %s32, %s33
      %p37 = pneg %p31
      %p38 = scmp.eq.s32.totalorder %s22, 1
      %p39 = por %p37, %p38
      %p40 = scmp.ne.s32.totalorder %s32, %s35
      %p41 = scmp.eq.s32.totalorder %s22, 0
      %p42 = por %p40, %p41
      %p43 = scmp.ne.s32.totalorder %s32, %s35
      %p44 = scmp.eq.s32.totalorder %s27, 1
      %p45 = por %p43, %p44
      %p46 = scmp.ne.s32.totalorder %s35, %s36
      %p47 = scmp.eq.s32.totalorder %s27, 0
      %p48 = por %p46, %p47
      %p49 = scmp.ne.s32.totalorder %s35, %s36
      %p50 = scmp.eq.s32.totalorder %s28, 1
      %p51 = por %p49, %p50
      %p53 = scmp.ne.s32.totalorder %s36, %s52
      %p54 = scmp.eq.s32.totalorder %s28, 0
      %p55 = por %p53, %p54
      %s57 = sadd.s32 %s56, 1
      %p60 = scmp.eq.s32.totalorder %s22, 1
      %p61 = scmp.ne.s32.totalorder %s56, %s58
      %p62 = scmp.eq.s32.totalorder %s22, 0
      %p63 = por %p61, %p62
      %p64 = scmp.ne.s32.totalorder %s56, %s58
      %p65 = scmp.eq.s32.totalorder %s27, 1
      %p66 = por %p64, %p65
      %p67 = scmp.ne.s32.totalorder %s58, %s59
      %p68 = scmp.eq.s32.totalorder %s27, 0
      %p69 = por %p67, %p68
      %p70 = scmp.ne.s32.totalorder %s58, %s59
      %p71 = scmp.eq.s32.totalorder %s28, 1
      %p72 = por %p70, %p71
      %p74 = scmp.ne.s32.totalorder %s59, %s73
      %p75 = scmp.eq.s32.totalorder %s28, 0
      %p76 = por %p74, %p75
      %s78 = sadd.s32 %s77, 1
      %p81 = scmp.eq.s32.totalorder %s22, 1
      %p82 = scmp.ne.s32.totalorder %s77, %s79
      %p83 = scmp.eq.s32.totalorder %s22, 0
      %p84 = por %p82, %p83
      %p85 = scmp.ne.s32.totalorder %s77, %s79
      %p86 = scmp.eq.s32.totalorder %s27, 1
      %p87 = por %p85, %p86
      %p88 = scmp.ne.s32.totalorder %s79, %s80
      %p89 = scmp.eq.s32.totalorder %s27, 0
      %p90 = por %p88, %p89
      %p91 = scmp.ne.s32.totalorder %s79, %s80
      %p92 = scmp.eq.s32.totalorder %s28, 1
      %p93 = por %p91, %p92
      %p95 = scmp.ne.s32.totalorder %s80, %s94
      %p96 = scmp.eq.s32.totalorder %s28, 0
      %p97 = por %p95, %p96
      %s99 = sadd.s32 %s98, 1
      %p102 = scmp.eq.s32.totalorder %s22, 1
      %p103 = scmp.ne.s32.totalorder %s98, %s100
      %p104 = scmp.eq.s32.totalorder %s22, 0
      %p105 = por %p103, %p104
      %p106 = scmp.ne.s32.totalorder %s98, %s100
      %p107 = scmp.eq.s32.totalorder %s27, 1
      %p108 = por %p106, %p107
      %p109 = scmp.ne.s32.totalorder %s100, %s101
      %p110 = scmp.eq.s32.totalorder %s27, 0
      %p111 = por %p109, %p110
      %p112 = scmp.ne.s32.totalorder %s100, %s101
      %p113 = scmp.eq.s32.totalorder %s28, 1
      %p114 = por %p112, %p113
      %p116 = scmp.ne.s32.totalorder %s101, %s115
      %p117 = scmp.eq.s32.totalorder %s28, 0
      %p118 = por %p116, %p117
      %s120 = sadd.s32 %s119, 1
      %p123 = scmp.eq.s32.totalorder %s22, 1
      %p124 = scmp.ne.s32.totalorder %s119, %s121
      %p125 = scmp.eq.s32.totalorder %s22, 0
      %p126 = por %p124, %p125
      %p127 = scmp.ne.s32.totalorder %s119, %s121
      %p128 = scmp.eq.s32.totalorder %s27, 1
      %p129 = por %p127, %p128
      %p130 = scmp.ne.s32.totalorder %s121, %s122
      %p131 = scmp.eq.s32.totalorder %s27, 0
      %p132 = por %p130, %p131
      %p133 = scmp.ne.s32.totalorder %s121, %s122
      %p134 = scmp.eq.s32.totalorder %s28, 1
      %p135 = por %p133, %p134
      %p137 = scmp.ne.s32.totalorder %s122, %s136
      %p138 = scmp.eq.s32.totalorder %s28, 0
      %p139 = por %p137, %p138
      %s141 = sadd.s32 %s140, 1
      %p144 = scmp.eq.s32.totalorder %s22, 1
      %p145 = scmp.ne.s32.totalorder %s140, %s142
      %p146 = scmp.eq.s32.totalorder %s22, 0
      %p147 = por %p145, %p146
      %p148 = scmp.ne.s32.totalorder %s140, %s142
      %p149 = scmp.eq.s32.totalorder %s27, 1
      %p150 = por %p148, %p149
      %p151 = scmp.ne.s32.totalorder %s142, %s143
      %p152 = scmp.eq.s32.totalorder %s27, 0
      %p153 = por %p151, %p152
      %p154 = scmp.ne.s32.totalorder %s142, %s143
      %p155 = scmp.eq.s32.totalorder %s28, 1
      %p156 = por %p154, %p155
      %p158 = scmp.ne.s32.totalorder %s143, %s157
      %p159 = scmp.eq.s32.totalorder %s28, 0
      %p160 = por %p158, %p159
      %s162 = sadd.s32 %s161, 1
      %p165 = scmp.eq.s32.totalorder %s22, 1
      %p166 = scmp.ne.s32.totalorder %s161, %s163
      %p167 = scmp.eq.s32.totalorder %s22, 0
      %p168 = por %p166, %p167
      %p169 = scmp.ne.s32.totalorder %s161, %s163
      %p170 = scmp.eq.s32.totalorder %s27, 1
      %p171 = por %p169, %p170
      %p172 = scmp.ne.s32.totalorder %s163, %s164
      %p173 = scmp.eq.s32.totalorder %s27, 0
      %p174 = por %p172, %p173
      %p175 = scmp.ne.s32.totalorder %s163, %s164
      %p176 = scmp.eq.s32.totalorder %s28, 1
      %p177 = por %p175, %p176
      %p179 = scmp.ne.s32.totalorder %s164, %s178
      %p180 = scmp.eq.s32.totalorder %s28, 0
      %p181 = por %p179, %p180
      %s182 = ssub.s32 %s22, %s29
      %p183 = scmp.eq.s32.totalorder %s182, 0
      %s185 = sadd.s32 %s184, 1
      %s186 = scalar_select %p183, %s184, %s185
      %p189 = pneg %p183
      %p190 = scmp.eq.s32.totalorder %s22, 1
      %p191 = por %p189, %p190
      %p192 = scmp.ne.s32.totalorder %s184, %s187
      %p193 = scmp.eq.s32.totalorder %s22, 0
      %p194 = por %p192, %p193
      %p195 = scmp.ne.s32.totalorder %s184, %s187
      %p196 = scmp.eq.s32.totalorder %s27, 1
      %p197 = por %p195, %p196
      %p198 = scmp.ne.s32.totalorder %s187, %s188
      %p199 = scmp.eq.s32.totalorder %s27, 0
      %p200 = por %p198, %p199
      %p201 = scmp.ne.s32.totalorder %s187, %s188
      %p202 = scmp.eq.s32.totalorder %s28, 1
      %p203 = por %p201, %p202
      %p205 = scmp.ne.s32.totalorder %s188, %s204
      %p206 = scmp.eq.s32.totalorder %s28, 0
      %p207 = por %p205, %p206
      %p208 = scmp.le.s32.totalorder 1, %s22
      %p209 = scmp.lt.s32.totalorder %s22, 3
      %p210 = pnand %p208, %p209
      %p211 = pneg %p210
      // Predicated region
      $region9: #{tpu_custom_call.1} parent=5 // pred_check
        _
      $region10: #{tpu_custom_call.1} parent=5 // pred_check_branch
        %213 = sbr.rel (%p210) target = $region12
      $region11: #{tpu_custom_call.1} parent=5 // pred_region
        %s214 = ssub.s32 %s22, 1
        // Predicated region
        $region13: #{tpu_custom_call.1} parent=11 // pred_check
          %p215 = pneg %p69
        $region14: #{tpu_custom_call.1} parent=11 // pred_check_branch
          %217 = sbr.rel (%p215) target = $region16
        $region15: #{tpu_custom_call.1} parent=11 // pred_region
          %s219 = ssub.s32 16384, 16384
          %220 = vsyncadd [#allocation6], %s219
          %s221 = sshll.u32 [#allocation5], 4
          %s222 = int_to_ptr.vmem [resolvable:$true] %s221
          %227 = dma.hbm_to_vmem [thread:$0]  %s1, 16384, %s222, [#allocation6], 1024, 1024, 64
        $region16: #{tpu_custom_call.1} parent=11 // pred_fallthru
          _
        // Predicated region
        $region17: #{tpu_custom_call.1} parent=11 // pred_check
          %p228 = pneg %p90
        $region18: #{tpu_custom_call.1} parent=11 // pred_check_branch
          %230 = sbr.rel (%p228) target = $region20
        $region19: #{tpu_custom_call.1} parent=11 // pred_region
          %s232 = ssub.s32 16384, 16384
          %233 = vsyncadd [#allocation6], %s232
          %s234 = sshll.u32 [#allocation7], 4
          %s235 = int_to_ptr.vmem [resolvable:$true] %s234
          %240 = dma.hbm_to_vmem [thread:$0]  %s2, 16384, %s235, [#allocation6], 1024, 1024, 64
        $region20: #{tpu_custom_call.1} parent=11 // pred_fallthru
          _
        // Predicated region
        $region21: #{tpu_custom_call.1} parent=11 // pred_check
          %p241 = pneg %p111
        $region22: #{tpu_custom_call.1} parent=11 // pred_check_branch
          %243 = sbr.rel (%p241) target = $region24
        $region23: #{tpu_custom_call.1} parent=11 // pred_region
          %s245 = ssub.s32 16384, 16384
          %246 = vsyncadd [#allocation9], %s245
          %s247 = sshll.u32 [#allocation8], 4
          %s248 = int_to_ptr.vmem [resolvable:$true] %s247
          %253 = dma.hbm_to_vmem [thread:$0]  %s3, 16384, %s248, [#allocation9], 1024, 1024, 64
        $region24: #{tpu_custom_call.1} parent=11 // pred_fallthru
          _
        // Predicated region
        $region25: #{tpu_custom_call.1} parent=11 // pred_check
          %p254 = pneg %p132
        $region26: #{tpu_custom_call.1} parent=11 // pred_check_branch
          %256 = sbr.rel (%p254) target = $region28
        $region27: #{tpu_custom_call.1} parent=11 // pred_region
          %s258 = ssub.s32 16384, 16384
          %259 = vsyncadd [#allocation9], %s258
          %s260 = sshll.u32 [#allocation10], 4
          %s261 = int_to_ptr.vmem [resolvable:$true] %s260
          %266 = dma.hbm_to_vmem [thread:$0]  %s4, 16384, %s261, [#allocation9], 128, 128, 8
        $region28: #{tpu_custom_call.1} parent=11 // pred_fallthru
          _
        // Predicated region
        $region29: #{tpu_custom_call.1} parent=11 // pred_check
          %p267 = pneg %p153
        $region30: #{tpu_custom_call.1} parent=11 // pred_check_branch
          %269 = sbr.rel (%p267) target = $region32
        $region31: #{tpu_custom_call.1} parent=11 // pred_region
          %s271 = ssub.s32 16384, 16384
          %272 = vsyncadd [#allocation12], %s271
          %s273 = sshll.u32 [#allocation11], 4
          %s274 = int_to_ptr.vmem [resolvable:$true] %s273
          %279 = dma.hbm_to_vmem [thread:$0]  %s5, 16384, %s274, [#allocation12], 128, 128, 8
        $region32: #{tpu_custom_call.1} parent=11 // pred_fallthru
          _
        // Predicated region
        $region33: #{tpu_custom_call.1} parent=11 // pred_check
          %p280 = pneg %p174
        $region34: #{tpu_custom_call.1} parent=11 // pred_check_branch
          %282 = sbr.rel (%p280) target = $region36
        $region35: #{tpu_custom_call.1} parent=11 // pred_region
          _
        $region36: #{tpu_custom_call.1} parent=11 // pred_fallthru
          _
      $region12: #{tpu_custom_call.1} parent=5 // pred_fallthru
        _
      %p283 = scmp.lt.s32.totalorder %s22, 2
      // Predicated region
      $region37: #{tpu_custom_call.1} parent=5 // pred_check
        %p284 = pneg %p283
      $region38: #{tpu_custom_call.1} parent=5 // pred_check_branch
        %286 = sbr.rel (%p284) target = $region40
      $region39: #{tpu_custom_call.1} parent=5 // pred_region
        // Predicated region
        $region41: #{tpu_custom_call.1} parent=39 // pred_check
          %p287 = pneg %p42
        $region42: #{tpu_custom_call.1} parent=39 // pred_check_branch
          %289 = sbr.rel (%p287) target = $region44
        $region43: #{tpu_custom_call.1} parent=39 // pred_region
          %s290 = sand.u32 %s32, 1
          %s291 = scalar_lea.sflag [#allocation3], %s290
          %s292 = sand.u32 %s32, 1
          %s293 = smul.addr %s292, 128
          %s294 = scalar_lea.vmem [#allocation2], %s293
          %s295 = smul.u32 16, %s22
          %s297 = ssub.s32 2048, 2048
          %298 = vsyncadd %s291, %s297
          %s299 = smul.addr %s295, 128
          %s300 = scalar_lea.hbm %s0, %s299
          %s301 = sshll.u32 %s294, 4
          %s302 = int_to_ptr.vmem [resolvable:$true] %s301
          %307 = dma.hbm_to_vmem [thread:$0]  %s300, 2048, %s302, %s291, 128, 128, 8
        $region44: #{tpu_custom_call.1} parent=39 // pred_fallthru
          _
      $region40: #{tpu_custom_call.1} parent=5 // pred_fallthru
        _
      %p308 = scmp.le.s32.totalorder 1, %s22
      %p309 = scmp.lt.s32.totalorder %s22, 3
      %p310 = pnand %p308, %p309
      %p311 = pneg %p310
      // Predicated region
      $region45: #{tpu_custom_call.1} parent=5 // pred_check
        _
      $region46: #{tpu_custom_call.1} parent=5 // pred_check_branch
        %313 = sbr.rel (%p310) target = $region48
      $region47: #{tpu_custom_call.1} parent=5 // pred_region
        %s314 = ssub.s32 %s22, 1
        %s315 = sand.u32 %s35, 1
        %s316 = scalar_lea.sflag [#allocation3], %s315
        %s317 = sand.u32 %s35, 1
        %s318 = smul.addr %s317, 128
        %s319 = scalar_lea.vmem [#allocation2], %s318
        // Predicated region
        $region49: #{tpu_custom_call.1} parent=47 // pred_check
          %p320 = pneg %p48
        $region50: #{tpu_custom_call.1} parent=47 // pred_check_branch
          %322 = sbr.rel (%p320) target = $region52
        $region51: #{tpu_custom_call.1} parent=47 // pred_region
          %323 = dma.done %s316, 2048
        $region52: #{tpu_custom_call.1} parent=47 // pred_fallthru
          _
        // Predicated region
        $region53: #{tpu_custom_call.1} parent=47 // pred_check
          %p324 = pneg %p69
        $region54: #{tpu_custom_call.1} parent=47 // pred_check_branch
          %326 = sbr.rel (%p324) target = $region56
        $region55: #{tpu_custom_call.1} parent=47 // pred_region
          %327 = dma.done [#allocation6], 16384
        $region56: #{tpu_custom_call.1} parent=47 // pred_fallthru
          _
        // Predicated region
        $region57: #{tpu_custom_call.1} parent=47 // pred_check
          %p328 = pneg %p90
        $region58: #{tpu_custom_call.1} parent=47 // pred_check_branch
          %330 = sbr.rel (%p328) target = $region60
        $region59: #{tpu_custom_call.1} parent=47 // pred_region
          %331 = dma.done [#allocation6], 16384
        $region60: #{tpu_custom_call.1} parent=47 // pred_fallthru
          _
        // Predicated region
        $region61: #{tpu_custom_call.1} parent=47 // pred_check
          %p332 = pneg %p111
        $region62: #{tpu_custom_call.1} parent=47 // pred_check_branch
          %334 = sbr.rel (%p332) target = $region64
        $region63: #{tpu_custom_call.1} parent=47 // pred_region
          %335 = dma.done [#allocation9], 16384
        $region64: #{tpu_custom_call.1} parent=47 // pred_fallthru
          _
        // Predicated region
        $region65: #{tpu_custom_call.1} parent=47 // pred_check
          %p336 = pneg %p132
        $region66: #{tpu_custom_call.1} parent=47 // pred_check_branch
          %338 = sbr.rel (%p336) target = $region68
        $region67: #{tpu_custom_call.1} parent=47 // pred_region
          %339 = dma.done [#allocation9], 16384
        $region68: #{tpu_custom_call.1} parent=47 // pred_fallthru
          _
        // Predicated region
        $region69: #{tpu_custom_call.1} parent=47 // pred_check
          %p340 = pneg %p153
        $region70: #{tpu_custom_call.1} parent=47 // pred_check_branch
          %342 = sbr.rel (%p340) target = $region72
        $region71: #{tpu_custom_call.1} parent=47 // pred_region
          %343 = dma.done [#allocation12], 16384
        $region72: #{tpu_custom_call.1} parent=47 // pred_fallthru
          _
        %s344 = sand.u32 %s35, 1
        %s345 = scalar_lea.sflag [#allocation3], %s344
        %s346 = sand.u32 %s35, 1
        %s347 = smul.addr %s346, 128
        %s348 = scalar_lea.vmem [#allocation2], %s347
        %p349 = pneg %p48
        %p350 = pneg %p45
        %p351 = pneg %p69
        %p352 = pneg %p66
        %p353 = pneg %p90
        %p354 = pneg %p87
        %p355 = pneg %p111
        %p356 = pneg %p108
        %p357 = pneg %p132
        %p358 = pneg %p129
        %p359 = pneg %p153
        %p360 = pneg %p150
        %p361 = pneg %p174
        %p362 = pneg %p171
        %p363 = pneg %p200
        %p364 = pneg %p197
        %s365 = sand.u32 %s187, 1
        %s366 = scalar_lea.sflag [#allocation4], %s365
        %s367 = sand.u32 %s187, 1
        %s368 = smul.addr %s367, 128
        %s369 = scalar_lea.vmem [#allocation13], %s368
        %s370 = smul.u32 16, %s27
        %s371 = smul.u32 16, %s27
        %v372 = vld [vmem:[%s319] sm:$0xff]
        %v373 = vld [vmem:[%s319 + $0x8] sm:$0xff]
        %v374 = vld [vmem:[%s319 + $0x10] sm:$0xff]
        %v375 = vld [vmem:[%s319 + $0x18] sm:$0xff]
        %v376 = vld [vmem:[%s319 + $0x20] sm:$0xff]
        %v377 = vld [vmem:[%s319 + $0x28] sm:$0xff]
        %v378 = vld [vmem:[%s319 + $0x30] sm:$0xff]
        %v379 = vld [vmem:[%s319 + $0x38] sm:$0xff]
        %v380 = vld [vmem:[%s319 + $0x40] sm:$0xff]
        %v381 = vld [vmem:[%s319 + $0x48] sm:$0xff]
        %v382 = vld [vmem:[%s319 + $0x50] sm:$0xff]
        %v383 = vld [vmem:[%s319 + $0x58] sm:$0xff]
        %v384 = vld [vmem:[%s319 + $0x60] sm:$0xff]
        %v385 = vld [vmem:[%s319 + $0x68] sm:$0xff]
        %v386 = vld [vmem:[%s319 + $0x70] sm:$0xff]
        %v387 = vld [vmem:[%s319 + $0x78] sm:$0xff]
        %v388 = vld [vmem:[#allocation5] sm:$0xff]
        %v389 = vld [vmem:[#allocation5 + $0x8] sm:$0xff]
        %v390 = vld [vmem:[#allocation5 + $0x10] sm:$0xff]
        %v391 = vld [vmem:[#allocation5 + $0x18] sm:$0xff]
        %v392 = vld [vmem:[#allocation5 + $0x20] sm:$0xff]
        %v393 = vld [vmem:[#allocation5 + $0x28] sm:$0xff]
        %v394 = vld [vmem:[#allocation5 + $0x30] sm:$0xff]
        %v395 = vld [vmem:[#allocation5 + $0x38] sm:$0xff]
        %v396 = vld [vmem:[#allocation5 + $0x40] sm:$0xff]
        %v397 = vld [vmem:[#allocation5 + $0x48] sm:$0xff]
        %v398 = vld [vmem:[#allocation5 + $0x50] sm:$0xff]
        %v399 = vld [vmem:[#allocation5 + $0x58] sm:$0xff]
        %v400 = vld [vmem:[#allocation5 + $0x60] sm:$0xff]
        %v401 = vld [vmem:[#allocation5 + $0x68] sm:$0xff]
        %v402 = vld [vmem:[#allocation5 + $0x70] sm:$0xff]
        %v403 = vld [vmem:[#allocation5 + $0x78] sm:$0xff]
        %v404 = vld [vmem:[#allocation5 + $0x80] sm:$0xff]
        %v405 = vld [vmem:[#allocation5 + $0x88] sm:$0xff]
        %v406 = vld [vmem:[#allocation5 + $0x90] sm:$0xff]
        %v407 = vld [vmem:[#allocation5 + $0x98] sm:$0xff]
        %v408 = vld [vmem:[#allocation5 + $0xa0] sm:$0xff]
        %v409 = vld [vmem:[#allocation5 + $0xa8] sm:$0xff]
        %v410 = vld [vmem:[#allocation5 + $0xb0] sm:$0xff]
        %v411 = vld [vmem:[#allocation5 + $0xb8] sm:$0xff]
        %v412 = vld [vmem:[#allocation5 + $0xc0] sm:$0xff]
        %v413 = vld [vmem:[#allocation5 + $0xc8] sm:$0xff]
        %v414 = vld [vmem:[#allocation5 + $0xd0] sm:$0xff]
        %v415 = vld [vmem:[#allocation5 + $0xd8] sm:$0xff]
        %v416 = vld [vmem:[#allocation5 + $0xe0] sm:$0xff]
        %v417 = vld [vmem:[#allocation5 + $0xe8] sm:$0xff]
        %v418 = vld [vmem:[#allocation5 + $0xf0] sm:$0xff]
        %v419 = vld [vmem:[#allocation5 + $0xf8] sm:$0xff]
        %v420 = vld [vmem:[#allocation5 + $0x100] sm:$0xff]
        %v421 = vld [vmem:[#allocation5 + $0x108] sm:$0xff]
        %v422 = vld [vmem:[#allocation5 + $0x110] sm:$0xff]
        %v423 = vld [vmem:[#allocation5 + $0x118] sm:$0xff]
        %v424 = vld [vmem:[#allocation5 + $0x120] sm:$0xff]
        %v425 = vld [vmem:[#allocation5 + $0x128] sm:$0xff]
        %v426 = vld [vmem:[#allocation5 + $0x130] sm:$0xff]
        %v427 = vld [vmem:[#allocation5 + $0x138] sm:$0xff]
        %v428 = vld [vmem:[#allocation5 + $0x140] sm:$0xff]
        %v429 = vld [vmem:[#allocation5 + $0x148] sm:$0xff]
        %v430 = vld [vmem:[#allocation5 + $0x150] sm:$0xff]
        %v431 = vld [vmem:[#allocation5 + $0x158] sm:$0xff]
        %v432 = vld [vmem:[#allocation5 + $0x160] sm:$0xff]
        %v433 = vld [vmem:[#allocation5 + $0x168] sm:$0xff]
        %v434 = vld [vmem:[#allocation5 + $0x170] sm:$0xff]
        %v435 = vld [vmem:[#allocation5 + $0x178] sm:$0xff]
        %v436 = vld [vmem:[#allocation5 + $0x180] sm:$0xff]
        %v437 = vld [vmem:[#allocation5 + $0x188] sm:$0xff]
        %v438 = vld [vmem:[#allocation5 + $0x190] sm:$0xff]
        %v439 = vld [vmem:[#allocation5 + $0x198] sm:$0xff]
        %v440 = vld [vmem:[#allocation5 + $0x1a0] sm:$0xff]
        %v441 = vld [vmem:[#allocation5 + $0x1a8] sm:$0xff]
        %v442 = vld [vmem:[#allocation5 + $0x1b0] sm:$0xff]
        %v443 = vld [vmem:[#allocation5 + $0x1b8] sm:$0xff]
        %v444 = vld [vmem:[#allocation5 + $0x1c0] sm:$0xff]
        %v445 = vld [vmem:[#allocation5 + $0x1c8] sm:$0xff]
        %v446 = vld [vmem:[#allocation5 + $0x1d0] sm:$0xff]
        %v447 = vld [vmem:[#allocation5 + $0x1d8] sm:$0xff]
        %v448 = vld [vmem:[#allocation5 + $0x1e0] sm:$0xff]
        %v449 = vld [vmem:[#allocation5 + $0x1e8] sm:$0xff]
        %v450 = vld [vmem:[#allocation5 + $0x1f0] sm:$0xff]
        %v451 = vld [vmem:[#allocation5 + $0x1f8] sm:$0xff]
        %v452 = vld [vmem:[#allocation5 + $0x200] sm:$0xff]
        %v453 = vld [vmem:[#allocation5 + $0x208] sm:$0xff]
        %v454 = vld [vmem:[#allocation5 + $0x210] sm:$0xff]
        %v455 = vld [vmem:[#allocation5 + $0x218] sm:$0xff]
        %v456 = vld [vmem:[#allocation5 + $0x220] sm:$0xff]
        %v457 = vld [vmem:[#allocation5 + $0x228] sm:$0xff]
        %v458 = vld [vmem:[#allocation5 + $0x230] sm:$0xff]
        %v459 = vld [vmem:[#allocation5 + $0x238] sm:$0xff]
        %v460 = vld [vmem:[#allocation5 + $0x240] sm:$0xff]
        %v461 = vld [vmem:[#allocation5 + $0x248] sm:$0xff]
        %v462 = vld [vmem:[#allocation5 + $0x250] sm:$0xff]
        %v463 = vld [vmem:[#allocation5 + $0x258] sm:$0xff]
        %v464 = vld [vmem:[#allocation5 + $0x260] sm:$0xff]
        %v465 = vld [vmem:[#allocation5 + $0x268] sm:$0xff]
        %v466 = vld [vmem:[#allocation5 + $0x270] sm:$0xff]
        %v467 = vld [vmem:[#allocation5 + $0x278] sm:$0xff]
        %v468 = vld [vmem:[#allocation5 + $0x280] sm:$0xff]
        %v469 = vld [vmem:[#allocation5 + $0x288] sm:$0xff]
        %v470 = vld [vmem:[#allocation5 + $0x290] sm:$0xff]
        %v471 = vld [vmem:[#allocation5 + $0x298] sm:$0xff]
        %v472 = vld [vmem:[#allocation5 + $0x2a0] sm:$0xff]
        %v473 = vld [vmem:[#allocation5 + $0x2a8] sm:$0xff]
        %v474 = vld [vmem:[#allocation5 + $0x2b0] sm:$0xff]
        %v475 = vld [vmem:[#allocation5 + $0x2b8] sm:$0xff]
        %v476 = vld [vmem:[#allocation5 + $0x2c0] sm:$0xff]
        %v477 = vld [vmem:[#allocation5 + $0x2c8] sm:$0xff]
        %v478 = vld [vmem:[#allocation5 + $0x2d0] sm:$0xff]
        %v479 = vld [vmem:[#allocation5 + $0x2d8] sm:$0xff]
        %v480 = vld [vmem:[#allocation5 + $0x2e0] sm:$0xff]
        %v481 = vld [vmem:[#allocation5 + $0x2e8] sm:$0xff]
        %v482 = vld [vmem:[#allocation5 + $0x2f0] sm:$0xff]
        %v483 = vld [vmem:[#allocation5 + $0x2f8] sm:$0xff]
        %v484 = vld [vmem:[#allocation5 + $0x300] sm:$0xff]
        %v485 = vld [vmem:[#allocation5 + $0x308] sm:$0xff]
        %v486 = vld [vmem:[#allocation5 + $0x310] sm:$0xff]
        %v487 = vld [vmem:[#allocation5 + $0x318] sm:$0xff]
        %v488 = vld [vmem:[#allocation5 + $0x320] sm:$0xff]
        %v489 = vld [vmem:[#allocation5 + $0x328] sm:$0xff]
        %v490 = vld [vmem:[#allocation5 + $0x330] sm:$0xff]
        %v491 = vld [vmem:[#allocation5 + $0x338] sm:$0xff]
        %v492 = vld [vmem:[#allocation5 + $0x340] sm:$0xff]
        %v493 = vld [vmem:[#allocation5 + $0x348] sm:$0xff]
        %v494 = vld [vmem:[#allocation5 + $0x350] sm:$0xff]
        %v495 = vld [vmem:[#allocation5 + $0x358] sm:$0xff]
        %v496 = vld [vmem:[#allocation5 + $0x360] sm:$0xff]
        %v497 = vld [vmem:[#allocation5 + $0x368] sm:$0xff]
        %v498 = vld [vmem:[#allocation5 + $0x370] sm:$0xff]
        %v499 = vld [vmem:[#allocation5 + $0x378] sm:$0xff]
        %v500 = vld [vmem:[#allocation5 + $0x380] sm:$0xff]
        %v501 = vld [vmem:[#allocation5 + $0x388] sm:$0xff]
        %v502 = vld [vmem:[#allocation5 + $0x390] sm:$0xff]
        %v503 = vld [vmem:[#allocation5 + $0x398] sm:$0xff]
        %v504 = vld [vmem:[#allocation5 + $0x3a0] sm:$0xff]
        %v505 = vld [vmem:[#allocation5 + $0x3a8] sm:$0xff]
        %v506 = vld [vmem:[#allocation5 + $0x3b0] sm:$0xff]
        %v507 = vld [vmem:[#allocation5 + $0x3b8] sm:$0xff]
        %v508 = vld [vmem:[#allocation5 + $0x3c0] sm:$0xff]
        %v509 = vld [vmem:[#allocation5 + $0x3c8] sm:$0xff]
        %v510 = vld [vmem:[#allocation5 + $0x3d0] sm:$0xff]
        %v511 = vld [vmem:[#allocation5 + $0x3d8] sm:$0xff]
        %v512 = vld [vmem:[#allocation5 + $0x3e0] sm:$0xff]
        %v513 = vld [vmem:[#allocation5 + $0x3e8] sm:$0xff]
        %v514 = vld [vmem:[#allocation5 + $0x3f0] sm:$0xff]
        %v515 = vld [vmem:[#allocation5 + $0x3f8] sm:$0xff]
        %516 = vmatprep.subr.mxu0 %v389
        %517 = vmatpush1.msra.mxu0 %v388
        %518 = vmatprep.subr.mxu0 %v397
        %519 = vmatpush1.msra.mxu0 %v396
        %520 = vmatprep.subr.mxu0 %v405
        %521 = vmatpush1.msra.mxu0 %v404
        %522 = vmatprep.subr.mxu0 %v413
        %523 = vmatpush1.msra.mxu0 %v412
        %524 = vmatprep.subr.mxu0 %v421
        %525 = vmatpush1.msra.mxu0 %v420
        %526 = vmatprep.subr.mxu0 %v429
        %527 = vmatpush1.msra.mxu0 %v428
        %528 = vmatprep.subr.mxu0 %v437
        %529 = vmatpush1.msra.mxu0 %v436
        %530 = vmatprep.subr.mxu0 %v445
        %531 = vmatpush1.msra.mxu0 %v444
        %532 = vmatprep.subr.mxu0 %v453
        %533 = vmatpush1.msra.mxu0 %v452
        %534 = vmatprep.subr.mxu0 %v461
        %535 = vmatpush1.msra.mxu0 %v460
        %536 = vmatprep.subr.mxu0 %v469
        %537 = vmatpush1.msra.mxu0 %v468
        %538 = vmatprep.subr.mxu0 %v477
        %539 = vmatpush1.msra.mxu0 %v476
        %540 = vmatprep.subr.mxu0 %v485
        %541 = vmatpush1.msra.mxu0 %v484
        %542 = vmatprep.subr.mxu0 %v493
        %543 = vmatpush1.msra.mxu0 %v492
        %544 = vmatprep.subr.mxu0 %v501
        %545 = vmatpush1.msra.mxu0 %v500
        %546 = vmatprep.subr.mxu0 %v509
        %547 = vmatpush1.msra.mxu0 %v508
        %548 = vmatprep.subr.mxu0 0.0
        %549 = vmatpush1.msra.mxu0 0.0
        %550 = vmatprep.subr.mxu0 0.0
        %551 = vmatpush1.msra.mxu0 0.0
        %552 = vmatprep.subr.mxu0 0.0
        %553 = vmatpush1.msra.mxu0 0.0
        %554 = vmatprep.subr.mxu0 0.0
        %555 = vmatpush1.msra.mxu0 0.0
        %556 = vmatprep.subr.mxu0 0.0
        %557 = vmatpush1.msra.mxu0 0.0
        %558 = vmatprep.subr.mxu0 0.0
        %559 = vmatpush1.msra.mxu0 0.0
        %560 = vmatprep.subr.mxu0 0.0
        %561 = vmatpush1.msra.mxu0 0.0
        %562 = vmatprep.subr.mxu0 0.0
        %563 = vmatpush1.msra.mxu0 0.0
        %564 = vmatprep.subr.mxu0 0.0
        %565 = vmatpush1.msra.mxu0 0.0
        %566 = vmatprep.subr.mxu0 0.0
        %567 = vmatpush1.msra.mxu0 0.0
        %568 = vmatprep.subr.mxu0 0.0
        %569 = vmatpush1.msra.mxu0 0.0
        %570 = vmatprep.subr.mxu0 0.0
        %571 = vmatpush1.msra.mxu0 0.0
        %572 = vmatprep.subr.mxu0 0.0
        %573 = vmatpush1.msra.mxu0 0.0
        %574 = vmatprep.subr.mxu0 0.0
        %575 = vmatpush1.msra.mxu0 0.0
        %576 = vmatprep.subr.mxu0 0.0
        %577 = vmatpush1.msra.mxu0 0.0
        %578 = vmatprep.subr.mxu0 0.0
        %579 = vmatpush1.msra.mxu0 0.0
        %580 = vmatprep.mubr.f32.mxu0 0.0
        %581 = vmatmul.mubr.f32.gmra.mrb[0].mxu0 %v372
        %v582 = vpop.f32.mrb[0].mxu0
        %v583 = vadd.f32 0.0, %v582
        %v584 = vpop.f32.mrb[0].mxu0
        %v585 = vadd.f32 0.0, %v584
        %586 = vmatprep.mubr.f32.mxu0 0.0
        %587 = vmatmul.mubr.f32.gmra.mrb[0].mxu0 %v373
        %v588 = vpop.f32.mrb[0].mxu0
        %v589 = vadd.f32 0.0, %v588
        %v590 = vpop.f32.mrb[0].mxu0
        %v591 = vadd.f32 0.0, %v590
        %592 = vmatprep.mubr.f32.mxu0 0.0
        %593 = vmatmul.mubr.f32.gmra.mrb[0].mxu0 %v374
        %v594 = vpop.f32.mrb[0].mxu0
        %v595 = vadd.f32 0.0, %v594
        %v596 = vpop.f32.mrb[0].mxu0
        %v597 = vadd.f32 0.0, %v596
        %598 = vmatprep.mubr.f32.mxu0 0.0
        %599 = vmatmul.mubr.f32.gmra.mrb[0].mxu0 %v375
        %v600 = vpop.f32.mrb[0].mxu0
        %v601 = vadd.f32 0.0, %v600
        %v602 = vpop.f32.mrb[0].mxu0
        %v603 = vadd.f32 0.0, %v602
        %604 = vmatprep.mubr.f32.mxu0 0.0
        %605 = vmatmul.mubr.f32.gmra.mrb[0].mxu0 %v376
        %v606 = vpop.f32.mrb[0].mxu0
        %v607 = vadd.f32 0.0, %v606
        %v608 = vpop.f32.mrb[0].mxu0
        %v609 = vadd.f32 0.0, %v608
        %610 = vmatprep.mubr.f32.mxu0 0.0
        %611 = vmatmul.mubr.f32.gmra.mrb[0].mxu0 %v377
        %v612 = vpop.f32.mrb[0].mxu0
        %v613 = vadd.f32 0.0, %v612
        %v614 = vpop.f32.mrb[0].mxu0
        %v615 = vadd.f32 0.0, %v614
        %616 = vmatprep.mubr.f32.mxu0 0.0
        %617 = vmatmul.mubr.f32.gmra.mrb[0].mxu0 %v378
        %v618 = vpop.f32.mrb[0].mxu0
        %v619 = vadd.f32 0.0, %v618
        %v620 = vpop.f32.mrb[0].mxu0
        %v621 = vadd.f32 0.0, %v620
        %622 = vmatprep.mubr.f32.mxu0 0.0
        %623 = vmatmul.mubr.f32.gmra.mrb[0].mxu0 %v379
        %v624 = vpop.f32.mrb[0].mxu0
        %v625 = vadd.f32 0.0, %v624
        %v626 = vpop.f32.mrb[0].mxu0
        %v627 = vadd.f32 0.0, %v626
        %628 = vmatprep.mubr.f32.mxu0 0.0
        %629 = vmatmul.mubr.f32.gmra.mrb[0].mxu0 %v380
        %v630 = vpop.f32.mrb[0].mxu0
        %v631 = vadd.f32 0.0, %v630
        %v632 = vpop.f32.mrb[0].mxu0
        %v633 = vadd.f32 0.0, %v632
        %634 = vmatprep.mubr.f32.mxu0 0.0
        %635 = vmatmul.mubr.f32.gmra.mrb[0].mxu0 %v381
        %v636 = vpop.f32.mrb[0].mxu0
        %v637 = vadd.f32 0.0, %v636
        %v638 = vpop.f32.mrb[0].mxu0
        %v639 = vadd.f32 0.0, %v638
        %640 = vmatprep.mubr.f32.mxu0 0.0
        %641 = vmatmul.mubr.f32.gmra.mrb[0].mxu0 %v382
        %v642 = vpop.f32.mrb[0].mxu0
        %v643 = vadd.f32 0.0, %v642
        %v644 = vpop.f32.mrb[0].mxu0
        %v645 = vadd.f32 0.0, %v644
        %646 = vmatprep.mubr.f32.mxu0 0.0
        %647 = vmatmul.mubr.f32.gmra.mrb[0].mxu0 %v383
        %v648 = vpop.f32.mrb[0].mxu0
        %v649 = vadd.f32 0.0, %v648
        %v650 = vpop.f32.mrb[0].mxu0
        %v651 = vadd.f32 0.0, %v650
        %652 = vmatprep.mubr.f32.mxu0 0.0
        %653 = vmatmul.mubr.f32.gmra.mrb[0].mxu0 %v384
        %v654 = vpop.f32.mrb[0].mxu0
        %v655 = vadd.f32 0.0, %v654
        %v656 = vpop.f32.mrb[0].mxu0
        %v657 = vadd.f32 0.0, %v656
        %658 = vmatprep.mubr.f32.mxu0 0.0
        %659 = vmatmul.mubr.f32.gmra.mrb[0].mxu0 %v385
        %v660 = vpop.f32.mrb[0].mxu0
        %v661 = vadd.f32 0.0, %v660
        %v662 = vpop.f32.mrb[0].mxu0
        %v663 = vadd.f32 0.0, %v662
        %664 = vmatprep.mubr.f32.mxu0 0.0
        %665 = vmatmul.mubr.f32.gmra.mrb[0].mxu0 %v386
        %v666 = vpop.f32.mrb[0].mxu0
        %v667 = vadd.f32 0.0, %v666
        %v668 = vpop.f32.mrb[0].mxu0
        %v669 = vadd.f32 0.0, %v668
        %670 = vmatprep.mubr.f32.mxu0 0.0
        %671 = vmatmul.mubr.f32.gmra.mrb[0].mxu0 %v387
        %v672 = vpop.f32.mrb[0].mxu0
        %v673 = vadd.f32 0.0, %v672
        %v674 = vpop.f32.mrb[0].mxu0
        %v675 = vadd.f32 0.0, %v674
        %676 = vdwg.mxu0
        %677 = vmatprep.subr.mxu0 %v391
        %678 = vmatpush1.msra.mxu0 %v390
        %679 = vmatprep.subr.mxu0 %v399
        %680 = vmatpush1.msra.mxu0 %v398
        %681 = vmatprep.subr.mxu0 %v407
        %682 = vmatpush1.msra.mxu0 %v406
        %683 = vmatprep.subr.mxu0 %v415
        %684 = vmatpush1.msra.mxu0 %v414
        %685 = vmatprep.subr.mxu0 %v423
        %686 = vmatpush1.msra.mxu0 %v422
        %687 = vmatprep.subr.mxu0 %v431
        %688 = vmatpush1.msra.mxu0 %v430
        %689 = vmatprep.subr.mxu0 %v439
        %690 = vmatpush1.msra.mxu0 %v438
        %691 = vmatprep.subr.mxu0 %v447
        %692 = vmatpush1.msra.mxu0 %v446
        %693 = vmatprep.subr.mxu0 %v455
        %694 = vmatpush1.msra.mxu0 %v454
        %695 = vmatprep.subr.mxu0 %v463
        %696 = vmatpush1.msra.mxu0 %v462
        %697 = vmatprep.subr.mxu0 %v471
        %698 = vmatpush1.msra.mxu0 %v470
        %699 = vmatprep.subr.mxu0 %v479
        %700 = vmatpush1.msra.mxu0 %v478
        %701 = vmatprep.subr.mxu0 %v487
        %702 = vmatpush1.msra.mxu0 %v486
        %703 = vmatprep.subr.mxu0 %v495
        %704 = vmatpush1.msra.mxu0 %v494
        %705 = vmatprep.subr.mxu0 %v503
        %706 = vmatpush1.msra.mxu0 %v502
        %707 = vmatprep.subr.mxu0 %v511
        %708 = vmatpush1.msra.mxu0 %v510
        %709 = vmatprep.subr.mxu0 0.0
        %710 = vmatpush1.msra.mxu0 0.0
        %711 = vmatprep.subr.mxu0 0.0
        %712 = vmatpush1.msra.mxu0 0.0
        %713 = vmatprep.subr.mxu0 0.0
        %714 = vmatpush1.msra.mxu0 0.0
        %715 = vmatprep.subr.mxu0 0.0
        %716 = vmatpush1.msra.mxu0 0.0
        %717 = vmatprep.subr.mxu0 0.0
        %718 = vmatpush1.msra.mxu0 0.0
        %719 = vmatprep.subr.mxu0 0.0
        %720 = vmatpush1.msra.mxu0 0.0
        %721 = vmatprep.subr.mxu0 0.0
        %722 = vmatpush1.msra.mxu0 0.0
        %723 = vmatprep.subr.mxu0 0.0
        %724 = vmatpush1.msra.mxu0 0.0
        %725 = vmatprep.subr.mxu0 0.0
        %726 = vmatpush1.msra.mxu0 0.0
        %727 = vmatprep.subr.mxu0 0.0
        %728 = vmatpush1.msra.mxu0 0.0
        %729 = vmatprep.subr.mxu0 0.0
        %730 = vmatpush1.msra.mxu0 0.0
        %731 = vmatprep.subr.mxu0 0.0
        %732 = vmatpush1.msra.mxu0 0.0
        %733 = vmatprep.subr.mxu0 0.0
        %734 = vmatpush1.msra.mxu0 0.0
        %735 = vmatprep.subr.mxu0 0.0
        %736 = vmatpush1.msra.mxu0 0.0
        %737 = vmatprep.subr.mxu0 0.0
        %738 = vmatpush1.msra.mxu0 0.0
        %739 = vmatprep.subr.mxu0 0.0
        %740 = vmatpush1.msra.mxu0 0.0
        %741 = vmatprep.mubr.f32.mxu0 0.0
        %742 = vmatmul.mubr.f32.gmra.mrb[0].mxu0 %v372
        %v743 = vpop.f32.mrb[0].mxu0
        %v744 = vadd.f32 0.0, %v743
        %v745 = vpop.f32.mrb[0].mxu0
        %v746 = vadd.f32 0.0, %v745
        %747 = vmatprep.mubr.f32.mxu0 0.0
        %748 = vmatmul.mubr.f32.gmra.mrb[0].mxu0 %v373
        %v749 = vpop.f32.mrb[0].mxu0
        %v750 = vadd.f32 0.0, %v749
        %v751 = vpop.f32.mrb[0].mxu0
        %v752 = vadd.f32 0.0, %v751
        %753 = vmatprep.mubr.f32.mxu0 0.0
        %754 = vmatmul.mubr.f32.gmra.mrb[0].mxu0 %v374
        %v755 = vpop.f32.mrb[0].mxu0
        %v756 = vadd.f32 0.0, %v755
        %v757 = vpop.f32.mrb[0].mxu0
        %v758 = vadd.f32 0.0, %v757
        %759 = vmatprep.mubr.f32.mxu0 0.0
        %760 = vmatmul.mubr.f32.gmra.mrb[0].mxu0 %v375
        %v761 = vpop.f32.mrb[0].mxu0
        %v762 = vadd.f32 0.0, %v761
        %v763 = vpop.f32.mrb[0].mxu0
        %v764 = vadd.f32 0.0, %v763
        %765 = vmatprep.mubr.f32.mxu0 0.0
        %766 = vmatmul.mubr.f32.gmra.mrb[0].mxu0 %v376
        %v767 = vpop.f32.mrb[0].mxu0
        %v768 = vadd.f32 0.0, %v767
        %v769 = vpop.f32.mrb[0].mxu0
        %v770 = vadd.f32 0.0, %v769
        %771 = vmatprep.mubr.f32.mxu0 0.0
        %772 = vmatmul.mubr.f32.gmra.mrb[0].mxu0 %v377
        %v773 = vpop.f32.mrb[0].mxu0
        %v774 = vadd.f32 0.0, %v773
        %v775 = vpop.f32.mrb[0].mxu0
        %v776 = vadd.f32 0.0, %v775
        %777 = vmatprep.mubr.f32.mxu0 0.0
        %778 = vmatmul.mubr.f32.gmra.mrb[0].mxu0 %v378
        %v779 = vpop.f32.mrb[0].mxu0
        %v780 = vadd.f32 0.0, %v779
        %v781 = vpop.f32.mrb[0].mxu0
        %v782 = vadd.f32 0.0, %v781
        %783 = vmatprep.mubr.f32.mxu0 0.0
        %784 = vmatmul.mubr.f32.gmra.mrb[0].mxu0 %v379
        %v785 = vpop.f32.mrb[0].mxu0
        %v786 = vadd.f32 0.0, %v785
        %v787 = vpop.f32.mrb[0].mxu0
        %v788 = vadd.f32 0.0, %v787
        %789 = vmatprep.mubr.f32.mxu0 0.0
        %790 = vmatmul.mubr.f32.gmra.mrb[0].mxu0 %v380
        %v791 = vpop.f32.mrb[0].mxu0
        %v792 = vadd.f32 0.0, %v791
        %v793 = vpop.f32.mrb[0].mxu0
        %v794 = vadd.f32 0.0, %v793
        %795 = vmatprep.mubr.f32.mxu0 0.0
        %796 = vmatmul.mubr.f32.gmra.mrb[0].mxu0 %v381
        %v797 = vpop.f32.mrb[0].mxu0
        %v798 = vadd.f32 0.0, %v797
        %v799 = vpop.f32.mrb[0].mxu0
        %v800 = vadd.f32 0.0, %v799
        %801 = vmatprep.mubr.f32.mxu0 0.0
        %802 = vmatmul.mubr.f32.gmra.mrb[0].mxu0 %v382
        %v803 = vpop.f32.mrb[0].mxu0
        %v804 = vadd.f32 0.0, %v803
        %v805 = vpop.f32.mrb[0].mxu0
        %v806 = vadd.f32 0.0, %v805
        %807 = vmatprep.mubr.f32.mxu0 0.0
        %808 = vmatmul.mubr.f32.gmra.mrb[0].mxu0 %v383
        %v809 = vpop.f32.mrb[0].mxu0
        %v810 = vadd.f32 0.0, %v809
        %v811 = vpop.f32.mrb[0].mxu0
        %v812 = vadd.f32 0.0, %v811
        %813 = vmatprep.mubr.f32.mxu0 0.0
        %814 = vmatmul.mubr.f32.gmra.mrb[0].mxu0 %v384
        %v815 = vpop.f32.mrb[0].mxu0
        %v816 = vadd.f32 0.0, %v815
        %v817 = vpop.f32.mrb[0].mxu0
        %v818 = vadd.f32 0.0, %v817
        %819 = vmatprep.mubr.f32.mxu0 0.0
        %820 = vmatmul.mubr.f32.gmra.mrb[0].mxu0 %v385
        %v821 = vpop.f32.mrb[0].mxu0
        %v822 = vadd.f32 0.0, %v821
        %v823 = vpop.f32.mrb[0].mxu0
        %v824 = vadd.f32 0.0, %v823
        %825 = vmatprep.mubr.f32.mxu0 0.0
        %826 = vmatmul.mubr.f32.gmra.mrb[0].mxu0 %v386
        %v827 = vpop.f32.mrb[0].mxu0
        %v828 = vadd.f32 0.0, %v827
        %v829 = vpop.f32.mrb[0].mxu0
        %v830 = vadd.f32 0.0, %v829
        %831 = vmatprep.mubr.f32.mxu0 0.0
        %832 = vmatmul.mubr.f32.gmra.mrb[0].mxu0 %v387
        %v833 = vpop.f32.mrb[0].mxu0
        %v834 = vadd.f32 0.0, %v833
        %v835 = vpop.f32.mrb[0].mxu0
        %v836 = vadd.f32 0.0, %v835
        %837 = vdwg.mxu0
        %838 = vmatprep.subr.mxu0 %v393
        %839 = vmatpush1.msra.mxu0 %v392
        %840 = vmatprep.subr.mxu0 %v401
        %841 = vmatpush1.msra.mxu0 %v400
        %842 = vmatprep.subr.mxu0 %v409
        %843 = vmatpush1.msra.mxu0 %v408
        %844 = vmatprep.subr.mxu0 %v417
        %845 = vmatpush1.msra.mxu0 %v416
        %846 = vmatprep.subr.mxu0 %v425
        %847 = vmatpush1.msra.mxu0 %v424
        %848 = vmatprep.subr.mxu0 %v433
        %849 = vmatpush1.msra.mxu0 %v432
        %850 = vmatprep.subr.mxu0 %v441
        %851 = vmatpush1.msra.mxu0 %v440
        %852 = vmatprep.subr.mxu0 %v449
        %853 = vmatpush1.msra.mxu0 %v448
        %854 = vmatprep.subr.mxu0 %v457
        %855 = vmatpush1.msra.mxu0 %v456
        %856 = vmatprep.subr.mxu0 %v465
        %857 = vmatpush1.msra.mxu0 %v464
        %858 = vmatprep.subr.mxu0 %v473
        %859 = vmatpush1.msra.mxu0 %v472
        %860 = vmatprep.subr.mxu0 %v481
        %861 = vmatpush1.msra.mxu0 %v480
        %862 = vmatprep.subr.mxu0 %v489
        %863 = vmatpush1.msra.mxu0 %v488
        %864 = vmatprep.subr.mxu0 %v497
        %865 = vmatpush1.msra.mxu0 %v496
        %866 = vmatprep.subr.mxu0 %v505
        %867 = vmatpush1.msra.mxu0 %v504
        %868 = vmatprep.subr.mxu0 %v513
        %869 = vmatpush1.msra.mxu0 %v512
        %870 = vmatprep.subr.mxu0 0.0
        %871 = vmatpush1.msra.mxu0 0.0
        %872 = vmatprep.subr.mxu0 0.0
        %873 = vmatpush1.msra.mxu0 0.0
        %874 = vmatprep.subr.mxu0 0.0
        %875 = vmatpush1.msra.mxu0 0.0
        %876 = vmatprep.subr.mxu0 0.0
        %877 = vmatpush1.msra.mxu0 0.0
        %878 = vmatprep.subr.mxu0 0.0
        %879 = vmatpush1.msra.mxu0 0.0
        %880 = vmatprep.subr.mxu0 0.0
        %881 = vmatpush1.msra.mxu0 0.0
        %882 = vmatprep.subr.mxu0 0.0
        %883 = vmatpush1.msra.mxu0 0.0
        %884 = vmatprep.subr.mxu0 0.0
        %885 = vmatpush1.msra.mxu0 0.0
        %886 = vmatprep.subr.mxu0 0.0
        %887 = vmatpush1.msra.mxu0 0.0
        %888 = vmatprep.subr.mxu0 0.0
        %889 = vmatpush1.msra.mxu0 0.0
        %890 = vmatprep.subr.mxu0 0.0
        %891 = vmatpush1.msra.mxu0 0.0
        %892 = vmatprep.subr.mxu0 0.0
        %893 = vmatpush1.msra.mxu0 0.0
        %894 = vmatprep.subr.mxu0 0.0
        %895 = vmatpush1.msra.mxu0 0.0
        %896 = vmatprep.subr.mxu0 0.0
        %897 = vmatpush1.msra.mxu0 0.0
        %898 = vmatprep.subr.mxu0 0.0
        %899 = vmatpush1.msra.mxu0 0.0
        %900 = vmatprep.subr.mxu0 0.0
        %901 = vmatpush1.msra.mxu0 0.0
        %902 = vmatprep.mubr.f32.mxu0 0.0
        %903 = vmatmul.mubr.f32.gmra.mrb[0].mxu0 %v372
        %v904 = vpop.f32.mrb[0].mxu0
        %v905 = vadd.f32 0.0, %v904
        %v906 = vpop.f32.mrb[0].mxu0
        %v907 = vadd.f32 0.0, %v906
        %908 = vmatprep.mubr.f32.mxu0 0.0
        %909 = vmatmul.mubr.f32.gmra.mrb[0].mxu0 %v373
        %v910 = vpop.f32.mrb[0].mxu0
        %v911 = vadd.f32 0.0, %v910
        %v912 = vpop.f32.mrb[0].mxu0
        %v913 = vadd.f32 0.0, %v912
        %914 = vmatprep.mubr.f32.mxu0 0.0
        %915 = vmatmul.mubr.f32.gmra.mrb[0].mxu0 %v374
        %v916 = vpop.f32.mrb[0].mxu0
        %v917 = vadd.f32 0.0, %v916
        %v918 = vpop.f32.mrb[0].mxu0
        %v919 = vadd.f32 0.0, %v918
        %920 = vmatprep.mubr.f32.mxu0 0.0
        %921 = vmatmul.mubr.f32.gmra.mrb[0].mxu0 %v375
        %v922 = vpop.f32.mrb[0].mxu0
        %v923 = vadd.f32 0.0, %v922
        %v924 = vpop.f32.mrb[0].mxu0
        %v925 = vadd.f32 0.0, %v924
        %926 = vmatprep.mubr.f32.mxu0 0.0
        %927 = vmatmul.mubr.f32.gmra.mrb[0].mxu0 %v376
        %v928 = vpop.f32.mrb[0].mxu0
        %v929 = vadd.f32 0.0, %v928
        %v930 = vpop.f32.mrb[0].mxu0
        %v931 = vadd.f32 0.0, %v930
        %932 = vmatprep.mubr.f32.mxu0 0.0
        %933 = vmatmul.mubr.f32.gmra.mrb[0].mxu0 %v377
        %v934 = vpop.f32.mrb[0].mxu0
        %v935 = vadd.f32 0.0, %v934
        %v936 = vpop.f32.mrb[0].mxu0
        %v937 = vadd.f32 0.0, %v936
        %938 = vmatprep.mubr.f32.mxu0 0.0
        %939 = vmatmul.mubr.f32.gmra.mrb[0].mxu0 %v378
        %v940 = vpop.f32.mrb[0].mxu0
        %v941 = vadd.f32 0.0, %v940
        %v942 = vpop.f32.mrb[0].mxu0
        %v943 = vadd.f32 0.0, %v942
        %944 = vmatprep.mubr.f32.mxu0 0.0
        %945 = vmatmul.mubr.f32.gmra.mrb[0].mxu0 %v379
        %v946 = vpop.f32.mrb[0].mxu0
        %v947 = vadd.f32 0.0, %v946
        %v948 = vpop.f32.mrb[0].mxu0
        %v949 = vadd.f32 0.0, %v948
        %950 = vmatprep.mubr.f32.mxu0 0.0
        %951 = vmatmul.mubr.f32.gmra.mrb[0].mxu0 %v380
        %v952 = vpop.f32.mrb[0].mxu0
        %v953 = vadd.f32 0.0, %v952
        %v954 = vpop.f32.mrb[0].mxu0
        %v955 = vadd.f32 0.0, %v954
        %956 = vmatprep.mubr.f32.mxu0 0.0
        %957 = vmatmul.mubr.f32.gmra.mrb[0].mxu0 %v381
        %v958 = vpop.f32.mrb[0].mxu0
        %v959 = vadd.f32 0.0, %v958
        %v960 = vpop.f32.mrb[0].mxu0
        %v961 = vadd.f32 0.0, %v960
        %962 = vmatprep.mubr.f32.mxu0 0.0
        %963 = vmatmul.mubr.f32.gmra.mrb[0].mxu0 %v382
        %v964 = vpop.f32.mrb[0].mxu0
        %v965 = vadd.f32 0.0, %v964
        %v966 = vpop.f32.mrb[0].mxu0
        %v967 = vadd.f32 0.0, %v966
        %968 = vmatprep.mubr.f32.mxu0 0.0
        %969 = vmatmul.mubr.f32.gmra.mrb[0].mxu0 %v383
        %v970 = vpop.f32.mrb[0].mxu0
        %v971 = vadd.f32 0.0, %v970
        %v972 = vpop.f32.mrb[0].mxu0
        %v973 = vadd.f32 0.0, %v972
        %974 = vmatprep.mubr.f32.mxu0 0.0
        %975 = vmatmul.mubr.f32.gmra.mrb[0].mxu0 %v384
        %v976 = vpop.f32.mrb[0].mxu0
        %v977 = vadd.f32 0.0, %v976
        %v978 = vpop.f32.mrb[0].mxu0
        %v979 = vadd.f32 0.0, %v978
        %980 = vmatprep.mubr.f32.mxu0 0.0
        %981 = vmatmul.mubr.f32.gmra.mrb[0].mxu0 %v385
        %v982 = vpop.f32.mrb[0].mxu0
        %v983 = vadd.f32 0.0, %v982
        %v984 = vpop.f32.mrb[0].mxu0
        %v985 = vadd.f32 0.0, %v984
        %986 = vmatprep.mubr.f32.mxu0 0.0
        %987 = vmatmul.mubr.f32.gmra.mrb[0].mxu0 %v386
        %v988 = vpop.f32.mrb[0].mxu0
        %v989 = vadd.f32 0.0, %v988
        %v990 = vpop.f32.mrb[0].mxu0
        %v991 = vadd.f32 0.0, %v990
        %992 = vmatprep.mubr.f32.mxu0 0.0
        %993 = vmatmul.mubr.f32.gmra.mrb[0].mxu0 %v387
        %v994 = vpop.f32.mrb[0].mxu0
        %v995 = vadd.f32 0.0, %v994
        %v996 = vpop.f32.mrb[0].mxu0
        %v997 = vadd.f32 0.0, %v996
        %998 = vdwg.mxu0
        %999 = vmatprep.subr.mxu0 %v395
        %1000 = vmatpush1.msra.mxu0 %v394
        %1001 = vmatprep.subr.mxu0 %v403
        %1002 = vmatpush1.msra.mxu0 %v402
        %1003 = vmatprep.subr.mxu0 %v411
        %1004 = vmatpush1.msra.mxu0 %v410
        %1005 = vmatprep.subr.mxu0 %v419
        %1006 = vmatpush1.msra.mxu0 %v418
        %1007 = vmatprep.subr.mxu0 %v427
        %1008 = vmatpush1.msra.mxu0 %v426
        %1009 = vmatprep.subr.mxu0 %v435
        %1010 = vmatpush1.msra.mxu0 %v434
        %1011 = vmatprep.subr.mxu0 %v443
        %1012 = vmatpush1.msra.mxu0 %v442
        %1013 = vmatprep.subr.mxu0 %v451
        %1014 = vmatpush1.msra.mxu0 %v450
        %1015 = vmatprep.subr.mxu0 %v459
        %1016 = vmatpush1.msra.mxu0 %v458
        %1017 = vmatprep.subr.mxu0 %v467
        %1018 = vmatpush1.msra.mxu0 %v466
        %1019 = vmatprep.subr.mxu0 %v475
        %1020 = vmatpush1.msra.mxu0 %v474
        %1021 = vmatprep.subr.mxu0 %v483
        %1022 = vmatpush1.msra.mxu0 %v482
        %1023 = vmatprep.subr.mxu0 %v491
        %1024 = vmatpush1.msra.mxu0 %v490
        %1025 = vmatprep.subr.mxu0 %v499
        %1026 = vmatpush1.msra.mxu0 %v498
        %1027 = vmatprep.subr.mxu0 %v507
        %1028 = vmatpush1.msra.mxu0 %v506
        %1029 = vmatprep.subr.mxu0 %v515
        %1030 = vmatpush1.msra.mxu0 %v514
        %1031 = vmatprep.subr.mxu0 0.0
        %1032 = vmatpush1.msra.mxu0 0.0
        %1033 = vmatprep.subr.mxu0 0.0
        %1034 = vmatpush1.msra.mxu0 0.0
        %1035 = vmatprep.subr.mxu0 0.0
        %1036 = vmatpush1.msra.mxu0 0.0
        %1037 = vmatprep.subr.mxu0 0.0
        %1038 = vmatpush1.msra.mxu0 0.0
        %1039 = vmatprep.subr.mxu0 0.0
        %1040 = vmatpush1.msra.mxu0 0.0
        %1041 = vmatprep.subr.mxu0 0.0
        %1042 = vmatpush1.msra.mxu0 0.0
        %1043 = vmatprep.subr.mxu0 0.0
        %1044 = vmatpush1.msra.mxu0 0.0
        %1045 = vmatprep.subr.mxu0 0.0
        %1046 = vmatpush1.msra.mxu0 0.0
        %1047 = vmatprep.subr.mxu0 0.0
        %1048 = vmatpush1.msra.mxu0 0.0
        %1049 = vmatprep.subr.mxu0 0.0
        %1050 = vmatpush1.msra.mxu0 0.0
        %1051 = vmatprep.subr.mxu0 0.0
        %1052 = vmatpush1.msra.mxu0 0.0
        %1053 = vmatprep.subr.mxu0 0.0
        %1054 = vmatpush1.msra.mxu0 0.0
        %1055 = vmatprep.subr.mxu0 0.0
        %1056 = vmatpush1.msra.mxu0 0.0
        %1057 = vmatprep.subr.mxu0 0.0
        %1058 = vmatpush1.msra.mxu0 0.0
        %1059 = vmatprep.subr.mxu0 0.0
        %1060 = vmatpush1.msra.mxu0 0.0
        %1061 = vmatprep.subr.mxu0 0.0
        %1062 = vmatpush1.msra.mxu0 0.0
        %1063 = vmatprep.mubr.f32.mxu0 0.0
        %1064 = vmatmul.mubr.f32.gmra.mrb[0].mxu0 %v372
        %v1065 = vpop.f32.mrb[0].mxu0
        %v1066 = vadd.f32 0.0, %v1065
        %v1067 = vpop.f32.mrb[0].mxu0
        %v1068 = vadd.f32 0.0, %v1067
        %1069 = vmatprep.mubr.f32.mxu0 0.0
        %1070 = vmatmul.mubr.f32.gmra.mrb[0].mxu0 %v373
        %v1071 = vpop.f32.mrb[0].mxu0
        %v1072 = vadd.f32 0.0, %v1071
        %v1073 = vpop.f32.mrb[0].mxu0
        %v1074 = vadd.f32 0.0, %v1073
        %1075 = vmatprep.mubr.f32.mxu0 0.0
        %1076 = vmatmul.mubr.f32.gmra.mrb[0].mxu0 %v374
        %v1077 = vpop.f32.mrb[0].mxu0
        %v1078 = vadd.f32 0.0, %v1077
        %v1079 = vpop.f32.mrb[0].mxu0
        %v1080 = vadd.f32 0.0, %v1079
        %1081 = vmatprep.mubr.f32.mxu0 0.0
        %1082 = vmatmul.mubr.f32.gmra.mrb[0].mxu0 %v375
        %v1083 = vpop.f32.mrb[0].mxu0
        %v1084 = vadd.f32 0.0, %v1083
        %v1085 = vpop.f32.mrb[0].mxu0
        %v1086 = vadd.f32 0.0, %v1085
        %1087 = vmatprep.mubr.f32.mxu0 0.0
        %1088 = vmatmul.mubr.f32.gmra.mrb[0].mxu0 %v376
        %v1089 = vpop.f32.mrb[0].mxu0
        %v1090 = vadd.f32 0.0, %v1089
        %v1091 = vpop.f32.mrb[0].mxu0
        %v1092 = vadd.f32 0.0, %v1091
        %1093 = vmatprep.mubr.f32.mxu0 0.0
        %1094 = vmatmul.mubr.f32.gmra.mrb[0].mxu0 %v377
        %v1095 = vpop.f32.mrb[0].mxu0
        %v1096 = vadd.f32 0.0, %v1095
        %v1097 = vpop.f32.mrb[0].mxu0
        %v1098 = vadd.f32 0.0, %v1097
        %1099 = vmatprep.mubr.f32.mxu0 0.0
        %1100 = vmatmul.mubr.f32.gmra.mrb[0].mxu0 %v378
        %v1101 = vpop.f32.mrb[0].mxu0
        %v1102 = vadd.f32 0.0, %v1101
        %v1103 = vpop.f32.mrb[0].mxu0
        %v1104 = vadd.f32 0.0, %v1103
        %1105 = vmatprep.mubr.f32.mxu0 0.0
        %1106 = vmatmul.mubr.f32.gmra.mrb[0].mxu0 %v379
        %v1107 = vpop.f32.mrb[0].mxu0
        %v1108 = vadd.f32 0.0, %v1107
        %v1109 = vpop.f32.mrb[0].mxu0
        %v1110 = vadd.f32 0.0, %v1109
        %1111 = vmatprep.mubr.f32.mxu0 0.0
        %1112 = vmatmul.mubr.f32.gmra.mrb[0].mxu0 %v380
        %v1113 = vpop.f32.mrb[0].mxu0
        %v1114 = vadd.f32 0.0, %v1113
        %v1115 = vpop.f32.mrb[0].mxu0
        %v1116 = vadd.f32 0.0, %v1115
        %1117 = vmatprep.mubr.f32.mxu0 0.0
        %1118 = vmatmul.mubr.f32.gmra.mrb[0].mxu0 %v381
        %v1119 = vpop.f32.mrb[0].mxu0
        %v1120 = vadd.f32 0.0, %v1119
        %v1121 = vpop.f32.mrb[0].mxu0
        %v1122 = vadd.f32 0.0, %v1121
        %1123 = vmatprep.mubr.f32.mxu0 0.0
        %1124 = vmatmul.mubr.f32.gmra.mrb[0].mxu0 %v382
        %v1125 = vpop.f32.mrb[0].mxu0
        %v1126 = vadd.f32 0.0, %v1125
        %v1127 = vpop.f32.mrb[0].mxu0
        %v1128 = vadd.f32 0.0, %v1127
        %1129 = vmatprep.mubr.f32.mxu0 0.0
        %1130 = vmatmul.mubr.f32.gmra.mrb[0].mxu0 %v383
        %v1131 = vpop.f32.mrb[0].mxu0
        %v1132 = vadd.f32 0.0, %v1131
        %v1133 = vpop.f32.mrb[0].mxu0
        %v1134 = vadd.f32 0.0, %v1133
        %1135 = vmatprep.mubr.f32.mxu0 0.0
        %1136 = vmatmul.mubr.f32.gmra.mrb[0].mxu0 %v384
        %v1137 = vpop.f32.mrb[0].mxu0
        %v1138 = vadd.f32 0.0, %v1137
        %v1139 = vpop.f32.mrb[0].mxu0
        %v1140 = vadd.f32 0.0, %v1139
        %1141 = vmatprep.mubr.f32.mxu0 0.0
        %1142 = vmatmul.mubr.f32.gmra.mrb[0].mxu0 %v385
        %v1143 = vpop.f32.mrb[0].mxu0
        %v1144 = vadd.f32 0.0, %v1143
        %v1145 = vpop.f32.mrb[0].mxu0
        %v1146 = vadd.f32 0.0, %v1145
        %1147 = vmatprep.mubr.f32.mxu0 0.0
        %1148 = vmatmul.mubr.f32.gmra.mrb[0].mxu0 %v386
        %v1149 = vpop.f32.mrb[0].mxu0
        %v1150 = vadd.f32 0.0, %v1149
        %v1151 = vpop.f32.mrb[0].mxu0
        %v1152 = vadd.f32 0.0, %v1151
        %1153 = vmatprep.mubr.f32.mxu0 0.0
        %1154 = vmatmul.mubr.f32.gmra.mrb[0].mxu0 %v387
        %v1155 = vpop.f32.mrb[0].mxu0
        %v1156 = vadd.f32 0.0, %v1155
        %v1157 = vpop.f32.mrb[0].mxu0
        %v1158 = vadd.f32 0.0, %v1157
        %1159 = vdwg.mxu0
        %v1160 = vld [vmem:[#allocation7] sm:$0xff]
        %v1161 = vld [vmem:[#allocation7 + $0x8] sm:$0xff]
        %v1162 = vld [vmem:[#allocation7 + $0x10] sm:$0xff]
        %v1163 = vld [vmem:[#allocation7 + $0x18] sm:$0xff]
        %v1164 = vld [vmem:[#allocation7 + $0x20] sm:$0xff]
        %v1165 = vld [vmem:[#allocation7 + $0x28] sm:$0xff]
        %v1166 = vld [vmem:[#allocation7 + $0x30] sm:$0xff]
        %v1167 = vld [vmem:[#allocation7 + $0x38] sm:$0xff]
        %v1168 = vld [vmem:[#allocation7 + $0x40] sm:$0xff]
        %v1169 = vld [vmem:[#allocation7 + $0x48] sm:$0xff]
        %v1170 = vld [vmem:[#allocation7 + $0x50] sm:$0xff]
        %v1171 = vld [vmem:[#allocation7 + $0x58] sm:$0xff]
        %v1172 = vld [vmem:[#allocation7 + $0x60] sm:$0xff]
        %v1173 = vld [vmem:[#allocation7 + $0x68] sm:$0xff]
        %v1174 = vld [vmem:[#allocation7 + $0x70] sm:$0xff]
        %v1175 = vld [vmem:[#allocation7 + $0x78] sm:$0xff]
        %v1176 = vld [vmem:[#allocation7 + $0x80] sm:$0xff]
        %v1177 = vld [vmem:[#allocation7 + $0x88] sm:$0xff]
        %v1178 = vld [vmem:[#allocation7 + $0x90] sm:$0xff]
        %v1179 = vld [vmem:[#allocation7 + $0x98] sm:$0xff]
        %v1180 = vld [vmem:[#allocation7 + $0xa0] sm:$0xff]
        %v1181 = vld [vmem:[#allocation7 + $0xa8] sm:$0xff]
        %v1182 = vld [vmem:[#allocation7 + $0xb0] sm:$0xff]
        %v1183 = vld [vmem:[#allocation7 + $0xb8] sm:$0xff]
        %v1184 = vld [vmem:[#allocation7 + $0xc0] sm:$0xff]
        %v1185 = vld [vmem:[#allocation7 + $0xc8] sm:$0xff]
        %v1186 = vld [vmem:[#allocation7 + $0xd0] sm:$0xff]
        %v1187 = vld [vmem:[#allocation7 + $0xd8] sm:$0xff]
        %v1188 = vld [vmem:[#allocation7 + $0xe0] sm:$0xff]
        %v1189 = vld [vmem:[#allocation7 + $0xe8] sm:$0xff]
        %v1190 = vld [vmem:[#allocation7 + $0xf0] sm:$0xff]
        %v1191 = vld [vmem:[#allocation7 + $0xf8] sm:$0xff]
        %v1192 = vld [vmem:[#allocation7 + $0x100] sm:$0xff]
        %v1193 = vld [vmem:[#allocation7 + $0x108] sm:$0xff]
        %v1194 = vld [vmem:[#allocation7 + $0x110] sm:$0xff]
        %v1195 = vld [vmem:[#allocation7 + $0x118] sm:$0xff]
        %v1196 = vld [vmem:[#allocation7 + $0x120] sm:$0xff]
        %v1197 = vld [vmem:[#allocation7 + $0x128] sm:$0xff]
        %v1198 = vld [vmem:[#allocation7 + $0x130] sm:$0xff]
        %v1199 = vld [vmem:[#allocation7 + $0x138] sm:$0xff]
        %v1200 = vld [vmem:[#allocation7 + $0x140] sm:$0xff]
        %v1201 = vld [vmem:[#allocation7 + $0x148] sm:$0xff]
        %v1202 = vld [vmem:[#allocation7 + $0x150] sm:$0xff]
        %v1203 = vld [vmem:[#allocation7 + $0x158] sm:$0xff]
        %v1204 = vld [vmem:[#allocation7 + $0x160] sm:$0xff]
        %v1205 = vld [vmem:[#allocation7 + $0x168] sm:$0xff]
        %v1206 = vld [vmem:[#allocation7 + $0x170] sm:$0xff]
        %v1207 = vld [vmem:[#allocation7 + $0x178] sm:$0xff]
        %v1208 = vld [vmem:[#allocation7 + $0x180] sm:$0xff]
        %v1209 = vld [vmem:[#allocation7 + $0x188] sm:$0xff]
        %v1210 = vld [vmem:[#allocation7 + $0x190] sm:$0xff]
        %v1211 = vld [vmem:[#allocation7 + $0x198] sm:$0xff]
        %v1212 = vld [vmem:[#allocation7 + $0x1a0] sm:$0xff]
        %v1213 = vld [vmem:[#allocation7 + $0x1a8] sm:$0xff]
        %v1214 = vld [vmem:[#allocation7 + $0x1b0] sm:$0xff]
        %v1215 = vld [vmem:[#allocation7 + $0x1b8] sm:$0xff]
        %v1216 = vld [vmem:[#allocation7 + $0x1c0] sm:$0xff]
        %v1217 = vld [vmem:[#allocation7 + $0x1c8] sm:$0xff]
        %v1218 = vld [vmem:[#allocation7 + $0x1d0] sm:$0xff]
        %v1219 = vld [vmem:[#allocation7 + $0x1d8] sm:$0xff]
        %v1220 = vld [vmem:[#allocation7 + $0x1e0] sm:$0xff]
        %v1221 = vld [vmem:[#allocation7 + $0x1e8] sm:$0xff]
        %v1222 = vld [vmem:[#allocation7 + $0x1f0] sm:$0xff]
        %v1223 = vld [vmem:[#allocation7 + $0x1f8] sm:$0xff]
        %v1224 = vld [vmem:[#allocation7 + $0x200] sm:$0xff]
        %v1225 = vld [vmem:[#allocation7 + $0x208] sm:$0xff]
        %v1226 = vld [vmem:[#allocation7 + $0x210] sm:$0xff]
        %v1227 = vld [vmem:[#allocation7 + $0x218] sm:$0xff]
        %v1228 = vld [vmem:[#allocation7 + $0x220] sm:$0xff]
        %v1229 = vld [vmem:[#allocation7 + $0x228] sm:$0xff]
        %v1230 = vld [vmem:[#allocation7 + $0x230] sm:$0xff]
        %v1231 = vld [vmem:[#allocation7 + $0x238] sm:$0xff]
        %v1232 = vld [vmem:[#allocation7 + $0x240] sm:$0xff]
        %v1233 = vld [vmem:[#allocation7 + $0x248] sm:$0xff]
        %v1234 = vld [vmem:[#allocation7 + $0x250] sm:$0xff]
        %v1235 = vld [vmem:[#allocation7 + $0x258] sm:$0xff]
        %v1236 = vld [vmem:[#allocation7 + $0x260] sm:$0xff]
        %v1237 = vld [vmem:[#allocation7 + $0x268] sm:$0xff]
        %v1238 = vld [vmem:[#allocation7 + $0x270] sm:$0xff]
        %v1239 = vld [vmem:[#allocation7 + $0x278] sm:$0xff]
        %v1240 = vld [vmem:[#allocation7 + $0x280] sm:$0xff]
        %v1241 = vld [vmem:[#allocation7 + $0x288] sm:$0xff]
        %v1242 = vld [vmem:[#allocation7 + $0x290] sm:$0xff]
        %v1243 = vld [vmem:[#allocation7 + $0x298] sm:$0xff]
        %v1244 = vld [vmem:[#allocation7 + $0x2a0] sm:$0xff]
        %v1245 = vld [vmem:[#allocation7 + $0x2a8] sm:$0xff]
        %v1246 = vld [vmem:[#allocation7 + $0x2b0] sm:$0xff]
        %v1247 = vld [vmem:[#allocation7 + $0x2b8] sm:$0xff]
        %v1248 = vld [vmem:[#allocation7 + $0x2c0] sm:$0xff]
        %v1249 = vld [vmem:[#allocation7 + $0x2c8] sm:$0xff]
        %v1250 = vld [vmem:[#allocation7 + $0x2d0] sm:$0xff]
        %v1251 = vld [vmem:[#allocation7 + $0x2d8] sm:$0xff]
        %v1252 = vld [vmem:[#allocation7 + $0x2e0] sm:$0xff]
        %v1253 = vld [vmem:[#allocation7 + $0x2e8] sm:$0xff]
        %v1254 = vld [vmem:[#allocation7 + $0x2f0] sm:$0xff]
        %v1255 = vld [vmem:[#allocation7 + $0x2f8] sm:$0xff]
        %v1256 = vld [vmem:[#allocation7 + $0x300] sm:$0xff]
        %v1257 = vld [vmem:[#allocation7 + $0x308] sm:$0xff]
        %v1258 = vld [vmem:[#allocation7 + $0x310] sm:$0xff]
        %v1259 = vld [vmem:[#allocation7 + $0x318] sm:$0xff]
        %v1260 = vld [vmem:[#allocation7 + $0x320] sm:$0xff]
        %v1261 = vld [vmem:[#allocation7 + $0x328] sm:$0xff]
        %v1262 = vld [vmem:[#allocation7 + $0x330] sm:$0xff]
        %v1263 = vld [vmem:[#allocation7 + $0x338] sm:$0xff]
        %v1264 = vld [vmem:[#allocation7 + $0x340] sm:$0xff]
        %v1265 = vld [vmem:[#allocation7 + $0x348] sm:$0xff]
        %v1266 = vld [vmem:[#allocation7 + $0x350] sm:$0xff]
        %v1267 = vld [vmem:[#allocation7 + $0x358] sm:$0xff]
        %v1268 = vld [vmem:[#allocation7 + $0x360] sm:$0xff]
        %v1269 = vld [vmem:[#allocation7 + $0x368] sm:$0xff]
        %v1270 = vld [vmem:[#allocation7 + $0x370] sm:$0xff]
        %v1271 = vld [vmem:[#allocation7 + $0x378] sm:$0xff]
        %v1272 = vld [vmem:[#allocation7 + $0x380] sm:$0xff]
        %v1273 = vld [vmem:[#allocation7 + $0x388] sm:$0xff]
        %v1274 = vld [vmem:[#allocation7 + $0x390] sm:$0xff]
        %v1275 = vld [vmem:[#allocation7 + $0x398] sm:$0xff]
        %v1276 = vld [vmem:[#allocation7 + $0x3a0] sm:$0xff]
        %v1277 = vld [vmem:[#allocation7 + $0x3a8] sm:$0xff]
        %v1278 = vld [vmem:[#allocation7 + $0x3b0] sm:$0xff]
        %v1279 = vld [vmem:[#allocation7 + $0x3b8] sm:$0xff]
        %v1280 = vld [vmem:[#allocation7 + $0x3c0] sm:$0xff]
        %v1281 = vld [vmem:[#allocation7 + $0x3c8] sm:$0xff]
        %v1282 = vld [vmem:[#allocation7 + $0x3d0] sm:$0xff]
        %v1283 = vld [vmem:[#allocation7 + $0x3d8] sm:$0xff]
        %v1284 = vld [vmem:[#allocation7 + $0x3e0] sm:$0xff]
        %v1285 = vld [vmem:[#allocation7 + $0x3e8] sm:$0xff]
        %v1286 = vld [vmem:[#allocation7 + $0x3f0] sm:$0xff]
        %v1287 = vld [vmem:[#allocation7 + $0x3f8] sm:$0xff]
        %1288 = vmatprep.subr.mxu0 %v1161
        %1289 = vmatpush1.msra.mxu0 %v1160
        %1290 = vmatprep.subr.mxu0 %v1169
        %1291 = vmatpush1.msra.mxu0 %v1168
        %1292 = vmatprep.subr.mxu0 %v1177
        %1293 = vmatpush1.msra.mxu0 %v1176
        %1294 = vmatprep.subr.mxu0 %v1185
        %1295 = vmatpush1.msra.mxu0 %v1184
        %1296 = vmatprep.subr.mxu0 %v1193
        %1297 = vmatpush1.msra.mxu0 %v1192
        %1298 = vmatprep.subr.mxu0 %v1201
        %1299 = vmatpush1.msra.mxu0 %v1200
        %1300 = vmatprep.subr.mxu0 %v1209
        %1301 = vmatpush1.msra.mxu0 %v1208
        %1302 = vmatprep.subr.mxu0 %v1217
        %1303 = vmatpush1.msra.mxu0 %v1216
        %1304 = vmatprep.subr.mxu0 %v1225
        %1305 = vmatpush1.msra.mxu0 %v1224
        %1306 = vmatprep.subr.mxu0 %v1233
        %1307 = vmatpush1.msra.mxu0 %v1232
        %1308 = vmatprep.subr.mxu0 %v1241
        %1309 = vmatpush1.msra.mxu0 %v1240
        %1310 = vmatprep.subr.mxu0 %v1249
        %1311 = vmatpush1.msra.mxu0 %v1248
        %1312 = vmatprep.subr.mxu0 %v1257
        %1313 = vmatpush1.msra.mxu0 %v1256
        %1314 = vmatprep.subr.mxu0 %v1265
        %1315 = vmatpush1.msra.mxu0 %v1264
        %1316 = vmatprep.subr.mxu0 %v1273
        %1317 = vmatpush1.msra.mxu0 %v1272
        %1318 = vmatprep.subr.mxu0 %v1281
        %1319 = vmatpush1.msra.mxu0 %v1280
        %1320 = vmatprep.subr.mxu0 0.0
        %1321 = vmatpush1.msra.mxu0 0.0
        %1322 = vmatprep.subr.mxu0 0.0
        %1323 = vmatpush1.msra.mxu0 0.0
        %1324 = vmatprep.subr.mxu0 0.0
        %1325 = vmatpush1.msra.mxu0 0.0
        %1326 = vmatprep.subr.mxu0 0.0
        %1327 = vmatpush1.msra.mxu0 0.0
        %1328 = vmatprep.subr.mxu0 0.0
        %1329 = vmatpush1.msra.mxu0 0.0
        %1330 = vmatprep.subr.mxu0 0.0
        %1331 = vmatpush1.msra.mxu0 0.0
        %1332 = vmatprep.subr.mxu0 0.0
        %1333 = vmatpush1.msra.mxu0 0.0
        %1334 = vmatprep.subr.mxu0 0.0
        %1335 = vmatpush1.msra.mxu0 0.0
        %1336 = vmatprep.subr.mxu0 0.0
        %1337 = vmatpush1.msra.mxu0 0.0
        %1338 = vmatprep.subr.mxu0 0.0
        %1339 = vmatpush1.msra.mxu0 0.0
        %1340 = vmatprep.subr.mxu0 0.0
        %1341 = vmatpush1.msra.mxu0 0.0
        %1342 = vmatprep.subr.mxu0 0.0
        %1343 = vmatpush1.msra.mxu0 0.0
        %1344 = vmatprep.subr.mxu0 0.0
        %1345 = vmatpush1.msra.mxu0 0.0
        %1346 = vmatprep.subr.mxu0 0.0
        %1347 = vmatpush1.msra.mxu0 0.0
        %1348 = vmatprep.subr.mxu0 0.0
        %1349 = vmatpush1.msra.mxu0 0.0
        %1350 = vmatprep.subr.mxu0 0.0
        %1351 = vmatpush1.msra.mxu0 0.0
        %1352 = vmatprep.mubr.f32.mxu0 0.0
        %1353 = vmatmul.mubr.f32.gmra.mrb[0].mxu0 %v372
        %v1354 = vpop.f32.mrb[0].mxu0
        %v1355 = vadd.f32 0.0, %v1354
        %v1356 = vpop.f32.mrb[0].mxu0
        %v1357 = vadd.f32 0.0, %v1356
        %1358 = vmatprep.mubr.f32.mxu0 0.0
        %1359 = vmatmul.mubr.f32.gmra.mrb[0].mxu0 %v373
        %v1360 = vpop.f32.mrb[0].mxu0
        %v1361 = vadd.f32 0.0, %v1360
        %v1362 = vpop.f32.mrb[0].mxu0
        %v1363 = vadd.f32 0.0, %v1362
        %1364 = vmatprep.mubr.f32.mxu0 0.0
        %1365 = vmatmul.mubr.f32.gmra.mrb[0].mxu0 %v374
        %v1366 = vpop.f32.mrb[0].mxu0
        %v1367 = vadd.f32 0.0, %v1366
        %v1368 = vpop.f32.mrb[0].mxu0
        %v1369 = vadd.f32 0.0, %v1368
        %1370 = vmatprep.mubr.f32.mxu0 0.0
        %1371 = vmatmul.mubr.f32.gmra.mrb[0].mxu0 %v375
        %v1372 = vpop.f32.mrb[0].mxu0
        %v1373 = vadd.f32 0.0, %v1372
        %v1374 = vpop.f32.mrb[0].mxu0
        %v1375 = vadd.f32 0.0, %v1374
        %1376 = vmatprep.mubr.f32.mxu0 0.0
        %1377 = vmatmul.mubr.f32.gmra.mrb[0].mxu0 %v376
        %v1378 = vpop.f32.mrb[0].mxu0
        %v1379 = vadd.f32 0.0, %v1378
        %v1380 = vpop.f32.mrb[0].mxu0
        %v1381 = vadd.f32 0.0, %v1380
        %1382 = vmatprep.mubr.f32.mxu0 0.0
        %1383 = vmatmul.mubr.f32.gmra.mrb[0].mxu0 %v377
        %v1384 = vpop.f32.mrb[0].mxu0
        %v1385 = vadd.f32 0.0, %v1384
        %v1386 = vpop.f32.mrb[0].mxu0
        %v1387 = vadd.f32 0.0, %v1386
        %1388 = vmatprep.mubr.f32.mxu0 0.0
        %1389 = vmatmul.mubr.f32.gmra.mrb[0].mxu0 %v378
        %v1390 = vpop.f32.mrb[0].mxu0
        %v1391 = vadd.f32 0.0, %v1390
        %v1392 = vpop.f32.mrb[0].mxu0
        %v1393 = vadd.f32 0.0, %v1392
        %1394 = vmatprep.mubr.f32.mxu0 0.0
        %1395 = vmatmul.mubr.f32.gmra.mrb[0].mxu0 %v379
        %v1396 = vpop.f32.mrb[0].mxu0
        %v1397 = vadd.f32 0.0, %v1396
        %v1398 = vpop.f32.mrb[0].mxu0
        %v1399 = vadd.f32 0.0, %v1398
        %1400 = vmatprep.mubr.f32.mxu0 0.0
        %1401 = vmatmul.mubr.f32.gmra.mrb[0].mxu0 %v380
        %v1402 = vpop.f32.mrb[0].mxu0
        %v1403 = vadd.f32 0.0, %v1402
        %v1404 = vpop.f32.mrb[0].mxu0
        %v1405 = vadd.f32 0.0, %v1404
        %1406 = vmatprep.mubr.f32.mxu0 0.0
        %1407 = vmatmul.mubr.f32.gmra.mrb[0].mxu0 %v381
        %v1408 = vpop.f32.mrb[0].mxu0
        %v1409 = vadd.f32 0.0, %v1408
        %v1410 = vpop.f32.mrb[0].mxu0
        %v1411 = vadd.f32 0.0, %v1410
        %1412 = vmatprep.mubr.f32.mxu0 0.0
        %1413 = vmatmul.mubr.f32.gmra.mrb[0].mxu0 %v382
        %v1414 = vpop.f32.mrb[0].mxu0
        %v1415 = vadd.f32 0.0, %v1414
        %v1416 = vpop.f32.mrb[0].mxu0
        %v1417 = vadd.f32 0.0, %v1416
        %1418 = vmatprep.mubr.f32.mxu0 0.0
        %1419 = vmatmul.mubr.f32.gmra.mrb[0].mxu0 %v383
        %v1420 = vpop.f32.mrb[0].mxu0
        %v1421 = vadd.f32 0.0, %v1420
        %v1422 = vpop.f32.mrb[0].mxu0
        %v1423 = vadd.f32 0.0, %v1422
        %1424 = vmatprep.mubr.f32.mxu0 0.0
        %1425 = vmatmul.mubr.f32.gmra.mrb[0].mxu0 %v384
        %v1426 = vpop.f32.mrb[0].mxu0
        %v1427 = vadd.f32 0.0, %v1426
        %v1428 = vpop.f32.mrb[0].mxu0
        %v1429 = vadd.f32 0.0, %v1428
        %1430 = vmatprep.mubr.f32.mxu0 0.0
        %1431 = vmatmul.mubr.f32.gmra.mrb[0].mxu0 %v385
        %v1432 = vpop.f32.mrb[0].mxu0
        %v1433 = vadd.f32 0.0, %v1432
        %v1434 = vpop.f32.mrb[0].mxu0
        %v1435 = vadd.f32 0.0, %v1434
        %1436 = vmatprep.mubr.f32.mxu0 0.0
        %1437 = vmatmul.mubr.f32.gmra.mrb[0].mxu0 %v386
        %v1438 = vpop.f32.mrb[0].mxu0
        %v1439 = vadd.f32 0.0, %v1438
        %v1440 = vpop.f32.mrb[0].mxu0
        %v1441 = vadd.f32 0.0, %v1440
        %1442 = vmatprep.mubr.f32.mxu0 0.0
        %1443 = vmatmul.mubr.f32.gmra.mrb[0].mxu0 %v387
        %v1444 = vpop.f32.mrb[0].mxu0
        %v1445 = vadd.f32 0.0, %v1444
        %v1446 = vpop.f32.mrb[0].mxu0
        %v1447 = vadd.f32 0.0, %v1446
        %1448 = vdwg.mxu0
        %1449 = vmatprep.subr.mxu0 %v1163
        %1450 = vmatpush1.msra.mxu0 %v1162
        %1451 = vmatprep.subr.mxu0 %v1171
        %1452 = vmatpush1.msra.mxu0 %v1170
        %1453 = vmatprep.subr.mxu0 %v1179
        %1454 = vmatpush1.msra.mxu0 %v1178
        %1455 = vmatprep.subr.mxu0 %v1187
        %1456 = vmatpush1.msra.mxu0 %v1186
        %1457 = vmatprep.subr.mxu0 %v1195
        %1458 = vmatpush1.msra.mxu0 %v1194
        %1459 = vmatprep.subr.mxu0 %v1203
        %1460 = vmatpush1.msra.mxu0 %v1202
        %1461 = vmatprep.subr.mxu0 %v1211
        %1462 = vmatpush1.msra.mxu0 %v1210
        %1463 = vmatprep.subr.mxu0 %v1219
        %1464 = vmatpush1.msra.mxu0 %v1218
        %1465 = vmatprep.subr.mxu0 %v1227
        %1466 = vmatpush1.msra.mxu0 %v1226
        %1467 = vmatprep.subr.mxu0 %v1235
        %1468 = vmatpush1.msra.mxu0 %v1234
        %1469 = vmatprep.subr.mxu0 %v1243
        %1470 = vmatpush1.msra.mxu0 %v1242
        %1471 = vmatprep.subr.mxu0 %v1251
        %1472 = vmatpush1.msra.mxu0 %v1250
        %1473 = vmatprep.subr.mxu0 %v1259
        %1474 = vmatpush1.msra.mxu0 %v1258
        %1475 = vmatprep.subr.mxu0 %v1267
        %1476 = vmatpush1.msra.mxu0 %v1266
        %1477 = vmatprep.subr.mxu0 %v1275
        %1478 = vmatpush1.msra.mxu0 %v1274
        %1479 = vmatprep.subr.mxu0 %v1283
        %1480 = vmatpush1.msra.mxu0 %v1282
        %1481 = vmatprep.subr.mxu0 0.0
        %1482 = vmatpush1.msra.mxu0 0.0
        %1483 = vmatprep.subr.mxu0 0.0
        %1484 = vmatpush1.msra.mxu0 0.0
        %1485 = vmatprep.subr.mxu0 0.0
        %1486 = vmatpush1.msra.mxu0 0.0
        %1487 = vmatprep.subr.mxu0 0.0
        %1488 = vmatpush1.msra.mxu0 0.0
        %1489 = vmatprep.subr.mxu0 0.0
        %1490 = vmatpush1.msra.mxu0 0.0
        %1491 = vmatprep.subr.mxu0 0.0
        %1492 = vmatpush1.msra.mxu0 0.0
        %1493 = vmatprep.subr.mxu0 0.0
        %1494 = vmatpush1.msra.mxu0 0.0
        %1495 = vmatprep.subr.mxu0 0.0
        %1496 = vmatpush1.msra.mxu0 0.0
        %1497 = vmatprep.subr.mxu0 0.0
        %1498 = vmatpush1.msra.mxu0 0.0
        %1499 = vmatprep.subr.mxu0 0.0
        %1500 = vmatpush1.msra.mxu0 0.0
        %1501 = vmatprep.subr.mxu0 0.0
        %1502 = vmatpush1.msra.mxu0 0.0
        %1503 = vmatprep.subr.mxu0 0.0
        %1504 = vmatpush1.msra.mxu0 0.0
        %1505 = vmatprep.subr.mxu0 0.0
        %1506 = vmatpush1.msra.mxu0 0.0
        %1507 = vmatprep.subr.mxu0 0.0
        %1508 = vmatpush1.msra.mxu0 0.0
        %1509 = vmatprep.subr.mxu0 0.0
        %1510 = vmatpush1.msra.mxu0 0.0
        %1511 = vmatprep.subr.mxu0 0.0
        %1512 = vmatpush1.msra.mxu0 0.0
        %1513 = vmatprep.mubr.f32.mxu0 0.0
        %1514 = vmatmul.mubr.f32.gmra.mrb[0].mxu0 %v372
        %v1515 = vpop.f32.mrb[0].mxu0
        %v1516 = vadd.f32 0.0, %v1515
        %v1517 = vpop.f32.mrb[0].mxu0
        %v1518 = vadd.f32 0.0, %v1517
        %1519 = vmatprep.mubr.f32.mxu0 0.0
        %1520 = vmatmul.mubr.f32.gmra.mrb[0].mxu0 %v373
        %v1521 = vpop.f32.mrb[0].mxu0
        %v1522 = vadd.f32 0.0, %v1521
        %v1523 = vpop.f32.mrb[0].mxu0
        %v1524 = vadd.f32 0.0, %v1523
        %1525 = vmatprep.mubr.f32.mxu0 0.0
        %1526 = vmatmul.mubr.f32.gmra.mrb[0].mxu0 %v374
        %v1527 = vpop.f32.mrb[0].mxu0
        %v1528 = vadd.f32 0.0, %v1527
        %v1529 = vpop.f32.mrb[0].mxu0
        %v1530 = vadd.f32 0.0, %v1529
        %1531 = vmatprep.mubr.f32.mxu0 0.0
        %1532 = vmatmul.mubr.f32.gmra.mrb[0].mxu0 %v375
        %v1533 = vpop.f32.mrb[0].mxu0
        %v1534 = vadd.f32 0.0, %v1533
        %v1535 = vpop.f32.mrb[0].mxu0
        %v1536 = vadd.f32 0.0, %v1535
        %1537 = vmatprep.mubr.f32.mxu0 0.0
        %1538 = vmatmul.mubr.f32.gmra.mrb[0].mxu0 %v376
        %v1539 = vpop.f32.mrb[0].mxu0
        %v1540 = vadd.f32 0.0, %v1539
        %v1541 = vpop.f32.mrb[0].mxu0
        %v1542 = vadd.f32 0.0, %v1541
        %1543 = vmatprep.mubr.f32.mxu0 0.0
        %1544 = vmatmul.mubr.f32.gmra.mrb[0].mxu0 %v377
        %v1545 = vpop.f32.mrb[0].mxu0
        %v1546 = vadd.f32 0.0, %v1545
        %v1547 = vpop.f32.mrb[0].mxu0
        %v1548 = vadd.f32 0.0, %v1547
        %1549 = vmatprep.mubr.f32.mxu0 0.0
        %1550 = vmatmul.mubr.f32.gmra.mrb[0].mxu0 %v378
        %v1551 = vpop.f32.mrb[0].mxu0
        %v1552 = vadd.f32 0.0, %v1551
        %v1553 = vpop.f32.mrb[0].mxu0
        %v1554 = vadd.f32 0.0, %v1553
        %1555 = vmatprep.mubr.f32.mxu0 0.0
        %1556 = vmatmul.mubr.f32.gmra.mrb[0].mxu0 %v379
        %v1557 = vpop.f32.mrb[0].mxu0
        %v1558 = vadd.f32 0.0, %v1557
        %v1559 = vpop.f32.mrb[0].mxu0
        %v1560 = vadd.f32 0.0, %v1559
        %1561 = vmatprep.mubr.f32.mxu0 0.0
        %1562 = vmatmul.mubr.f32.gmra.mrb[0].mxu0 %v380
        %v1563 = vpop.f32.mrb[0].mxu0
        %v1564 = vadd.f32 0.0, %v1563
        %v1565 = vpop.f32.mrb[0].mxu0
        %v1566 = vadd.f32 0.0, %v1565
        %1567 = vmatprep.mubr.f32.mxu0 0.0
        %1568 = vmatmul.mubr.f32.gmra.mrb[0].mxu0 %v381
        %v1569 = vpop.f32.mrb[0].mxu0
        %v1570 = vadd.f32 0.0, %v1569
        %v1571 = vpop.f32.mrb[0].mxu0
        %v1572 = vadd.f32 0.0, %v1571
        %1573 = vmatprep.mubr.f32.mxu0 0.0
        %1574 = vmatmul.mubr.f32.gmra.mrb[0].mxu0 %v382
        %v1575 = vpop.f32.mrb[0].mxu0
        %v1576 = vadd.f32 0.0, %v1575
        %v1577 = vpop.f32.mrb[0].mxu0
        %v1578 = vadd.f32 0.0, %v1577
        %1579 = vmatprep.mubr.f32.mxu0 0.0
        %1580 = vmatmul.mubr.f32.gmra.mrb[0].mxu0 %v383
        %v1581 = vpop.f32.mrb[0].mxu0
        %v1582 = vadd.f32 0.0, %v1581
        %v1583 = vpop.f32.mrb[0].mxu0
        %v1584 = vadd.f32 0.0, %v1583
        %1585 = vmatprep.mubr.f32.mxu0 0.0
        %1586 = vmatmul.mubr.f32.gmra.mrb[0].mxu0 %v384
        %v1587 = vpop.f32.mrb[0].mxu0
        %v1588 = vadd.f32 0.0, %v1587
        %v1589 = vpop.f32.mrb[0].mxu0
        %v1590 = vadd.f32 0.0, %v1589
        %1591 = vmatprep.mubr.f32.mxu0 0.0
        %1592 = vmatmul.mubr.f32.gmra.mrb[0].mxu0 %v385
        %v1593 = vpop.f32.mrb[0].mxu0
        %v1594 = vadd.f32 0.0, %v1593
        %v1595 = vpop.f32.mrb[0].mxu0
        %v1596 = vadd.f32 0.0, %v1595
        %1597 = vmatprep.mubr.f32.mxu0 0.0
        %1598 = vmatmul.mubr.f32.gmra.mrb[0].mxu0 %v386
        %v1599 = vpop.f32.mrb[0].mxu0
        %v1600 = vadd.f32 0.0, %v1599
        %v1601 = vpop.f32.mrb[0].mxu0
        %v1602 = vadd.f32 0.0, %v1601
        %1603 = vmatprep.mubr.f32.mxu0 0.0
        %1604 = vmatmul.mubr.f32.gmra.mrb[0].mxu0 %v387
        %v1605 = vpop.f32.mrb[0].mxu0
        %v1606 = vadd.f32 0.0, %v1605
        %v1607 = vpop.f32.mrb[0].mxu0
        %v1608 = vadd.f32 0.0, %v1607
        %1609 = vdwg.mxu0
        %1610 = vmatprep.subr.mxu0 %v1165
        %1611 = vmatpush1.msra.mxu0 %v1164
        %1612 = vmatprep.subr.mxu0 %v1173
        %1613 = vmatpush1.msra.mxu0 %v1172
        %1614 = vmatprep.subr.mxu0 %v1181
        %1615 = vmatpush1.msra.mxu0 %v1180
        %1616 = vmatprep.subr.mxu0 %v1189
        %1617 = vmatpush1.msra.mxu0 %v1188
        %1618 = vmatprep.subr.mxu0 %v1197
        %1619 = vmatpush1.msra.mxu0 %v1196
        %1620 = vmatprep.subr.mxu0 %v1205
        %1621 = vmatpush1.msra.mxu0 %v1204
        %1622 = vmatprep.subr.mxu0 %v1213
        %1623 = vmatpush1.msra.mxu0 %v1212
        %1624 = vmatprep.subr.mxu0 %v1221
        %1625 = vmatpush1.msra.mxu0 %v1220
        %1626 = vmatprep.subr.mxu0 %v1229
        %1627 = vmatpush1.msra.mxu0 %v1228
        %1628 = vmatprep.subr.mxu0 %v1237
        %1629 = vmatpush1.msra.mxu0 %v1236
        %1630 = vmatprep.subr.mxu0 %v1245
        %1631 = vmatpush1.msra.mxu0 %v1244
        %1632 = vmatprep.subr.mxu0 %v1253
        %1633 = vmatpush1.msra.mxu0 %v1252
        %1634 = vmatprep.subr.mxu0 %v1261
        %1635 = vmatpush1.msra.mxu0 %v1260
        %1636 = vmatprep.subr.mxu0 %v1269
        %1637 = vmatpush1.msra.mxu0 %v1268
        %1638 = vmatprep.subr.mxu0 %v1277
        %1639 = vmatpush1.msra.mxu0 %v1276
        %1640 = vmatprep.subr.mxu0 %v1285
        %1641 = vmatpush1.msra.mxu0 %v1284
        %1642 = vmatprep.subr.mxu0 0.0
        %1643 = vmatpush1.msra.mxu0 0.0
        %1644 = vmatprep.subr.mxu0 0.0
        %1645 = vmatpush1.msra.mxu0 0.0
        %1646 = vmatprep.subr.mxu0 0.0
        %1647 = vmatpush1.msra.mxu0 0.0
        %1648 = vmatprep.subr.mxu0 0.0
        %1649 = vmatpush1.msra.mxu0 0.0
        %1650 = vmatprep.subr.mxu0 0.0
        %1651 = vmatpush1.msra.mxu0 0.0
        %1652 = vmatprep.subr.mxu0 0.0
        %1653 = vmatpush1.msra.mxu0 0.0
        %1654 = vmatprep.subr.mxu0 0.0
        %1655 = vmatpush1.msra.mxu0 0.0
        %1656 = vmatprep.subr.mxu0 0.0
        %1657 = vmatpush1.msra.mxu0 0.0
        %1658 = vmatprep.subr.mxu0 0.0
        %1659 = vmatpush1.msra.mxu0 0.0
        %1660 = vmatprep.subr.mxu0 0.0
        %1661 = vmatpush1.msra.mxu0 0.0
        %1662 = vmatprep.subr.mxu0 0.0
        %1663 = vmatpush1.msra.mxu0 0.0
        %1664 = vmatprep.subr.mxu0 0.0
        %1665 = vmatpush1.msra.mxu0 0.0
        %1666 = vmatprep.subr.mxu0 0.0
        %1667 = vmatpush1.msra.mxu0 0.0
        %1668 = vmatprep.subr.mxu0 0.0
        %1669 = vmatpush1.msra.mxu0 0.0
        %1670 = vmatprep.subr.mxu0 0.0
        %1671 = vmatpush1.msra.mxu0 0.0
        %1672 = vmatprep.subr.mxu0 0.0
        %1673 = vmatpush1.msra.mxu0 0.0
        %1674 = vmatprep.mubr.f32.mxu0 0.0
        %1675 = vmatmul.mubr.f32.gmra.mrb[0].mxu0 %v372
        %v1676 = vpop.f32.mrb[0].mxu0
        %v1677 = vadd.f32 0.0, %v1676
        %v1678 = vpop.f32.mrb[0].mxu0
        %v1679 = vadd.f32 0.0, %v1678
        %1680 = vmatprep.mubr.f32.mxu0 0.0
        %1681 = vmatmul.mubr.f32.gmra.mrb[0].mxu0 %v373
        %v1682 = vpop.f32.mrb[0].mxu0
        %v1683 = vadd.f32 0.0, %v1682
        %v1684 = vpop.f32.mrb[0].mxu0
        %v1685 = vadd.f32 0.0, %v1684
        %1686 = vmatprep.mubr.f32.mxu0 0.0
        %1687 = vmatmul.mubr.f32.gmra.mrb[0].mxu0 %v374
        %v1688 = vpop.f32.mrb[0].mxu0
        %v1689 = vadd.f32 0.0, %v1688
        %v1690 = vpop.f32.mrb[0].mxu0
        %v1691 = vadd.f32 0.0, %v1690
        %1692 = vmatprep.mubr.f32.mxu0 0.0
        %1693 = vmatmul.mubr.f32.gmra.mrb[0].mxu0 %v375
        %v1694 = vpop.f32.mrb[0].mxu0
        %v1695 = vadd.f32 0.0, %v1694
        %v1696 = vpop.f32.mrb[0].mxu0
        %v1697 = vadd.f32 0.0, %v1696
        %1698 = vmatprep.mubr.f32.mxu0 0.0
        %1699 = vmatmul.mubr.f32.gmra.mrb[0].mxu0 %v376
        %v1700 = vpop.f32.mrb[0].mxu0
        %v1701 = vadd.f32 0.0, %v1700
        %v1702 = vpop.f32.mrb[0].mxu0
        %v1703 = vadd.f32 0.0, %v1702
        %1704 = vmatprep.mubr.f32.mxu0 0.0
        %1705 = vmatmul.mubr.f32.gmra.mrb[0].mxu0 %v377
        %v1706 = vpop.f32.mrb[0].mxu0
        %v1707 = vadd.f32 0.0, %v1706
        %v1708 = vpop.f32.mrb[0].mxu0
        %v1709 = vadd.f32 0.0, %v1708
        %1710 = vmatprep.mubr.f32.mxu0 0.0
        %1711 = vmatmul.mubr.f32.gmra.mrb[0].mxu0 %v378
        %v1712 = vpop.f32.mrb[0].mxu0
        %v1713 = vadd.f32 0.0, %v1712
        %v1714 = vpop.f32.mrb[0].mxu0
        %v1715 = vadd.f32 0.0, %v1714
        %1716 = vmatprep.mubr.f32.mxu0 0.0
        %1717 = vmatmul.mubr.f32.gmra.mrb[0].mxu0 %v379
        %v1718 = vpop.f32.mrb[0].mxu0
        %v1719 = vadd.f32 0.0, %v1718
        %v1720 = vpop.f32.mrb[0].mxu0
        %v1721 = vadd.f32 0.0, %v1720
        %1722 = vmatprep.mubr.f32.mxu0 0.0
        %1723 = vmatmul.mubr.f32.gmra.mrb[0].mxu0 %v380
        %v1724 = vpop.f32.mrb[0].mxu0
        %v1725 = vadd.f32 0.0, %v1724
        %v1726 = vpop.f32.mrb[0].mxu0
        %v1727 = vadd.f32 0.0, %v1726
        %1728 = vmatprep.mubr.f32.mxu0 0.0
        %1729 = vmatmul.mubr.f32.gmra.mrb[0].mxu0 %v381
        %v1730 = vpop.f32.mrb[0].mxu0
        %v1731 = vadd.f32 0.0, %v1730
        %v1732 = vpop.f32.mrb[0].mxu0
        %v1733 = vadd.f32 0.0, %v1732
        %1734 = vmatprep.mubr.f32.mxu0 0.0
        %1735 = vmatmul.mubr.f32.gmra.mrb[0].mxu0 %v382
        %v1736 = vpop.f32.mrb[0].mxu0
        %v1737 = vadd.f32 0.0, %v1736
        %v1738 = vpop.f32.mrb[0].mxu0
        %v1739 = vadd.f32 0.0, %v1738
        %1740 = vmatprep.mubr.f32.mxu0 0.0
        %1741 = vmatmul.mubr.f32.gmra.mrb[0].mxu0 %v383
        %v1742 = vpop.f32.mrb[0].mxu0
        %v1743 = vadd.f32 0.0, %v1742
        %v1744 = vpop.f32.mrb[0].mxu0
        %v1745 = vadd.f32 0.0, %v1744
        %1746 = vmatprep.mubr.f32.mxu0 0.0
        %1747 = vmatmul.mubr.f32.gmra.mrb[0].mxu0 %v384
        %v1748 = vpop.f32.mrb[0].mxu0
        %v1749 = vadd.f32 0.0, %v1748
        %v1750 = vpop.f32.mrb[0].mxu0
        %v1751 = vadd.f32 0.0, %v1750
        %1752 = vmatprep.mubr.f32.mxu0 0.0
        %1753 = vmatmul.mubr.f32.gmra.mrb[0].mxu0 %v385
        %v1754 = vpop.f32.mrb[0].mxu0
        %v1755 = vadd.f32 0.0, %v1754
        %v1756 = vpop.f32.mrb[0].mxu0
        %v1757 = vadd.f32 0.0, %v1756
        %1758 = vmatprep.mubr.f32.mxu0 0.0
        %1759 = vmatmul.mubr.f32.gmra.mrb[0].mxu0 %v386
        %v1760 = vpop.f32.mrb[0].mxu0
        %v1761 = vadd.f32 0.0, %v1760
        %v1762 = vpop.f32.mrb[0].mxu0
        %v1763 = vadd.f32 0.0, %v1762
        %1764 = vmatprep.mubr.f32.mxu0 0.0
        %1765 = vmatmul.mubr.f32.gmra.mrb[0].mxu0 %v387
        %v1766 = vpop.f32.mrb[0].mxu0
        %v1767 = vadd.f32 0.0, %v1766
        %v1768 = vpop.f32.mrb[0].mxu0
        %v1769 = vadd.f32 0.0, %v1768
        %1770 = vdwg.mxu0
        %1771 = vmatprep.subr.mxu0 %v1167
        %1772 = vmatpush1.msra.mxu0 %v1166
        %1773 = vmatprep.subr.mxu0 %v1175
        %1774 = vmatpush1.msra.mxu0 %v1174
        %1775 = vmatprep.subr.mxu0 %v1183
        %1776 = vmatpush1.msra.mxu0 %v1182
        %1777 = vmatprep.subr.mxu0 %v1191
        %1778 = vmatpush1.msra.mxu0 %v1190
        %1779 = vmatprep.subr.mxu0 %v1199
        %1780 = vmatpush1.msra.mxu0 %v1198
        %1781 = vmatprep.subr.mxu0 %v1207
        %1782 = vmatpush1.msra.mxu0 %v1206
        %1783 = vmatprep.subr.mxu0 %v1215
        %1784 = vmatpush1.msra.mxu0 %v1214
        %1785 = vmatprep.subr.mxu0 %v1223
        %1786 = vmatpush1.msra.mxu0 %v1222
        %1787 = vmatprep.subr.mxu0 %v1231
        %1788 = vmatpush1.msra.mxu0 %v1230
        %1789 = vmatprep.subr.mxu0 %v1239
        %1790 = vmatpush1.msra.mxu0 %v1238
        %1791 = vmatprep.subr.mxu0 %v1247
        %1792 = vmatpush1.msra.mxu0 %v1246
        %1793 = vmatprep.subr.mxu0 %v1255
        %1794 = vmatpush1.msra.mxu0 %v1254
        %1795 = vmatprep.subr.mxu0 %v1263
        %1796 = vmatpush1.msra.mxu0 %v1262
        %1797 = vmatprep.subr.mxu0 %v1271
        %1798 = vmatpush1.msra.mxu0 %v1270
        %1799 = vmatprep.subr.mxu0 %v1279
        %1800 = vmatpush1.msra.mxu0 %v1278
        %1801 = vmatprep.subr.mxu0 %v1287
        %1802 = vmatpush1.msra.mxu0 %v1286
        %1803 = vmatprep.subr.mxu0 0.0
        %1804 = vmatpush1.msra.mxu0 0.0
        %1805 = vmatprep.subr.mxu0 0.0
        %1806 = vmatpush1.msra.mxu0 0.0
        %1807 = vmatprep.subr.mxu0 0.0
        %1808 = vmatpush1.msra.mxu0 0.0
        %1809 = vmatprep.subr.mxu0 0.0
        %1810 = vmatpush1.msra.mxu0 0.0
        %1811 = vmatprep.subr.mxu0 0.0
        %1812 = vmatpush1.msra.mxu0 0.0
        %1813 = vmatprep.subr.mxu0 0.0
        %1814 = vmatpush1.msra.mxu0 0.0
        %1815 = vmatprep.subr.mxu0 0.0
        %1816 = vmatpush1.msra.mxu0 0.0
        %1817 = vmatprep.subr.mxu0 0.0
        %1818 = vmatpush1.msra.mxu0 0.0
        %1819 = vmatprep.subr.mxu0 0.0
        %1820 = vmatpush1.msra.mxu0 0.0
        %1821 = vmatprep.subr.mxu0 0.0
        %1822 = vmatpush1.msra.mxu0 0.0
        %1823 = vmatprep.subr.mxu0 0.0
        %1824 = vmatpush1.msra.mxu0 0.0
        %1825 = vmatprep.subr.mxu0 0.0
        %1826 = vmatpush1.msra.mxu0 0.0
        %1827 = vmatprep.subr.mxu0 0.0
        %1828 = vmatpush1.msra.mxu0 0.0
        %1829 = vmatprep.subr.mxu0 0.0
        %1830 = vmatpush1.msra.mxu0 0.0
        %1831 = vmatprep.subr.mxu0 0.0
        %1832 = vmatpush1.msra.mxu0 0.0
        %1833 = vmatprep.subr.mxu0 0.0
        %1834 = vmatpush1.msra.mxu0 0.0
        %1835 = vmatprep.mubr.f32.mxu0 0.0
        %1836 = vmatmul.mubr.f32.gmra.mrb[0].mxu0 %v372
        %v1837 = vpop.f32.mrb[0].mxu0
        %v1838 = vadd.f32 0.0, %v1837
        %v1839 = vpop.f32.mrb[0].mxu0
        %v1840 = vadd.f32 0.0, %v1839
        %1841 = vmatprep.mubr.f32.mxu0 0.0
        %1842 = vmatmul.mubr.f32.gmra.mrb[0].mxu0 %v373
        %v1843 = vpop.f32.mrb[0].mxu0
        %v1844 = vadd.f32 0.0, %v1843
        %v1845 = vpop.f32.mrb[0].mxu0
        %v1846 = vadd.f32 0.0, %v1845
        %1847 = vmatprep.mubr.f32.mxu0 0.0
        %1848 = vmatmul.mubr.f32.gmra.mrb[0].mxu0 %v374
        %v1849 = vpop.f32.mrb[0].mxu0
        %v1850 = vadd.f32 0.0, %v1849
        %v1851 = vpop.f32.mrb[0].mxu0
        %v1852 = vadd.f32 0.0, %v1851
        %1853 = vmatprep.mubr.f32.mxu0 0.0
        %1854 = vmatmul.mubr.f32.gmra.mrb[0].mxu0 %v375
        %v1855 = vpop.f32.mrb[0].mxu0
        %v1856 = vadd.f32 0.0, %v1855
        %v1857 = vpop.f32.mrb[0].mxu0
        %v1858 = vadd.f32 0.0, %v1857
        %1859 = vmatprep.mubr.f32.mxu0 0.0
        %1860 = vmatmul.mubr.f32.gmra.mrb[0].mxu0 %v376
        %v1861 = vpop.f32.mrb[0].mxu0
        %v1862 = vadd.f32 0.0, %v1861
        %v1863 = vpop.f32.mrb[0].mxu0
        %v1864 = vadd.f32 0.0, %v1863
        %1865 = vmatprep.mubr.f32.mxu0 0.0
        %1866 = vmatmul.mubr.f32.gmra.mrb[0].mxu0 %v377
        %v1867 = vpop.f32.mrb[0].mxu0
        %v1868 = vadd.f32 0.0, %v1867
        %v1869 = vpop.f32.mrb[0].mxu0
        %v1870 = vadd.f32 0.0, %v1869
        %1871 = vmatprep.mubr.f32.mxu0 0.0
        %1872 = vmatmul.mubr.f32.gmra.mrb[0].mxu0 %v378
        %v1873 = vpop.f32.mrb[0].mxu0
        %v1874 = vadd.f32 0.0, %v1873
        %v1875 = vpop.f32.mrb[0].mxu0
        %v1876 = vadd.f32 0.0, %v1875
        %1877 = vmatprep.mubr.f32.mxu0 0.0
        %1878 = vmatmul.mubr.f32.gmra.mrb[0].mxu0 %v379
        %v1879 = vpop.f32.mrb[0].mxu0
        %v1880 = vadd.f32 0.0, %v1879
        %v1881 = vpop.f32.mrb[0].mxu0
        %v1882 = vadd.f32 0.0, %v1881
        %1883 = vmatprep.mubr.f32.mxu0 0.0
        %1884 = vmatmul.mubr.f32.gmra.mrb[0].mxu0 %v380
        %v1885 = vpop.f32.mrb[0].mxu0
        %v1886 = vadd.f32 0.0, %v1885
        %v1887 = vpop.f32.mrb[0].mxu0
        %v1888 = vadd.f32 0.0, %v1887
        %1889 = vmatprep.mubr.f32.mxu0 0.0
        %1890 = vmatmul.mubr.f32.gmra.mrb[0].mxu0 %v381
        %v1891 = vpop.f32.mrb[0].mxu0
        %v1892 = vadd.f32 0.0, %v1891
        %v1893 = vpop.f32.mrb[0].mxu0
        %v1894 = vadd.f32 0.0, %v1893
        %1895 = vmatprep.mubr.f32.mxu0 0.0
        %1896 = vmatmul.mubr.f32.gmra.mrb[0].mxu0 %v382
        %v1897 = vpop.f32.mrb[0].mxu0
        %v1898 = vadd.f32 0.0, %v1897
        %v1899 = vpop.f32.mrb[0].mxu0
        %v1900 = vadd.f32 0.0, %v1899
        %1901 = vmatprep.mubr.f32.mxu0 0.0
        %1902 = vmatmul.mubr.f32.gmra.mrb[0].mxu0 %v383
        %v1903 = vpop.f32.mrb[0].mxu0
        %v1904 = vadd.f32 0.0, %v1903
        %v1905 = vpop.f32.mrb[0].mxu0
        %v1906 = vadd.f32 0.0, %v1905
        %1907 = vmatprep.mubr.f32.mxu0 0.0
        %1908 = vmatmul.mubr.f32.gmra.mrb[0].mxu0 %v384
        %v1909 = vpop.f32.mrb[0].mxu0
        %v1910 = vadd.f32 0.0, %v1909
        %v1911 = vpop.f32.mrb[0].mxu0
        %v1912 = vadd.f32 0.0, %v1911
        %1913 = vmatprep.mubr.f32.mxu0 0.0
        %1914 = vmatmul.mubr.f32.gmra.mrb[0].mxu0 %v385
        %v1915 = vpop.f32.mrb[0].mxu0
        %v1916 = vadd.f32 0.0, %v1915
        %v1917 = vpop.f32.mrb[0].mxu0
        %v1918 = vadd.f32 0.0, %v1917
        %1919 = vmatprep.mubr.f32.mxu0 0.0
        %1920 = vmatmul.mubr.f32.gmra.mrb[0].mxu0 %v386
        %v1921 = vpop.f32.mrb[0].mxu0
        %v1922 = vadd.f32 0.0, %v1921
        %v1923 = vpop.f32.mrb[0].mxu0
        %v1924 = vadd.f32 0.0, %v1923
        %1925 = vmatprep.mubr.f32.mxu0 0.0
        %1926 = vmatmul.mubr.f32.gmra.mrb[0].mxu0 %v387
        %v1927 = vpop.f32.mrb[0].mxu0
        %v1928 = vadd.f32 0.0, %v1927
        %v1929 = vpop.f32.mrb[0].mxu0
        %v1930 = vadd.f32 0.0, %v1929
        %1931 = vdwg.mxu0
        %v1932 = vld [vmem:[#allocation8] sm:$0xff]
        %v1933 = vld [vmem:[#allocation8 + $0x8] sm:$0xff]
        %v1934 = vld [vmem:[#allocation8 + $0x10] sm:$0xff]
        %v1935 = vld [vmem:[#allocation8 + $0x18] sm:$0xff]
        %v1936 = vld [vmem:[#allocation8 + $0x20] sm:$0xff]
        %v1937 = vld [vmem:[#allocation8 + $0x28] sm:$0xff]
        %v1938 = vld [vmem:[#allocation8 + $0x30] sm:$0xff]
        %v1939 = vld [vmem:[#allocation8 + $0x38] sm:$0xff]
        %v1940 = vld [vmem:[#allocation8 + $0x40] sm:$0xff]
        %v1941 = vld [vmem:[#allocation8 + $0x48] sm:$0xff]
        %v1942 = vld [vmem:[#allocation8 + $0x50] sm:$0xff]
        %v1943 = vld [vmem:[#allocation8 + $0x58] sm:$0xff]
        %v1944 = vld [vmem:[#allocation8 + $0x60] sm:$0xff]
        %v1945 = vld [vmem:[#allocation8 + $0x68] sm:$0xff]
        %v1946 = vld [vmem:[#allocation8 + $0x70] sm:$0xff]
        %v1947 = vld [vmem:[#allocation8 + $0x78] sm:$0xff]
        %v1948 = vld [vmem:[#allocation8 + $0x80] sm:$0xff]
        %v1949 = vld [vmem:[#allocation8 + $0x88] sm:$0xff]
        %v1950 = vld [vmem:[#allocation8 + $0x90] sm:$0xff]
        %v1951 = vld [vmem:[#allocation8 + $0x98] sm:$0xff]
        %v1952 = vld [vmem:[#allocation8 + $0xa0] sm:$0xff]
        %v1953 = vld [vmem:[#allocation8 + $0xa8] sm:$0xff]
        %v1954 = vld [vmem:[#allocation8 + $0xb0] sm:$0xff]
        %v1955 = vld [vmem:[#allocation8 + $0xb8] sm:$0xff]
        %v1956 = vld [vmem:[#allocation8 + $0xc0] sm:$0xff]
        %v1957 = vld [vmem:[#allocation8 + $0xc8] sm:$0xff]
        %v1958 = vld [vmem:[#allocation8 + $0xd0] sm:$0xff]
        %v1959 = vld [vmem:[#allocation8 + $0xd8] sm:$0xff]
        %v1960 = vld [vmem:[#allocation8 + $0xe0] sm:$0xff]
        %v1961 = vld [vmem:[#allocation8 + $0xe8] sm:$0xff]
        %v1962 = vld [vmem:[#allocation8 + $0xf0] sm:$0xff]
        %v1963 = vld [vmem:[#allocation8 + $0xf8] sm:$0xff]
        %v1964 = vld [vmem:[#allocation8 + $0x100] sm:$0xff]
        %v1965 = vld [vmem:[#allocation8 + $0x108] sm:$0xff]
        %v1966 = vld [vmem:[#allocation8 + $0x110] sm:$0xff]
        %v1967 = vld [vmem:[#allocation8 + $0x118] sm:$0xff]
        %v1968 = vld [vmem:[#allocation8 + $0x120] sm:$0xff]
        %v1969 = vld [vmem:[#allocation8 + $0x128] sm:$0xff]
        %v1970 = vld [vmem:[#allocation8 + $0x130] sm:$0xff]
        %v1971 = vld [vmem:[#allocation8 + $0x138] sm:$0xff]
        %v1972 = vld [vmem:[#allocation8 + $0x140] sm:$0xff]
        %v1973 = vld [vmem:[#allocation8 + $0x148] sm:$0xff]
        %v1974 = vld [vmem:[#allocation8 + $0x150] sm:$0xff]
        %v1975 = vld [vmem:[#allocation8 + $0x158] sm:$0xff]
        %v1976 = vld [vmem:[#allocation8 + $0x160] sm:$0xff]
        %v1977 = vld [vmem:[#allocation8 + $0x168] sm:$0xff]
        %v1978 = vld [vmem:[#allocation8 + $0x170] sm:$0xff]
        %v1979 = vld [vmem:[#allocation8 + $0x178] sm:$0xff]
        %v1980 = vld [vmem:[#allocation8 + $0x180] sm:$0xff]
        %v1981 = vld [vmem:[#allocation8 + $0x188] sm:$0xff]
        %v1982 = vld [vmem:[#allocation8 + $0x190] sm:$0xff]
        %v1983 = vld [vmem:[#allocation8 + $0x198] sm:$0xff]
        %v1984 = vld [vmem:[#allocation8 + $0x1a0] sm:$0xff]
        %v1985 = vld [vmem:[#allocation8 + $0x1a8] sm:$0xff]
        %v1986 = vld [vmem:[#allocation8 + $0x1b0] sm:$0xff]
        %v1987 = vld [vmem:[#allocation8 + $0x1b8] sm:$0xff]
        %v1988 = vld [vmem:[#allocation8 + $0x1c0] sm:$0xff]
        %v1989 = vld [vmem:[#allocation8 + $0x1c8] sm:$0xff]
        %v1990 = vld [vmem:[#allocation8 + $0x1d0] sm:$0xff]
        %v1991 = vld [vmem:[#allocation8 + $0x1d8] sm:$0xff]
        %v1992 = vld [vmem:[#allocation8 + $0x1e0] sm:$0xff]
        %v1993 = vld [vmem:[#allocation8 + $0x1e8] sm:$0xff]
        %v1994 = vld [vmem:[#allocation8 + $0x1f0] sm:$0xff]
        %v1995 = vld [vmem:[#allocation8 + $0x1f8] sm:$0xff]
        %v1996 = vld [vmem:[#allocation8 + $0x200] sm:$0xff]
        %v1997 = vld [vmem:[#allocation8 + $0x208] sm:$0xff]
        %v1998 = vld [vmem:[#allocation8 + $0x210] sm:$0xff]
        %v1999 = vld [vmem:[#allocation8 + $0x218] sm:$0xff]
        %v2000 = vld [vmem:[#allocation8 + $0x220] sm:$0xff]
        %v2001 = vld [vmem:[#allocation8 + $0x228] sm:$0xff]
        %v2002 = vld [vmem:[#allocation8 + $0x230] sm:$0xff]
        %v2003 = vld [vmem:[#allocation8 + $0x238] sm:$0xff]
        %v2004 = vld [vmem:[#allocation8 + $0x240] sm:$0xff]
        %v2005 = vld [vmem:[#allocation8 + $0x248] sm:$0xff]
        %v2006 = vld [vmem:[#allocation8 + $0x250] sm:$0xff]
        %v2007 = vld [vmem:[#allocation8 + $0x258] sm:$0xff]
        %v2008 = vld [vmem:[#allocation8 + $0x260] sm:$0xff]
        %v2009 = vld [vmem:[#allocation8 + $0x268] sm:$0xff]
        %v2010 = vld [vmem:[#allocation8 + $0x270] sm:$0xff]
        %v2011 = vld [vmem:[#allocation8 + $0x278] sm:$0xff]
        %v2012 = vld [vmem:[#allocation8 + $0x280] sm:$0xff]
        %v2013 = vld [vmem:[#allocation8 + $0x288] sm:$0xff]
        %v2014 = vld [vmem:[#allocation8 + $0x290] sm:$0xff]
        %v2015 = vld [vmem:[#allocation8 + $0x298] sm:$0xff]
        %v2016 = vld [vmem:[#allocation8 + $0x2a0] sm:$0xff]
        %v2017 = vld [vmem:[#allocation8 + $0x2a8] sm:$0xff]
        %v2018 = vld [vmem:[#allocation8 + $0x2b0] sm:$0xff]
        %v2019 = vld [vmem:[#allocation8 + $0x2b8] sm:$0xff]
        %v2020 = vld [vmem:[#allocation8 + $0x2c0] sm:$0xff]
        %v2021 = vld [vmem:[#allocation8 + $0x2c8] sm:$0xff]
        %v2022 = vld [vmem:[#allocation8 + $0x2d0] sm:$0xff]
        %v2023 = vld [vmem:[#allocation8 + $0x2d8] sm:$0xff]
        %v2024 = vld [vmem:[#allocation8 + $0x2e0] sm:$0xff]
        %v2025 = vld [vmem:[#allocation8 + $0x2e8] sm:$0xff]
        %v2026 = vld [vmem:[#allocation8 + $0x2f0] sm:$0xff]
        %v2027 = vld [vmem:[#allocation8 + $0x2f8] sm:$0xff]
        %v2028 = vld [vmem:[#allocation8 + $0x300] sm:$0xff]
        %v2029 = vld [vmem:[#allocation8 + $0x308] sm:$0xff]
        %v2030 = vld [vmem:[#allocation8 + $0x310] sm:$0xff]
        %v2031 = vld [vmem:[#allocation8 + $0x318] sm:$0xff]
        %v2032 = vld [vmem:[#allocation8 + $0x320] sm:$0xff]
        %v2033 = vld [vmem:[#allocation8 + $0x328] sm:$0xff]
        %v2034 = vld [vmem:[#allocation8 + $0x330] sm:$0xff]
        %v2035 = vld [vmem:[#allocation8 + $0x338] sm:$0xff]
        %v2036 = vld [vmem:[#allocation8 + $0x340] sm:$0xff]
        %v2037 = vld [vmem:[#allocation8 + $0x348] sm:$0xff]
        %v2038 = vld [vmem:[#allocation8 + $0x350] sm:$0xff]
        %v2039 = vld [vmem:[#allocation8 + $0x358] sm:$0xff]
        %v2040 = vld [vmem:[#allocation8 + $0x360] sm:$0xff]
        %v2041 = vld [vmem:[#allocation8 + $0x368] sm:$0xff]
        %v2042 = vld [vmem:[#allocation8 + $0x370] sm:$0xff]
        %v2043 = vld [vmem:[#allocation8 + $0x378] sm:$0xff]
        %v2044 = vld [vmem:[#allocation8 + $0x380] sm:$0xff]
        %v2045 = vld [vmem:[#allocation8 + $0x388] sm:$0xff]
        %v2046 = vld [vmem:[#allocation8 + $0x390] sm:$0xff]
        %v2047 = vld [vmem:[#allocation8 + $0x398] sm:$0xff]
        %v2048 = vld [vmem:[#allocation8 + $0x3a0] sm:$0xff]
        %v2049 = vld [vmem:[#allocation8 + $0x3a8] sm:$0xff]
        %v2050 = vld [vmem:[#allocation8 + $0x3b0] sm:$0xff]
        %v2051 = vld [vmem:[#allocation8 + $0x3b8] sm:$0xff]
        %v2052 = vld [vmem:[#allocation8 + $0x3c0] sm:$0xff]
        %v2053 = vld [vmem:[#allocation8 + $0x3c8] sm:$0xff]
        %v2054 = vld [vmem:[#allocation8 + $0x3d0] sm:$0xff]
        %v2055 = vld [vmem:[#allocation8 + $0x3d8] sm:$0xff]
        %v2056 = vld [vmem:[#allocation8 + $0x3e0] sm:$0xff]
        %v2057 = vld [vmem:[#allocation8 + $0x3e8] sm:$0xff]
        %v2058 = vld [vmem:[#allocation8 + $0x3f0] sm:$0xff]
        %v2059 = vld [vmem:[#allocation8 + $0x3f8] sm:$0xff]
        %2060 = vmatprep.subr.mxu0 %v1933
        %2061 = vmatpush1.msra.mxu0 %v1932
        %2062 = vmatprep.subr.mxu0 %v1941
        %2063 = vmatpush1.msra.mxu0 %v1940
        %2064 = vmatprep.subr.mxu0 %v1949
        %2065 = vmatpush1.msra.mxu0 %v1948
        %2066 = vmatprep.subr.mxu0 %v1957
        %2067 = vmatpush1.msra.mxu0 %v1956
        %2068 = vmatprep.subr.mxu0 %v1965
        %2069 = vmatpush1.msra.mxu0 %v1964
        %2070 = vmatprep.subr.mxu0 %v1973
        %2071 = vmatpush1.msra.mxu0 %v1972
        %2072 = vmatprep.subr.mxu0 %v1981
        %2073 = vmatpush1.msra.mxu0 %v1980
        %2074 = vmatprep.subr.mxu0 %v1989
        %2075 = vmatpush1.msra.mxu0 %v1988
        %2076 = vmatprep.subr.mxu0 %v1997
        %2077 = vmatpush1.msra.mxu0 %v1996
        %2078 = vmatprep.subr.mxu0 %v2005
        %2079 = vmatpush1.msra.mxu0 %v2004
        %2080 = vmatprep.subr.mxu0 %v2013
        %2081 = vmatpush1.msra.mxu0 %v2012
        %2082 = vmatprep.subr.mxu0 %v2021
        %2083 = vmatpush1.msra.mxu0 %v2020
        %2084 = vmatprep.subr.mxu0 %v2029
        %2085 = vmatpush1.msra.mxu0 %v2028
        %2086 = vmatprep.subr.mxu0 %v2037
        %2087 = vmatpush1.msra.mxu0 %v2036
        %2088 = vmatprep.subr.mxu0 %v2045
        %2089 = vmatpush1.msra.mxu0 %v2044
        %2090 = vmatprep.subr.mxu0 %v2053
        %2091 = vmatpush1.msra.mxu0 %v2052
        %2092 = vmatprep.subr.mxu0 0.0
        %2093 = vmatpush1.msra.mxu0 0.0
        %2094 = vmatprep.subr.mxu0 0.0
        %2095 = vmatpush1.msra.mxu0 0.0
        %2096 = vmatprep.subr.mxu0 0.0
        %2097 = vmatpush1.msra.mxu0 0.0
        %2098 = vmatprep.subr.mxu0 0.0
        %2099 = vmatpush1.msra.mxu0 0.0
        %2100 = vmatprep.subr.mxu0 0.0
        %2101 = vmatpush1.msra.mxu0 0.0
        %2102 = vmatprep.subr.mxu0 0.0
        %2103 = vmatpush1.msra.mxu0 0.0
        %2104 = vmatprep.subr.mxu0 0.0
        %2105 = vmatpush1.msra.mxu0 0.0
        %2106 = vmatprep.subr.mxu0 0.0
        %2107 = vmatpush1.msra.mxu0 0.0
        %2108 = vmatprep.subr.mxu0 0.0
        %2109 = vmatpush1.msra.mxu0 0.0
        %2110 = vmatprep.subr.mxu0 0.0
        %2111 = vmatpush1.msra.mxu0 0.0
        %2112 = vmatprep.subr.mxu0 0.0
        %2113 = vmatpush1.msra.mxu0 0.0
        %2114 = vmatprep.subr.mxu0 0.0
        %2115 = vmatpush1.msra.mxu0 0.0
        %2116 = vmatprep.subr.mxu0 0.0
        %2117 = vmatpush1.msra.mxu0 0.0
        %2118 = vmatprep.subr.mxu0 0.0
        %2119 = vmatpush1.msra.mxu0 0.0
        %2120 = vmatprep.subr.mxu0 0.0
        %2121 = vmatpush1.msra.mxu0 0.0
        %2122 = vmatprep.subr.mxu0 0.0
        %2123 = vmatpush1.msra.mxu0 0.0
        %2124 = vmatprep.mubr.f32.mxu0 0.0
        %2125 = vmatmul.mubr.f32.gmra.mrb[0].mxu0 %v372
        %v2126 = vpop.f32.mrb[0].mxu0
        %v2127 = vadd.f32 0.0, %v2126
        %v2128 = vpop.f32.mrb[0].mxu0
        %v2129 = vadd.f32 0.0, %v2128
        %2130 = vmatprep.mubr.f32.mxu0 0.0
        %2131 = vmatmul.mubr.f32.gmra.mrb[0].mxu0 %v373
        %v2132 = vpop.f32.mrb[0].mxu0
        %v2133 = vadd.f32 0.0, %v2132
        %v2134 = vpop.f32.mrb[0].mxu0
        %v2135 = vadd.f32 0.0, %v2134
        %2136 = vmatprep.mubr.f32.mxu0 0.0
        %2137 = vmatmul.mubr.f32.gmra.mrb[0].mxu0 %v374
        %v2138 = vpop.f32.mrb[0].mxu0
        %v2139 = vadd.f32 0.0, %v2138
        %v2140 = vpop.f32.mrb[0].mxu0
        %v2141 = vadd.f32 0.0, %v2140
        %2142 = vmatprep.mubr.f32.mxu0 0.0
        %2143 = vmatmul.mubr.f32.gmra.mrb[0].mxu0 %v375
        %v2144 = vpop.f32.mrb[0].mxu0
        %v2145 = vadd.f32 0.0, %v2144
        %v2146 = vpop.f32.mrb[0].mxu0
        %v2147 = vadd.f32 0.0, %v2146
        %2148 = vmatprep.mubr.f32.mxu0 0.0
        %2149 = vmatmul.mubr.f32.gmra.mrb[0].mxu0 %v376
        %v2150 = vpop.f32.mrb[0].mxu0
        %v2151 = vadd.f32 0.0, %v2150
        %v2152 = vpop.f32.mrb[0].mxu0
        %v2153 = vadd.f32 0.0, %v2152
        %2154 = vmatprep.mubr.f32.mxu0 0.0
        %2155 = vmatmul.mubr.f32.gmra.mrb[0].mxu0 %v377
        %v2156 = vpop.f32.mrb[0].mxu0
        %v2157 = vadd.f32 0.0, %v2156
        %v2158 = vpop.f32.mrb[0].mxu0
        %v2159 = vadd.f32 0.0, %v2158
        %2160 = vmatprep.mubr.f32.mxu0 0.0
        %2161 = vmatmul.mubr.f32.gmra.mrb[0].mxu0 %v378
        %v2162 = vpop.f32.mrb[0].mxu0
        %v2163 = vadd.f32 0.0, %v2162
        %v2164 = vpop.f32.mrb[0].mxu0
        %v2165 = vadd.f32 0.0, %v2164
        %2166 = vmatprep.mubr.f32.mxu0 0.0
        %2167 = vmatmul.mubr.f32.gmra.mrb[0].mxu0 %v379
        %v2168 = vpop.f32.mrb[0].mxu0
        %v2169 = vadd.f32 0.0, %v2168
        %v2170 = vpop.f32.mrb[0].mxu0
        %v2171 = vadd.f32 0.0, %v2170
        %2172 = vmatprep.mubr.f32.mxu0 0.0
        %2173 = vmatmul.mubr.f32.gmra.mrb[0].mxu0 %v380
        %v2174 = vpop.f32.mrb[0].mxu0
        %v2175 = vadd.f32 0.0, %v2174
        %v2176 = vpop.f32.mrb[0].mxu0
        %v2177 = vadd.f32 0.0, %v2176
        %2178 = vmatprep.mubr.f32.mxu0 0.0
        %2179 = vmatmul.mubr.f32.gmra.mrb[0].mxu0 %v381
        %v2180 = vpop.f32.mrb[0].mxu0
        %v2181 = vadd.f32 0.0, %v2180
        %v2182 = vpop.f32.mrb[0].mxu0
        %v2183 = vadd.f32 0.0, %v2182
        %2184 = vmatprep.mubr.f32.mxu0 0.0
        %2185 = vmatmul.mubr.f32.gmra.mrb[0].mxu0 %v382
        %v2186 = vpop.f32.mrb[0].mxu0
        %v2187 = vadd.f32 0.0, %v2186
        %v2188 = vpop.f32.mrb[0].mxu0
        %v2189 = vadd.f32 0.0, %v2188
        %2190 = vmatprep.mubr.f32.mxu0 0.0
        %2191 = vmatmul.mubr.f32.gmra.mrb[0].mxu0 %v383
        %v2192 = vpop.f32.mrb[0].mxu0
        %v2193 = vadd.f32 0.0, %v2192
        %v2194 = vpop.f32.mrb[0].mxu0
        %v2195 = vadd.f32 0.0, %v2194
        %2196 = vmatprep.mubr.f32.mxu0 0.0
        %2197 = vmatmul.mubr.f32.gmra.mrb[0].mxu0 %v384
        %v2198 = vpop.f32.mrb[0].mxu0
        %v2199 = vadd.f32 0.0, %v2198
        %v2200 = vpop.f32.mrb[0].mxu0
        %v2201 = vadd.f32 0.0, %v2200
        %2202 = vmatprep.mubr.f32.mxu0 0.0
        %2203 = vmatmul.mubr.f32.gmra.mrb[0].mxu0 %v385
        %v2204 = vpop.f32.mrb[0].mxu0
        %v2205 = vadd.f32 0.0, %v2204
        %v2206 = vpop.f32.mrb[0].mxu0
        %v2207 = vadd.f32 0.0, %v2206
        %2208 = vmatprep.mubr.f32.mxu0 0.0
        %2209 = vmatmul.mubr.f32.gmra.mrb[0].mxu0 %v386
        %v2210 = vpop.f32.mrb[0].mxu0
        %v2211 = vadd.f32 0.0, %v2210
        %v2212 = vpop.f32.mrb[0].mxu0
        %v2213 = vadd.f32 0.0, %v2212
        %2214 = vmatprep.mubr.f32.mxu0 0.0
        %2215 = vmatmul.mubr.f32.gmra.mrb[0].mxu0 %v387
        %v2216 = vpop.f32.mrb[0].mxu0
        %v2217 = vadd.f32 0.0, %v2216
        %v2218 = vpop.f32.mrb[0].mxu0
        %v2219 = vadd.f32 0.0, %v2218
        %2220 = vdwg.mxu0
        %2221 = vmatprep.subr.mxu0 %v1935
        %2222 = vmatpush1.msra.mxu0 %v1934
        %2223 = vmatprep.subr.mxu0 %v1943
        %2224 = vmatpush1.msra.mxu0 %v1942
        %2225 = vmatprep.subr.mxu0 %v1951
        %2226 = vmatpush1.msra.mxu0 %v1950
        %2227 = vmatprep.subr.mxu0 %v1959
        %2228 = vmatpush1.msra.mxu0 %v1958
        %2229 = vmatprep.subr.mxu0 %v1967
        %2230 = vmatpush1.msra.mxu0 %v1966
        %2231 = vmatprep.subr.mxu0 %v1975
        %2232 = vmatpush1.msra.mxu0 %v1974
        %2233 = vmatprep.subr.mxu0 %v1983
        %2234 = vmatpush1.msra.mxu0 %v1982
        %2235 = vmatprep.subr.mxu0 %v1991
        %2236 = vmatpush1.msra.mxu0 %v1990
        %2237 = vmatprep.subr.mxu0 %v1999
        %2238 = vmatpush1.msra.mxu0 %v1998
        %2239 = vmatprep.subr.mxu0 %v2007
        %2240 = vmatpush1.msra.mxu0 %v2006
        %2241 = vmatprep.subr.mxu0 %v2015
        %2242 = vmatpush1.msra.mxu0 %v2014
        %2243 = vmatprep.subr.mxu0 %v2023
        %2244 = vmatpush1.msra.mxu0 %v2022
        %2245 = vmatprep.subr.mxu0 %v2031
        %2246 = vmatpush1.msra.mxu0 %v2030
        %2247 = vmatprep.subr.mxu0 %v2039
        %2248 = vmatpush1.msra.mxu0 %v2038
        %2249 = vmatprep.subr.mxu0 %v2047
        %2250 = vmatpush1.msra.mxu0 %v2046
        %2251 = vmatprep.subr.mxu0 %v2055
        %2252 = vmatpush1.msra.mxu0 %v2054
        %2253 = vmatprep.subr.mxu0 0.0
        %2254 = vmatpush1.msra.mxu0 0.0
        %2255 = vmatprep.subr.mxu0 0.0
        %2256 = vmatpush1.msra.mxu0 0.0
        %2257 = vmatprep.subr.mxu0 0.0
        %2258 = vmatpush1.msra.mxu0 0.0
        %2259 = vmatprep.subr.mxu0 0.0
        %2260 = vmatpush1.msra.mxu0 0.0
        %2261 = vmatprep.subr.mxu0 0.0
        %2262 = vmatpush1.msra.mxu0 0.0
        %2263 = vmatprep.subr.mxu0 0.0
        %2264 = vmatpush1.msra.mxu0 0.0
        %2265 = vmatprep.subr.mxu0 0.0
        %2266 = vmatpush1.msra.mxu0 0.0
        %2267 = vmatprep.subr.mxu0 0.0
        %2268 = vmatpush1.msra.mxu0 0.0
        %2269 = vmatprep.subr.mxu0 0.0
        %2270 = vmatpush1.msra.mxu0 0.0
        %2271 = vmatprep.subr.mxu0 0.0
        %2272 = vmatpush1.msra.mxu0 0.0
        %2273 = vmatprep.subr.mxu0 0.0
        %2274 = vmatpush1.msra.mxu0 0.0
        %2275 = vmatprep.subr.mxu0 0.0
        %2276 = vmatpush1.msra.mxu0 0.0
        %2277 = vmatprep.subr.mxu0 0.0
        %2278 = vmatpush1.msra.mxu0 0.0
        %2279 = vmatprep.subr.mxu0 0.0
        %2280 = vmatpush1.msra.mxu0 0.0
        %2281 = vmatprep.subr.mxu0 0.0
        %2282 = vmatpush1.msra.mxu0 0.0
        %2283 = vmatprep.subr.mxu0 0.0
        %2284 = vmatpush1.msra.mxu0 0.0
        %2285 = vmatprep.mubr.f32.mxu0 0.0
        %2286 = vmatmul.mubr.f32.gmra.mrb[0].mxu0 %v372
        %v2287 = vpop.f32.mrb[0].mxu0
        %v2288 = vadd.f32 0.0, %v2287
        %v2289 = vpop.f32.mrb[0].mxu0
        %v2290 = vadd.f32 0.0, %v2289
        %2291 = vmatprep.mubr.f32.mxu0 0.0
        %2292 = vmatmul.mubr.f32.gmra.mrb[0].mxu0 %v373
        %v2293 = vpop.f32.mrb[0].mxu0
        %v2294 = vadd.f32 0.0, %v2293
        %v2295 = vpop.f32.mrb[0].mxu0
        %v2296 = vadd.f32 0.0, %v2295
        %2297 = vmatprep.mubr.f32.mxu0 0.0
        %2298 = vmatmul.mubr.f32.gmra.mrb[0].mxu0 %v374
        %v2299 = vpop.f32.mrb[0].mxu0
        %v2300 = vadd.f32 0.0, %v2299
        %v2301 = vpop.f32.mrb[0].mxu0
        %v2302 = vadd.f32 0.0, %v2301
        %2303 = vmatprep.mubr.f32.mxu0 0.0
        %2304 = vmatmul.mubr.f32.gmra.mrb[0].mxu0 %v375
        %v2305 = vpop.f32.mrb[0].mxu0
        %v2306 = vadd.f32 0.0, %v2305
        %v2307 = vpop.f32.mrb[0].mxu0
        %v2308 = vadd.f32 0.0, %v2307
        %2309 = vmatprep.mubr.f32.mxu0 0.0
        %2310 = vmatmul.mubr.f32.gmra.mrb[0].mxu0 %v376
        %v2311 = vpop.f32.mrb[0].mxu0
        %v2312 = vadd.f32 0.0, %v2311
        %v2313 = vpop.f32.mrb[0].mxu0
        %v2314 = vadd.f32 0.0, %v2313
        %2315 = vmatprep.mubr.f32.mxu0 0.0
        %2316 = vmatmul.mubr.f32.gmra.mrb[0].mxu0 %v377
        %v2317 = vpop.f32.mrb[0].mxu0
        %v2318 = vadd.f32 0.0, %v2317
        %v2319 = vpop.f32.mrb[0].mxu0
        %v2320 = vadd.f32 0.0, %v2319
        %2321 = vmatprep.mubr.f32.mxu0 0.0
        %2322 = vmatmul.mubr.f32.gmra.mrb[0].mxu0 %v378
        %v2323 = vpop.f32.mrb[0].mxu0
        %v2324 = vadd.f32 0.0, %v2323
        %v2325 = vpop.f32.mrb[0].mxu0
        %v2326 = vadd.f32 0.0, %v2325
        %2327 = vmatprep.mubr.f32.mxu0 0.0
        %2328 = vmatmul.mubr.f32.gmra.mrb[0].mxu0 %v379
        %v2329 = vpop.f32.mrb[0].mxu0
        %v2330 = vadd.f32 0.0, %v2329
        %v2331 = vpop.f32.mrb[0].mxu0
        %v2332 = vadd.f32 0.0, %v2331
        %2333 = vmatprep.mubr.f32.mxu0 0.0
        %2334 = vmatmul.mubr.f32.gmra.mrb[0].mxu0 %v380
        %v2335 = vpop.f32.mrb[0].mxu0
        %v2336 = vadd.f32 0.0, %v2335
        %v2337 = vpop.f32.mrb[0].mxu0
        %v2338 = vadd.f32 0.0, %v2337
        %2339 = vmatprep.mubr.f32.mxu0 0.0
        %2340 = vmatmul.mubr.f32.gmra.mrb[0].mxu0 %v381
        %v2341 = vpop.f32.mrb[0].mxu0
        %v2342 = vadd.f32 0.0, %v2341
        %v2343 = vpop.f32.mrb[0].mxu0
        %v2344 = vadd.f32 0.0, %v2343
        %2345 = vmatprep.mubr.f32.mxu0 0.0
        %2346 = vmatmul.mubr.f32.gmra.mrb[0].mxu0 %v382
        %v2347 = vpop.f32.mrb[0].mxu0
        %v2348 = vadd.f32 0.0, %v2347
        %v2349 = vpop.f32.mrb[0].mxu0
        %v2350 = vadd.f32 0.0, %v2349
        %2351 = vmatprep.mubr.f32.mxu0 0.0
        %2352 = vmatmul.mubr.f32.gmra.mrb[0].mxu0 %v383
        %v2353 = vpop.f32.mrb[0].mxu0
        %v2354 = vadd.f32 0.0, %v2353
        %v2355 = vpop.f32.mrb[0].mxu0
        %v2356 = vadd.f32 0.0, %v2355
        %2357 = vmatprep.mubr.f32.mxu0 0.0
        %2358 = vmatmul.mubr.f32.gmra.mrb[0].mxu0 %v384
        %v2359 = vpop.f32.mrb[0].mxu0
        %v2360 = vadd.f32 0.0, %v2359
        %v2361 = vpop.f32.mrb[0].mxu0
        %v2362 = vadd.f32 0.0, %v2361
        %2363 = vmatprep.mubr.f32.mxu0 0.0
        %2364 = vmatmul.mubr.f32.gmra.mrb[0].mxu0 %v385
        %v2365 = vpop.f32.mrb[0].mxu0
        %v2366 = vadd.f32 0.0, %v2365
        %v2367 = vpop.f32.mrb[0].mxu0
        %v2368 = vadd.f32 0.0, %v2367
        %2369 = vmatprep.mubr.f32.mxu0 0.0
        %2370 = vmatmul.mubr.f32.gmra.mrb[0].mxu0 %v386
        %v2371 = vpop.f32.mrb[0].mxu0
        %v2372 = vadd.f32 0.0, %v2371
        %v2373 = vpop.f32.mrb[0].mxu0
        %v2374 = vadd.f32 0.0, %v2373
        %2375 = vmatprep.mubr.f32.mxu0 0.0
        %2376 = vmatmul.mubr.f32.gmra.mrb[0].mxu0 %v387
        %v2377 = vpop.f32.mrb[0].mxu0
        %v2378 = vadd.f32 0.0, %v2377
        %v2379 = vpop.f32.mrb[0].mxu0
        %v2380 = vadd.f32 0.0, %v2379
        %2381 = vdwg.mxu0
        %2382 = vmatprep.subr.mxu0 %v1937
        %2383 = vmatpush1.msra.mxu0 %v1936
        %2384 = vmatprep.subr.mxu0 %v1945
        %2385 = vmatpush1.msra.mxu0 %v1944
        %2386 = vmatprep.subr.mxu0 %v1953
        %2387 = vmatpush1.msra.mxu0 %v1952
        %2388 = vmatprep.subr.mxu0 %v1961
        %2389 = vmatpush1.msra.mxu0 %v1960
        %2390 = vmatprep.subr.mxu0 %v1969
        %2391 = vmatpush1.msra.mxu0 %v1968
        %2392 = vmatprep.subr.mxu0 %v1977
        %2393 = vmatpush1.msra.mxu0 %v1976
        %2394 = vmatprep.subr.mxu0 %v1985
        %2395 = vmatpush1.msra.mxu0 %v1984
        %2396 = vmatprep.subr.mxu0 %v1993
        %2397 = vmatpush1.msra.mxu0 %v1992
        %2398 = vmatprep.subr.mxu0 %v2001
        %2399 = vmatpush1.msra.mxu0 %v2000
        %2400 = vmatprep.subr.mxu0 %v2009
        %2401 = vmatpush1.msra.mxu0 %v2008
        %2402 = vmatprep.subr.mxu0 %v2017
        %2403 = vmatpush1.msra.mxu0 %v2016
        %2404 = vmatprep.subr.mxu0 %v2025
        %2405 = vmatpush1.msra.mxu0 %v2024
        %2406 = vmatprep.subr.mxu0 %v2033
        %2407 = vmatpush1.msra.mxu0 %v2032
        %2408 = vmatprep.subr.mxu0 %v2041
        %2409 = vmatpush1.msra.mxu0 %v2040
        %2410 = vmatprep.subr.mxu0 %v2049
        %2411 = vmatpush1.msra.mxu0 %v2048
        %2412 = vmatprep.subr.mxu0 %v2057
        %2413 = vmatpush1.msra.mxu0 %v2056
        %2414 = vmatprep.subr.mxu0 0.0
        %2415 = vmatpush1.msra.mxu0 0.0
        %2416 = vmatprep.subr.mxu0 0.0
        %2417 = vmatpush1.msra.mxu0 0.0
        %2418 = vmatprep.subr.mxu0 0.0
        %2419 = vmatpush1.msra.mxu0 0.0
        %2420 = vmatprep.subr.mxu0 0.0
        %2421 = vmatpush1.msra.mxu0 0.0
        %2422 = vmatprep.subr.mxu0 0.0
        %2423 = vmatpush1.msra.mxu0 0.0
        %2424 = vmatprep.subr.mxu0 0.0
        %2425 = vmatpush1.msra.mxu0 0.0
        %2426 = vmatprep.subr.mxu0 0.0
        %2427 = vmatpush1.msra.mxu0 0.0
        %2428 = vmatprep.subr.mxu0 0.0
        %2429 = vmatpush1.msra.mxu0 0.0
        %2430 = vmatprep.subr.mxu0 0.0
        %2431 = vmatpush1.msra.mxu0 0.0
        %2432 = vmatprep.subr.mxu0 0.0
        %2433 = vmatpush1.msra.mxu0 0.0
        %2434 = vmatprep.subr.mxu0 0.0
        %2435 = vmatpush1.msra.mxu0 0.0
        %2436 = vmatprep.subr.mxu0 0.0
        %2437 = vmatpush1.msra.mxu0 0.0
        %2438 = vmatprep.subr.mxu0 0.0
        %2439 = vmatpush1.msra.mxu0 0.0
        %2440 = vmatprep.subr.mxu0 0.0
        %2441 = vmatpush1.msra.mxu0 0.0
        %2442 = vmatprep.subr.mxu0 0.0
        %2443 = vmatpush1.msra.mxu0 0.0
        %2444 = vmatprep.subr.mxu0 0.0
        %2445 = vmatpush1.msra.mxu0 0.0
        %2446 = vmatprep.mubr.f32.mxu0 0.0
        %2447 = vmatmul.mubr.f32.gmra.mrb[0].mxu0 %v372
        %v2448 = vpop.f32.mrb[0].mxu0
        %v2449 = vadd.f32 0.0, %v2448
        %v2450 = vpop.f32.mrb[0].mxu0
        %v2451 = vadd.f32 0.0, %v2450
        %2452 = vmatprep.mubr.f32.mxu0 0.0
        %2453 = vmatmul.mubr.f32.gmra.mrb[0].mxu0 %v373
        %v2454 = vpop.f32.mrb[0].mxu0
        %v2455 = vadd.f32 0.0, %v2454
        %v2456 = vpop.f32.mrb[0].mxu0
        %v2457 = vadd.f32 0.0, %v2456
        %2458 = vmatprep.mubr.f32.mxu0 0.0
        %2459 = vmatmul.mubr.f32.gmra.mrb[0].mxu0 %v374
        %v2460 = vpop.f32.mrb[0].mxu0
        %v2461 = vadd.f32 0.0, %v2460
        %v2462 = vpop.f32.mrb[0].mxu0
        %v2463 = vadd.f32 0.0, %v2462
        %2464 = vmatprep.mubr.f32.mxu0 0.0
        %2465 = vmatmul.mubr.f32.gmra.mrb[0].mxu0 %v375
        %v2466 = vpop.f32.mrb[0].mxu0
        %v2467 = vadd.f32 0.0, %v2466
        %v2468 = vpop.f32.mrb[0].mxu0
        %v2469 = vadd.f32 0.0, %v2468
        %2470 = vmatprep.mubr.f32.mxu0 0.0
        %2471 = vmatmul.mubr.f32.gmra.mrb[0].mxu0 %v376
        %v2472 = vpop.f32.mrb[0].mxu0
        %v2473 = vadd.f32 0.0, %v2472
        %v2474 = vpop.f32.mrb[0].mxu0
        %v2475 = vadd.f32 0.0, %v2474
        %2476 = vmatprep.mubr.f32.mxu0 0.0
        %2477 = vmatmul.mubr.f32.gmra.mrb[0].mxu0 %v377
        %v2478 = vpop.f32.mrb[0].mxu0
        %v2479 = vadd.f32 0.0, %v2478
        %v2480 = vpop.f32.mrb[0].mxu0
        %v2481 = vadd.f32 0.0, %v2480
        %2482 = vmatprep.mubr.f32.mxu0 0.0
        %2483 = vmatmul.mubr.f32.gmra.mrb[0].mxu0 %v378
        %v2484 = vpop.f32.mrb[0].mxu0
        %v2485 = vadd.f32 0.0, %v2484
        %v2486 = vpop.f32.mrb[0].mxu0
        %v2487 = vadd.f32 0.0, %v2486
        %2488 = vmatprep.mubr.f32.mxu0 0.0
        %2489 = vmatmul.mubr.f32.gmra.mrb[0].mxu0 %v379
        %v2490 = vpop.f32.mrb[0].mxu0
        %v2491 = vadd.f32 0.0, %v2490
        %v2492 = vpop.f32.mrb[0].mxu0
        %v2493 = vadd.f32 0.0, %v2492
        %2494 = vmatprep.mubr.f32.mxu0 0.0
        %2495 = vmatmul.mubr.f32.gmra.mrb[0].mxu0 %v380
        %v2496 = vpop.f32.mrb[0].mxu0
        %v2497 = vadd.f32 0.0, %v2496
        %v2498 = vpop.f32.mrb[0].mxu0
        %v2499 = vadd.f32 0.0, %v2498
        %2500 = vmatprep.mubr.f32.mxu0 0.0
        %2501 = vmatmul.mubr.f32.gmra.mrb[0].mxu0 %v381
        %v2502 = vpop.f32.mrb[0].mxu0
        %v2503 = vadd.f32 0.0, %v2502
        %v2504 = vpop.f32.mrb[0].mxu0
        %v2505 = vadd.f32 0.0, %v2504
        %2506 = vmatprep.mubr.f32.mxu0 0.0
        %2507 = vmatmul.mubr.f32.gmra.mrb[0].mxu0 %v382
        %v2508 = vpop.f32.mrb[0].mxu0
        %v2509 = vadd.f32 0.0, %v2508
        %v2510 = vpop.f32.mrb[0].mxu0
        %v2511 = vadd.f32 0.0, %v2510
        %2512 = vmatprep.mubr.f32.mxu0 0.0
        %2513 = vmatmul.mubr.f32.gmra.mrb[0].mxu0 %v383
        %v2514 = vpop.f32.mrb[0].mxu0
        %v2515 = vadd.f32 0.0, %v2514
        %v2516 = vpop.f32.mrb[0].mxu0
        %v2517 = vadd.f32 0.0, %v2516
        %2518 = vmatprep.mubr.f32.mxu0 0.0
        %2519 = vmatmul.mubr.f32.gmra.mrb[0].mxu0 %v384
        %v2520 = vpop.f32.mrb[0].mxu0
        %v2521 = vadd.f32 0.0, %v2520
        %v2522 = vpop.f32.mrb[0].mxu0
        %v2523 = vadd.f32 0.0, %v2522
        %2524 = vmatprep.mubr.f32.mxu0 0.0
        %2525 = vmatmul.mubr.f32.gmra.mrb[0].mxu0 %v385
        %v2526 = vpop.f32.mrb[0].mxu0
        %v2527 = vadd.f32 0.0, %v2526
        %v2528 = vpop.f32.mrb[0].mxu0
        %v2529 = vadd.f32 0.0, %v2528
        %2530 = vmatprep.mubr.f32.mxu0 0.0
        %2531 = vmatmul.mubr.f32.gmra.mrb[0].mxu0 %v386
        %v2532 = vpop.f32.mrb[0].mxu0
        %v2533 = vadd.f32 0.0, %v2532
        %v2534 = vpop.f32.mrb[0].mxu0
        %v2535 = vadd.f32 0.0, %v2534
        %2536 = vmatprep.mubr.f32.mxu0 0.0
        %2537 = vmatmul.mubr.f32.gmra.mrb[0].mxu0 %v387
        %v2538 = vpop.f32.mrb[0].mxu0
        %v2539 = vadd.f32 0.0, %v2538
        %v2540 = vpop.f32.mrb[0].mxu0
        %v2541 = vadd.f32 0.0, %v2540
        %2542 = vdwg.mxu0
        %2543 = vmatprep.subr.mxu0 %v1939
        %2544 = vmatpush1.msra.mxu0 %v1938
        %2545 = vmatprep.subr.mxu0 %v1947
        %2546 = vmatpush1.msra.mxu0 %v1946
        %2547 = vmatprep.subr.mxu0 %v1955
        %2548 = vmatpush1.msra.mxu0 %v1954
        %2549 = vmatprep.subr.mxu0 %v1963
        %2550 = vmatpush1.msra.mxu0 %v1962
        %2551 = vmatprep.subr.mxu0 %v1971
        %2552 = vmatpush1.msra.mxu0 %v1970
        %2553 = vmatprep.subr.mxu0 %v1979
        %2554 = vmatpush1.msra.mxu0 %v1978
        %2555 = vmatprep.subr.mxu0 %v1987
        %2556 = vmatpush1.msra.mxu0 %v1986
        %2557 = vmatprep.subr.mxu0 %v1995
        %2558 = vmatpush1.msra.mxu0 %v1994
        %2559 = vmatprep.subr.mxu0 %v2003
        %2560 = vmatpush1.msra.mxu0 %v2002
        %2561 = vmatprep.subr.mxu0 %v2011
        %2562 = vmatpush1.msra.mxu0 %v2010
        %2563 = vmatprep.subr.mxu0 %v2019
        %2564 = vmatpush1.msra.mxu0 %v2018
        %2565 = vmatprep.subr.mxu0 %v2027
        %2566 = vmatpush1.msra.mxu0 %v2026
        %2567 = vmatprep.subr.mxu0 %v2035
        %2568 = vmatpush1.msra.mxu0 %v2034
        %2569 = vmatprep.subr.mxu0 %v2043
        %2570 = vmatpush1.msra.mxu0 %v2042
        %2571 = vmatprep.subr.mxu0 %v2051
        %2572 = vmatpush1.msra.mxu0 %v2050
        %2573 = vmatprep.subr.mxu0 %v2059
        %2574 = vmatpush1.msra.mxu0 %v2058
        %2575 = vmatprep.subr.mxu0 0.0
        %2576 = vmatpush1.msra.mxu0 0.0
        %2577 = vmatprep.subr.mxu0 0.0
        %2578 = vmatpush1.msra.mxu0 0.0
        %2579 = vmatprep.subr.mxu0 0.0
        %2580 = vmatpush1.msra.mxu0 0.0
        %2581 = vmatprep.subr.mxu0 0.0
        %2582 = vmatpush1.msra.mxu0 0.0
        %2583 = vmatprep.subr.mxu0 0.0
        %2584 = vmatpush1.msra.mxu0 0.0
        %2585 = vmatprep.subr.mxu0 0.0
        %2586 = vmatpush1.msra.mxu0 0.0
        %2587 = vmatprep.subr.mxu0 0.0
        %2588 = vmatpush1.msra.mxu0 0.0
        %2589 = vmatprep.subr.mxu0 0.0
        %2590 = vmatpush1.msra.mxu0 0.0
        %2591 = vmatprep.subr.mxu0 0.0
        %2592 = vmatpush1.msra.mxu0 0.0
        %2593 = vmatprep.subr.mxu0 0.0
        %2594 = vmatpush1.msra.mxu0 0.0
        %2595 = vmatprep.subr.mxu0 0.0
        %2596 = vmatpush1.msra.mxu0 0.0
        %2597 = vmatprep.subr.mxu0 0.0
        %2598 = vmatpush1.msra.mxu0 0.0
        %2599 = vmatprep.subr.mxu0 0.0
        %2600 = vmatpush1.msra.mxu0 0.0
        %2601 = vmatprep.subr.mxu0 0.0
        %2602 = vmatpush1.msra.mxu0 0.0
        %2603 = vmatprep.subr.mxu0 0.0
        %2604 = vmatpush1.msra.mxu0 0.0
        %2605 = vmatprep.subr.mxu0 0.0
        %2606 = vmatpush1.msra.mxu0 0.0
        %2607 = vmatprep.mubr.f32.mxu0 0.0
        %2608 = vmatmul.mubr.f32.gmra.mrb[0].mxu0 %v372
        %v2609 = vpop.f32.mrb[0].mxu0
        %v2610 = vadd.f32 0.0, %v2609
        %v2611 = vpop.f32.mrb[0].mxu0
        %v2612 = vadd.f32 0.0, %v2611
        %2613 = vmatprep.mubr.f32.mxu0 0.0
        %2614 = vmatmul.mubr.f32.gmra.mrb[0].mxu0 %v373
        %v2615 = vpop.f32.mrb[0].mxu0
        %v2616 = vadd.f32 0.0, %v2615
        %v2617 = vpop.f32.mrb[0].mxu0
        %v2618 = vadd.f32 0.0, %v2617
        %2619 = vmatprep.mubr.f32.mxu0 0.0
        %2620 = vmatmul.mubr.f32.gmra.mrb[0].mxu0 %v374
        %v2621 = vpop.f32.mrb[0].mxu0
        %v2622 = vadd.f32 0.0, %v2621
        %v2623 = vpop.f32.mrb[0].mxu0
        %v2624 = vadd.f32 0.0, %v2623
        %2625 = vmatprep.mubr.f32.mxu0 0.0
        %2626 = vmatmul.mubr.f32.gmra.mrb[0].mxu0 %v375
        %v2627 = vpop.f32.mrb[0].mxu0
        %v2628 = vadd.f32 0.0, %v2627
        %v2629 = vpop.f32.mrb[0].mxu0
        %v2630 = vadd.f32 0.0, %v2629
        %2631 = vmatprep.mubr.f32.mxu0 0.0
        %2632 = vmatmul.mubr.f32.gmra.mrb[0].mxu0 %v376
        %v2633 = vpop.f32.mrb[0].mxu0
        %v2634 = vadd.f32 0.0, %v2633
        %v2635 = vpop.f32.mrb[0].mxu0
        %v2636 = vadd.f32 0.0, %v2635
        %2637 = vmatprep.mubr.f32.mxu0 0.0
        %2638 = vmatmul.mubr.f32.gmra.mrb[0].mxu0 %v377
        %v2639 = vpop.f32.mrb[0].mxu0
        %v2640 = vadd.f32 0.0, %v2639
        %v2641 = vpop.f32.mrb[0].mxu0
        %v2642 = vadd.f32 0.0, %v2641
        %2643 = vmatprep.mubr.f32.mxu0 0.0
        %2644 = vmatmul.mubr.f32.gmra.mrb[0].mxu0 %v378
        %v2645 = vpop.f32.mrb[0].mxu0
        %v2646 = vadd.f32 0.0, %v2645
        %v2647 = vpop.f32.mrb[0].mxu0
        %v2648 = vadd.f32 0.0, %v2647
        %2649 = vmatprep.mubr.f32.mxu0 0.0
        %2650 = vmatmul.mubr.f32.gmra.mrb[0].mxu0 %v379
        %v2651 = vpop.f32.mrb[0].mxu0
        %v2652 = vadd.f32 0.0, %v2651
        %v2653 = vpop.f32.mrb[0].mxu0
        %v2654 = vadd.f32 0.0, %v2653
        %2655 = vmatprep.mubr.f32.mxu0 0.0
        %2656 = vmatmul.mubr.f32.gmra.mrb[0].mxu0 %v380
        %v2657 = vpop.f32.mrb[0].mxu0
        %v2658 = vadd.f32 0.0, %v2657
        %v2659 = vpop.f32.mrb[0].mxu0
        %v2660 = vadd.f32 0.0, %v2659
        %2661 = vmatprep.mubr.f32.mxu0 0.0
        %2662 = vmatmul.mubr.f32.gmra.mrb[0].mxu0 %v381
        %v2663 = vpop.f32.mrb[0].mxu0
        %v2664 = vadd.f32 0.0, %v2663
        %v2665 = vpop.f32.mrb[0].mxu0
        %v2666 = vadd.f32 0.0, %v2665
        %2667 = vmatprep.mubr.f32.mxu0 0.0
        %2668 = vmatmul.mubr.f32.gmra.mrb[0].mxu0 %v382
        %v2669 = vpop.f32.mrb[0].mxu0
        %v2670 = vadd.f32 0.0, %v2669
        %v2671 = vpop.f32.mrb[0].mxu0
        %v2672 = vadd.f32 0.0, %v2671
        %2673 = vmatprep.mubr.f32.mxu0 0.0
        %2674 = vmatmul.mubr.f32.gmra.mrb[0].mxu0 %v383
        %v2675 = vpop.f32.mrb[0].mxu0
        %v2676 = vadd.f32 0.0, %v2675
        %v2677 = vpop.f32.mrb[0].mxu0
        %v2678 = vadd.f32 0.0, %v2677
        %2679 = vmatprep.mubr.f32.mxu0 0.0
        %2680 = vmatmul.mubr.f32.gmra.mrb[0].mxu0 %v384
        %v2681 = vpop.f32.mrb[0].mxu0
        %v2682 = vadd.f32 0.0, %v2681
        %v2683 = vpop.f32.mrb[0].mxu0
        %v2684 = vadd.f32 0.0, %v2683
        %2685 = vmatprep.mubr.f32.mxu0 0.0
        %2686 = vmatmul.mubr.f32.gmra.mrb[0].mxu0 %v385
        %v2687 = vpop.f32.mrb[0].mxu0
        %v2688 = vadd.f32 0.0, %v2687
        %v2689 = vpop.f32.mrb[0].mxu0
        %v2690 = vadd.f32 0.0, %v2689
        %2691 = vmatprep.mubr.f32.mxu0 0.0
        %2692 = vmatmul.mubr.f32.gmra.mrb[0].mxu0 %v386
        %v2693 = vpop.f32.mrb[0].mxu0
        %v2694 = vadd.f32 0.0, %v2693
        %v2695 = vpop.f32.mrb[0].mxu0
        %v2696 = vadd.f32 0.0, %v2695
        %2697 = vmatprep.mubr.f32.mxu0 0.0
        %2698 = vmatmul.mubr.f32.gmra.mrb[0].mxu0 %v387
        %v2699 = vpop.f32.mrb[0].mxu0
        %v2700 = vadd.f32 0.0, %v2699
        %v2701 = vpop.f32.mrb[0].mxu0
        %v2702 = vadd.f32 0.0, %v2701
        %2703 = vdwg.mxu0
        %v2704 = vmul.f32 %v1355, %v583
        %v2705 = vmul.f32 %v1357, %v585
        %v2706 = vmul.f32 %v1516, %v744
        %v2707 = vmul.f32 %v1518, %v746
        %v2708 = vmul.f32 %v1677, %v905
        %v2709 = vmul.f32 %v1679, %v907
        %v2710 = vmul.f32 %v1838, %v1066
        %v2711 = vmul.f32 %v1840, %v1068
        %v2712 = vmul.f32 %v1361, %v589
        %v2713 = vmul.f32 %v1363, %v591
        %v2714 = vmul.f32 %v1522, %v750
        %v2715 = vmul.f32 %v1524, %v752
        %v2716 = vmul.f32 %v1683, %v911
        %v2717 = vmul.f32 %v1685, %v913
        %v2718 = vmul.f32 %v1844, %v1072
        %v2719 = vmul.f32 %v1846, %v1074
        %v2720 = vmul.f32 %v1367, %v595
        %v2721 = vmul.f32 %v1369, %v597
        %v2722 = vmul.f32 %v1528, %v756
        %v2723 = vmul.f32 %v1530, %v758
        %v2724 = vmul.f32 %v1689, %v917
        %v2725 = vmul.f32 %v1691, %v919
        %v2726 = vmul.f32 %v1850, %v1078
        %v2727 = vmul.f32 %v1852, %v1080
        %v2728 = vmul.f32 %v1373, %v601
        %v2729 = vmul.f32 %v1375, %v603
        %v2730 = vmul.f32 %v1534, %v762
        %v2731 = vmul.f32 %v1536, %v764
        %v2732 = vmul.f32 %v1695, %v923
        %v2733 = vmul.f32 %v1697, %v925
        %v2734 = vmul.f32 %v1856, %v1084
        %v2735 = vmul.f32 %v1858, %v1086
        %v2736 = vmul.f32 %v1379, %v607
        %v2737 = vmul.f32 %v1381, %v609
        %v2738 = vmul.f32 %v1540, %v768
        %v2739 = vmul.f32 %v1542, %v770
        %v2740 = vmul.f32 %v1701, %v929
        %v2741 = vmul.f32 %v1703, %v931
        %v2742 = vmul.f32 %v1862, %v1090
        %v2743 = vmul.f32 %v1864, %v1092
        %v2744 = vmul.f32 %v1385, %v613
        %v2745 = vmul.f32 %v1387, %v615
        %v2746 = vmul.f32 %v1546, %v774
        %v2747 = vmul.f32 %v1548, %v776
        %v2748 = vmul.f32 %v1707, %v935
        %v2749 = vmul.f32 %v1709, %v937
        %v2750 = vmul.f32 %v1868, %v1096
        %v2751 = vmul.f32 %v1870, %v1098
        %v2752 = vmul.f32 %v1391, %v619
        %v2753 = vmul.f32 %v1393, %v621
        %v2754 = vmul.f32 %v1552, %v780
        %v2755 = vmul.f32 %v1554, %v782
        %v2756 = vmul.f32 %v1713, %v941
        %v2757 = vmul.f32 %v1715, %v943
        %v2758 = vmul.f32 %v1874, %v1102
        %v2759 = vmul.f32 %v1876, %v1104
        %v2760 = vmul.f32 %v1397, %v625
        %v2761 = vmul.f32 %v1399, %v627
        %v2762 = vmul.f32 %v1558, %v786
        %v2763 = vmul.f32 %v1560, %v788
        %v2764 = vmul.f32 %v1719, %v947
        %v2765 = vmul.f32 %v1721, %v949
        %v2766 = vmul.f32 %v1880, %v1108
        %v2767 = vmul.f32 %v1882, %v1110
        %v2768 = vmul.f32 %v1403, %v631
        %v2769 = vmul.f32 %v1405, %v633
        %v2770 = vmul.f32 %v1564, %v792
        %v2771 = vmul.f32 %v1566, %v794
        %v2772 = vmul.f32 %v1725, %v953
        %v2773 = vmul.f32 %v1727, %v955
        %v2774 = vmul.f32 %v1886, %v1114
        %v2775 = vmul.f32 %v1888, %v1116
        %v2776 = vmul.f32 %v1409, %v637
        %v2777 = vmul.f32 %v1411, %v639
        %v2778 = vmul.f32 %v1570, %v798
        %v2779 = vmul.f32 %v1572, %v800
        %v2780 = vmul.f32 %v1731, %v959
        %v2781 = vmul.f32 %v1733, %v961
        %v2782 = vmul.f32 %v1892, %v1120
        %v2783 = vmul.f32 %v1894, %v1122
        %v2784 = vmul.f32 %v1415, %v643
        %v2785 = vmul.f32 %v1417, %v645
        %v2786 = vmul.f32 %v1576, %v804
        %v2787 = vmul.f32 %v1578, %v806
        %v2788 = vmul.f32 %v1737, %v965
        %v2789 = vmul.f32 %v1739, %v967
        %v2790 = vmul.f32 %v1898, %v1126
        %v2791 = vmul.f32 %v1900, %v1128
        %v2792 = vmul.f32 %v1421, %v649
        %v2793 = vmul.f32 %v1423, %v651
        %v2794 = vmul.f32 %v1582, %v810
        %v2795 = vmul.f32 %v1584, %v812
        %v2796 = vmul.f32 %v1743, %v971
        %v2797 = vmul.f32 %v1745, %v973
        %v2798 = vmul.f32 %v1904, %v1132
        %v2799 = vmul.f32 %v1906, %v1134
        %v2800 = vmul.f32 %v1427, %v655
        %v2801 = vmul.f32 %v1429, %v657
        %v2802 = vmul.f32 %v1588, %v816
        %v2803 = vmul.f32 %v1590, %v818
        %v2804 = vmul.f32 %v1749, %v977
        %v2805 = vmul.f32 %v1751, %v979
        %v2806 = vmul.f32 %v1910, %v1138
        %v2807 = vmul.f32 %v1912, %v1140
        %v2808 = vmul.f32 %v1433, %v661
        %v2809 = vmul.f32 %v1435, %v663
        %v2810 = vmul.f32 %v1594, %v822
        %v2811 = vmul.f32 %v1596, %v824
        %v2812 = vmul.f32 %v1755, %v983
        %v2813 = vmul.f32 %v1757, %v985
        %v2814 = vmul.f32 %v1916, %v1144
        %v2815 = vmul.f32 %v1918, %v1146
        %v2816 = vmul.f32 %v1439, %v667
        %v2817 = vmul.f32 %v1441, %v669
        %v2818 = vmul.f32 %v1600, %v828
        %v2819 = vmul.f32 %v1602, %v830
        %v2820 = vmul.f32 %v1761, %v989
        %v2821 = vmul.f32 %v1763, %v991
        %v2822 = vmul.f32 %v1922, %v1150
        %v2823 = vmul.f32 %v1924, %v1152
        %v2824 = vmul.f32 %v1445, %v673
        %v2825 = vmul.f32 %v1447, %v675
        %v2826 = vmul.f32 %v1606, %v834
        %v2827 = vmul.f32 %v1608, %v836
        %v2828 = vmul.f32 %v1767, %v995
        %v2829 = vmul.f32 %v1769, %v997
        %v2830 = vmul.f32 %v1928, %v1156
        %v2831 = vmul.f32 %v1930, %v1158
        %v2832 = vld [vmem:[#allocation10] sm:$0xff]
        %v2833 = vld [vmem:[#allocation10 + $0x8] sm:$0xff]
        %v2834 = vld [vmem:[#allocation10 + $0x10] sm:$0xff]
        %v2835 = vld [vmem:[#allocation10 + $0x18] sm:$0xff]
        %v2836 = vld [vmem:[#allocation10 + $0x20] sm:$0xff]
        %v2837 = vld [vmem:[#allocation10 + $0x28] sm:$0xff]
        %v2838 = vld [vmem:[#allocation10 + $0x30] sm:$0xff]
        %v2839 = vld [vmem:[#allocation10 + $0x38] sm:$0xff]
        %v2840 = vld [vmem:[#allocation10 + $0x40] sm:$0xff]
        %v2841 = vld [vmem:[#allocation10 + $0x48] sm:$0xff]
        %v2842 = vld [vmem:[#allocation10 + $0x50] sm:$0xff]
        %v2843 = vld [vmem:[#allocation10 + $0x58] sm:$0xff]
        %v2844 = vld [vmem:[#allocation10 + $0x60] sm:$0xff]
        %v2845 = vld [vmem:[#allocation10 + $0x68] sm:$0xff]
        %v2846 = vld [vmem:[#allocation10 + $0x70] sm:$0xff]
        %v2847 = vld [vmem:[#allocation10 + $0x78] sm:$0xff]
        %v2848 = vld [vmem:[#allocation10 + $0x80] sm:$0xff]
        %v2849 = vld [vmem:[#allocation10 + $0x88] sm:$0xff]
        %v2850 = vld [vmem:[#allocation10 + $0x90] sm:$0xff]
        %v2851 = vld [vmem:[#allocation10 + $0x98] sm:$0xff]
        %v2852 = vld [vmem:[#allocation10 + $0xa0] sm:$0xff]
        %v2853 = vld [vmem:[#allocation10 + $0xa8] sm:$0xff]
        %v2854 = vld [vmem:[#allocation10 + $0xb0] sm:$0xff]
        %v2855 = vld [vmem:[#allocation10 + $0xb8] sm:$0xff]
        %v2856 = vld [vmem:[#allocation10 + $0xc0] sm:$0xff]
        %v2857 = vld [vmem:[#allocation10 + $0xc8] sm:$0xff]
        %v2858 = vld [vmem:[#allocation10 + $0xd0] sm:$0xff]
        %v2859 = vld [vmem:[#allocation10 + $0xd8] sm:$0xff]
        %v2860 = vld [vmem:[#allocation10 + $0xe0] sm:$0xff]
        %v2861 = vld [vmem:[#allocation10 + $0xe8] sm:$0xff]
        %v2862 = vld [vmem:[#allocation10 + $0xf0] sm:$0xff]
        %v2863 = vld [vmem:[#allocation10 + $0xf8] sm:$0xff]
        %v2864 = vld [vmem:[#allocation10 + $0x100] sm:$0xff]
        %v2865 = vld [vmem:[#allocation10 + $0x108] sm:$0xff]
        %v2866 = vld [vmem:[#allocation10 + $0x110] sm:$0xff]
        %v2867 = vld [vmem:[#allocation10 + $0x118] sm:$0xff]
        %v2868 = vld [vmem:[#allocation10 + $0x120] sm:$0xff]
        %v2869 = vld [vmem:[#allocation10 + $0x128] sm:$0xff]
        %v2870 = vld [vmem:[#allocation10 + $0x130] sm:$0xff]
        %v2871 = vld [vmem:[#allocation10 + $0x138] sm:$0xff]
        %v2872 = vld [vmem:[#allocation10 + $0x140] sm:$0xff]
        %v2873 = vld [vmem:[#allocation10 + $0x148] sm:$0xff]
        %v2874 = vld [vmem:[#allocation10 + $0x150] sm:$0xff]
        %v2875 = vld [vmem:[#allocation10 + $0x158] sm:$0xff]
        %v2876 = vld [vmem:[#allocation10 + $0x160] sm:$0xff]
        %v2877 = vld [vmem:[#allocation10 + $0x168] sm:$0xff]
        %v2878 = vld [vmem:[#allocation10 + $0x170] sm:$0xff]
        %v2879 = vld [vmem:[#allocation10 + $0x178] sm:$0xff]
        %v2880 = vld [vmem:[#allocation10 + $0x180] sm:$0xff]
        %v2881 = vld [vmem:[#allocation10 + $0x188] sm:$0xff]
        %v2882 = vld [vmem:[#allocation10 + $0x190] sm:$0xff]
        %v2883 = vld [vmem:[#allocation10 + $0x198] sm:$0xff]
        %v2884 = vld [vmem:[#allocation10 + $0x1a0] sm:$0xff]
        %v2885 = vld [vmem:[#allocation10 + $0x1a8] sm:$0xff]
        %v2886 = vld [vmem:[#allocation10 + $0x1b0] sm:$0xff]
        %v2887 = vld [vmem:[#allocation10 + $0x1b8] sm:$0xff]
        %v2888 = vld [vmem:[#allocation10 + $0x1c0] sm:$0xff]
        %v2889 = vld [vmem:[#allocation10 + $0x1c8] sm:$0xff]
        %v2890 = vld [vmem:[#allocation10 + $0x1d0] sm:$0xff]
        %v2891 = vld [vmem:[#allocation10 + $0x1d8] sm:$0xff]
        %v2892 = vld [vmem:[#allocation10 + $0x1e0] sm:$0xff]
        %v2893 = vld [vmem:[#allocation10 + $0x1e8] sm:$0xff]
        %v2894 = vld [vmem:[#allocation10 + $0x1f0] sm:$0xff]
        %v2895 = vld [vmem:[#allocation10 + $0x1f8] sm:$0xff]
        %v2896 = vld [vmem:[#allocation10 + $0x200] sm:$0xff]
        %v2897 = vld [vmem:[#allocation10 + $0x208] sm:$0xff]
        %v2898 = vld [vmem:[#allocation10 + $0x210] sm:$0xff]
        %v2899 = vld [vmem:[#allocation10 + $0x218] sm:$0xff]
        %v2900 = vld [vmem:[#allocation10 + $0x220] sm:$0xff]
        %v2901 = vld [vmem:[#allocation10 + $0x228] sm:$0xff]
        %v2902 = vld [vmem:[#allocation10 + $0x230] sm:$0xff]
        %v2903 = vld [vmem:[#allocation10 + $0x238] sm:$0xff]
        %v2904 = vld [vmem:[#allocation10 + $0x240] sm:$0xff]
        %v2905 = vld [vmem:[#allocation10 + $0x248] sm:$0xff]
        %v2906 = vld [vmem:[#allocation10 + $0x250] sm:$0xff]
        %v2907 = vld [vmem:[#allocation10 + $0x258] sm:$0xff]
        %v2908 = vld [vmem:[#allocation10 + $0x260] sm:$0xff]
        %v2909 = vld [vmem:[#allocation10 + $0x268] sm:$0xff]
        %v2910 = vld [vmem:[#allocation10 + $0x270] sm:$0xff]
        %v2911 = vld [vmem:[#allocation10 + $0x278] sm:$0xff]
        %v2912 = vld [vmem:[#allocation10 + $0x280] sm:$0xff]
        %v2913 = vld [vmem:[#allocation10 + $0x288] sm:$0xff]
        %v2914 = vld [vmem:[#allocation10 + $0x290] sm:$0xff]
        %v2915 = vld [vmem:[#allocation10 + $0x298] sm:$0xff]
        %v2916 = vld [vmem:[#allocation10 + $0x2a0] sm:$0xff]
        %v2917 = vld [vmem:[#allocation10 + $0x2a8] sm:$0xff]
        %v2918 = vld [vmem:[#allocation10 + $0x2b0] sm:$0xff]
        %v2919 = vld [vmem:[#allocation10 + $0x2b8] sm:$0xff]
        %v2920 = vld [vmem:[#allocation10 + $0x2c0] sm:$0xff]
        %v2921 = vld [vmem:[#allocation10 + $0x2c8] sm:$0xff]
        %v2922 = vld [vmem:[#allocation10 + $0x2d0] sm:$0xff]
        %v2923 = vld [vmem:[#allocation10 + $0x2d8] sm:$0xff]
        %v2924 = vld [vmem:[#allocation10 + $0x2e0] sm:$0xff]
        %v2925 = vld [vmem:[#allocation10 + $0x2e8] sm:$0xff]
        %v2926 = vld [vmem:[#allocation10 + $0x2f0] sm:$0xff]
        %v2927 = vld [vmem:[#allocation10 + $0x2f8] sm:$0xff]
        %v2928 = vld [vmem:[#allocation10 + $0x300] sm:$0xff]
        %v2929 = vld [vmem:[#allocation10 + $0x308] sm:$0xff]
        %v2930 = vld [vmem:[#allocation10 + $0x310] sm:$0xff]
        %v2931 = vld [vmem:[#allocation10 + $0x318] sm:$0xff]
        %v2932 = vld [vmem:[#allocation10 + $0x320] sm:$0xff]
        %v2933 = vld [vmem:[#allocation10 + $0x328] sm:$0xff]
        %v2934 = vld [vmem:[#allocation10 + $0x330] sm:$0xff]
        %v2935 = vld [vmem:[#allocation10 + $0x338] sm:$0xff]
        %v2936 = vld [vmem:[#allocation10 + $0x340] sm:$0xff]
        %v2937 = vld [vmem:[#allocation10 + $0x348] sm:$0xff]
        %v2938 = vld [vmem:[#allocation10 + $0x350] sm:$0xff]
        %v2939 = vld [vmem:[#allocation10 + $0x358] sm:$0xff]
        %v2940 = vld [vmem:[#allocation10 + $0x360] sm:$0xff]
        %v2941 = vld [vmem:[#allocation10 + $0x368] sm:$0xff]
        %v2942 = vld [vmem:[#allocation10 + $0x370] sm:$0xff]
        %v2943 = vld [vmem:[#allocation10 + $0x378] sm:$0xff]
        %v2944 = vld [vmem:[#allocation10 + $0x380] sm:$0xff]
        %v2945 = vld [vmem:[#allocation10 + $0x388] sm:$0xff]
        %v2946 = vld [vmem:[#allocation10 + $0x390] sm:$0xff]
        %v2947 = vld [vmem:[#allocation10 + $0x398] sm:$0xff]
        %v2948 = vld [vmem:[#allocation10 + $0x3a0] sm:$0xff]
        %v2949 = vld [vmem:[#allocation10 + $0x3a8] sm:$0xff]
        %v2950 = vld [vmem:[#allocation10 + $0x3b0] sm:$0xff]
        %v2951 = vld [vmem:[#allocation10 + $0x3b8] sm:$0xff]
        %v2952 = vld [vmem:[#allocation10 + $0x3c0] sm:$0xff]
        %v2953 = vld [vmem:[#allocation10 + $0x3c8] sm:$0xff]
        %v2954 = vld [vmem:[#allocation10 + $0x3d0] sm:$0xff]
        %v2955 = vld [vmem:[#allocation10 + $0x3d8] sm:$0xff]
        %v2956 = vld [vmem:[#allocation10 + $0x3e0] sm:$0xff]
        %v2957 = vld [vmem:[#allocation10 + $0x3e8] sm:$0xff]
        %v2958 = vld [vmem:[#allocation10 + $0x3f0] sm:$0xff]
        %v2959 = vld [vmem:[#allocation10 + $0x3f8] sm:$0xff]
        %v2960 = vmul.f32 %v2127, %v583
        %v2961 = vmul.f32 %v2129, %v585
        %v2962 = vmul.f32 %v2288, %v744
        %v2963 = vmul.f32 %v2290, %v746
        %v2964 = vmul.f32 %v2449, %v905
        %v2965 = vmul.f32 %v2451, %v907
        %v2966 = vmul.f32 %v2610, %v1066
        %v2967 = vmul.f32 %v2612, %v1068
        %v2968 = vmul.f32 %v2133, %v589
        %v2969 = vmul.f32 %v2135, %v591
        %v2970 = vmul.f32 %v2294, %v750
        %v2971 = vmul.f32 %v2296, %v752
        %v2972 = vmul.f32 %v2455, %v911
        %v2973 = vmul.f32 %v2457, %v913
        %v2974 = vmul.f32 %v2616, %v1072
        %v2975 = vmul.f32 %v2618, %v1074
        %v2976 = vmul.f32 %v2139, %v595
        %v2977 = vmul.f32 %v2141, %v597
        %v2978 = vmul.f32 %v2300, %v756
        %v2979 = vmul.f32 %v2302, %v758
        %v2980 = vmul.f32 %v2461, %v917
        %v2981 = vmul.f32 %v2463, %v919
        %v2982 = vmul.f32 %v2622, %v1078
        %v2983 = vmul.f32 %v2624, %v1080
        %v2984 = vmul.f32 %v2145, %v601
        %v2985 = vmul.f32 %v2147, %v603
        %v2986 = vmul.f32 %v2306, %v762
        %v2987 = vmul.f32 %v2308, %v764
        %v2988 = vmul.f32 %v2467, %v923
        %v2989 = vmul.f32 %v2469, %v925
        %v2990 = vmul.f32 %v2628, %v1084
        %v2991 = vmul.f32 %v2630, %v1086
        %v2992 = vmul.f32 %v2151, %v607
        %v2993 = vmul.f32 %v2153, %v609
        %v2994 = vmul.f32 %v2312, %v768
        %v2995 = vmul.f32 %v2314, %v770
        %v2996 = vmul.f32 %v2473, %v929
        %v2997 = vmul.f32 %v2475, %v931
        %v2998 = vmul.f32 %v2634, %v1090
        %v2999 = vmul.f32 %v2636, %v1092
        %v3000 = vmul.f32 %v2157, %v613
        %v3001 = vmul.f32 %v2159, %v615
        %v3002 = vmul.f32 %v2318, %v774
        %v3003 = vmul.f32 %v2320, %v776
        %v3004 = vmul.f32 %v2479, %v935
        %v3005 = vmul.f32 %v2481, %v937
        %v3006 = vmul.f32 %v2640, %v1096
        %v3007 = vmul.f32 %v2642, %v1098
        %v3008 = vmul.f32 %v2163, %v619
        %v3009 = vmul.f32 %v2165, %v621
        %v3010 = vmul.f32 %v2324, %v780
        %v3011 = vmul.f32 %v2326, %v782
        %v3012 = vmul.f32 %v2485, %v941
        %v3013 = vmul.f32 %v2487, %v943
        %v3014 = vmul.f32 %v2646, %v1102
        %v3015 = vmul.f32 %v2648, %v1104
        %v3016 = vmul.f32 %v2169, %v625
        %v3017 = vmul.f32 %v2171, %v627
        %v3018 = vmul.f32 %v2330, %v786
        %v3019 = vmul.f32 %v2332, %v788
        %v3020 = vmul.f32 %v2491, %v947
        %v3021 = vmul.f32 %v2493, %v949
        %v3022 = vmul.f32 %v2652, %v1108
        %v3023 = vmul.f32 %v2654, %v1110
        %v3024 = vmul.f32 %v2175, %v631
        %v3025 = vmul.f32 %v2177, %v633
        %v3026 = vmul.f32 %v2336, %v792
        %v3027 = vmul.f32 %v2338, %v794
        %v3028 = vmul.f32 %v2497, %v953
        %v3029 = vmul.f32 %v2499, %v955
        %v3030 = vmul.f32 %v2658, %v1114
        %v3031 = vmul.f32 %v2660, %v1116
        %v3032 = vmul.f32 %v2181, %v637
        %v3033 = vmul.f32 %v2183, %v639
        %v3034 = vmul.f32 %v2342, %v798
        %v3035 = vmul.f32 %v2344, %v800
        %v3036 = vmul.f32 %v2503, %v959
        %v3037 = vmul.f32 %v2505, %v961
        %v3038 = vmul.f32 %v2664, %v1120
        %v3039 = vmul.f32 %v2666, %v1122
        %v3040 = vmul.f32 %v2187, %v643
        %v3041 = vmul.f32 %v2189, %v645
        %v3042 = vmul.f32 %v2348, %v804
        %v3043 = vmul.f32 %v2350, %v806
        %v3044 = vmul.f32 %v2509, %v965
        %v3045 = vmul.f32 %v2511, %v967
        %v3046 = vmul.f32 %v2670, %v1126
        %v3047 = vmul.f32 %v2672, %v1128
        %v3048 = vmul.f32 %v2193, %v649
        %v3049 = vmul.f32 %v2195, %v651
        %v3050 = vmul.f32 %v2354, %v810
        %v3051 = vmul.f32 %v2356, %v812
        %v3052 = vmul.f32 %v2515, %v971
        %v3053 = vmul.f32 %v2517, %v973
        %v3054 = vmul.f32 %v2676, %v1132
        %v3055 = vmul.f32 %v2678, %v1134
        %v3056 = vmul.f32 %v2199, %v655
        %v3057 = vmul.f32 %v2201, %v657
        %v3058 = vmul.f32 %v2360, %v816
        %v3059 = vmul.f32 %v2362, %v818
        %v3060 = vmul.f32 %v2521, %v977
        %v3061 = vmul.f32 %v2523, %v979
        %v3062 = vmul.f32 %v2682, %v1138
        %v3063 = vmul.f32 %v2684, %v1140
        %v3064 = vmul.f32 %v2205, %v661
        %v3065 = vmul.f32 %v2207, %v663
        %v3066 = vmul.f32 %v2366, %v822
        %v3067 = vmul.f32 %v2368, %v824
        %v3068 = vmul.f32 %v2527, %v983
        %v3069 = vmul.f32 %v2529, %v985
        %v3070 = vmul.f32 %v2688, %v1144
        %v3071 = vmul.f32 %v2690, %v1146
        %v3072 = vmul.f32 %v2211, %v667
        %v3073 = vmul.f32 %v2213, %v669
        %v3074 = vmul.f32 %v2372, %v828
        %v3075 = vmul.f32 %v2374, %v830
        %v3076 = vmul.f32 %v2533, %v989
        %v3077 = vmul.f32 %v2535, %v991
        %v3078 = vmul.f32 %v2694, %v1150
        %v3079 = vmul.f32 %v2696, %v1152
        %v3080 = vmul.f32 %v2217, %v673
        %v3081 = vmul.f32 %v2219, %v675
        %v3082 = vmul.f32 %v2378, %v834
        %v3083 = vmul.f32 %v2380, %v836
        %v3084 = vmul.f32 %v2539, %v995
        %v3085 = vmul.f32 %v2541, %v997
        %v3086 = vmul.f32 %v2700, %v1156
        %v3087 = vmul.f32 %v2702, %v1158
        %v3088 = vld [vmem:[#allocation11] sm:$0xff]
        %v3089 = vld [vmem:[#allocation11 + $0x8] sm:$0xff]
        %v3090 = vld [vmem:[#allocation11 + $0x10] sm:$0xff]
        %v3091 = vld [vmem:[#allocation11 + $0x18] sm:$0xff]
        %v3092 = vld [vmem:[#allocation11 + $0x20] sm:$0xff]
        %v3093 = vld [vmem:[#allocation11 + $0x28] sm:$0xff]
        %v3094 = vld [vmem:[#allocation11 + $0x30] sm:$0xff]
        %v3095 = vld [vmem:[#allocation11 + $0x38] sm:$0xff]
        %v3096 = vld [vmem:[#allocation11 + $0x40] sm:$0xff]
        %v3097 = vld [vmem:[#allocation11 + $0x48] sm:$0xff]
        %v3098 = vld [vmem:[#allocation11 + $0x50] sm:$0xff]
        %v3099 = vld [vmem:[#allocation11 + $0x58] sm:$0xff]
        %v3100 = vld [vmem:[#allocation11 + $0x60] sm:$0xff]
        %v3101 = vld [vmem:[#allocation11 + $0x68] sm:$0xff]
        %v3102 = vld [vmem:[#allocation11 + $0x70] sm:$0xff]
        %v3103 = vld [vmem:[#allocation11 + $0x78] sm:$0xff]
        %v3104 = vld [vmem:[#allocation11 + $0x80] sm:$0xff]
        %v3105 = vld [vmem:[#allocation11 + $0x88] sm:$0xff]
        %v3106 = vld [vmem:[#allocation11 + $0x90] sm:$0xff]
        %v3107 = vld [vmem:[#allocation11 + $0x98] sm:$0xff]
        %v3108 = vld [vmem:[#allocation11 + $0xa0] sm:$0xff]
        %v3109 = vld [vmem:[#allocation11 + $0xa8] sm:$0xff]
        %v3110 = vld [vmem:[#allocation11 + $0xb0] sm:$0xff]
        %v3111 = vld [vmem:[#allocation11 + $0xb8] sm:$0xff]
        %v3112 = vld [vmem:[#allocation11 + $0xc0] sm:$0xff]
        %v3113 = vld [vmem:[#allocation11 + $0xc8] sm:$0xff]
        %v3114 = vld [vmem:[#allocation11 + $0xd0] sm:$0xff]
        %v3115 = vld [vmem:[#allocation11 + $0xd8] sm:$0xff]
        %v3116 = vld [vmem:[#allocation11 + $0xe0] sm:$0xff]
        %v3117 = vld [vmem:[#allocation11 + $0xe8] sm:$0xff]
        %v3118 = vld [vmem:[#allocation11 + $0xf0] sm:$0xff]
        %v3119 = vld [vmem:[#allocation11 + $0xf8] sm:$0xff]
        %v3120 = vld [vmem:[#allocation11 + $0x100] sm:$0xff]
        %v3121 = vld [vmem:[#allocation11 + $0x108] sm:$0xff]
        %v3122 = vld [vmem:[#allocation11 + $0x110] sm:$0xff]
        %v3123 = vld [vmem:[#allocation11 + $0x118] sm:$0xff]
        %v3124 = vld [vmem:[#allocation11 + $0x120] sm:$0xff]
        %v3125 = vld [vmem:[#allocation11 + $0x128] sm:$0xff]
        %v3126 = vld [vmem:[#allocation11 + $0x130] sm:$0xff]
        %v3127 = vld [vmem:[#allocation11 + $0x138] sm:$0xff]
        %v3128 = vld [vmem:[#allocation11 + $0x140] sm:$0xff]
        %v3129 = vld [vmem:[#allocation11 + $0x148] sm:$0xff]
        %v3130 = vld [vmem:[#allocation11 + $0x150] sm:$0xff]
        %v3131 = vld [vmem:[#allocation11 + $0x158] sm:$0xff]
        %v3132 = vld [vmem:[#allocation11 + $0x160] sm:$0xff]
        %v3133 = vld [vmem:[#allocation11 + $0x168] sm:$0xff]
        %v3134 = vld [vmem:[#allocation11 + $0x170] sm:$0xff]
        %v3135 = vld [vmem:[#allocation11 + $0x178] sm:$0xff]
        %v3136 = vld [vmem:[#allocation11 + $0x180] sm:$0xff]
        %v3137 = vld [vmem:[#allocation11 + $0x188] sm:$0xff]
        %v3138 = vld [vmem:[#allocation11 + $0x190] sm:$0xff]
        %v3139 = vld [vmem:[#allocation11 + $0x198] sm:$0xff]
        %v3140 = vld [vmem:[#allocation11 + $0x1a0] sm:$0xff]
        %v3141 = vld [vmem:[#allocation11 + $0x1a8] sm:$0xff]
        %v3142 = vld [vmem:[#allocation11 + $0x1b0] sm:$0xff]
        %v3143 = vld [vmem:[#allocation11 + $0x1b8] sm:$0xff]
        %v3144 = vld [vmem:[#allocation11 + $0x1c0] sm:$0xff]
        %v3145 = vld [vmem:[#allocation11 + $0x1c8] sm:$0xff]
        %v3146 = vld [vmem:[#allocation11 + $0x1d0] sm:$0xff]
        %v3147 = vld [vmem:[#allocation11 + $0x1d8] sm:$0xff]
        %v3148 = vld [vmem:[#allocation11 + $0x1e0] sm:$0xff]
        %v3149 = vld [vmem:[#allocation11 + $0x1e8] sm:$0xff]
        %v3150 = vld [vmem:[#allocation11 + $0x1f0] sm:$0xff]
        %v3151 = vld [vmem:[#allocation11 + $0x1f8] sm:$0xff]
        %v3152 = vld [vmem:[#allocation11 + $0x200] sm:$0xff]
        %v3153 = vld [vmem:[#allocation11 + $0x208] sm:$0xff]
        %v3154 = vld [vmem:[#allocation11 + $0x210] sm:$0xff]
        %v3155 = vld [vmem:[#allocation11 + $0x218] sm:$0xff]
        %v3156 = vld [vmem:[#allocation11 + $0x220] sm:$0xff]
        %v3157 = vld [vmem:[#allocation11 + $0x228] sm:$0xff]
        %v3158 = vld [vmem:[#allocation11 + $0x230] sm:$0xff]
        %v3159 = vld [vmem:[#allocation11 + $0x238] sm:$0xff]
        %v3160 = vld [vmem:[#allocation11 + $0x240] sm:$0xff]
        %v3161 = vld [vmem:[#allocation11 + $0x248] sm:$0xff]
        %v3162 = vld [vmem:[#allocation11 + $0x250] sm:$0xff]
        %v3163 = vld [vmem:[#allocation11 + $0x258] sm:$0xff]
        %v3164 = vld [vmem:[#allocation11 + $0x260] sm:$0xff]
        %v3165 = vld [vmem:[#allocation11 + $0x268] sm:$0xff]
        %v3166 = vld [vmem:[#allocation11 + $0x270] sm:$0xff]
        %v3167 = vld [vmem:[#allocation11 + $0x278] sm:$0xff]
        %v3168 = vld [vmem:[#allocation11 + $0x280] sm:$0xff]
        %v3169 = vld [vmem:[#allocation11 + $0x288] sm:$0xff]
        %v3170 = vld [vmem:[#allocation11 + $0x290] sm:$0xff]
        %v3171 = vld [vmem:[#allocation11 + $0x298] sm:$0xff]
        %v3172 = vld [vmem:[#allocation11 + $0x2a0] sm:$0xff]
        %v3173 = vld [vmem:[#allocation11 + $0x2a8] sm:$0xff]
        %v3174 = vld [vmem:[#allocation11 + $0x2b0] sm:$0xff]
        %v3175 = vld [vmem:[#allocation11 + $0x2b8] sm:$0xff]
        %v3176 = vld [vmem:[#allocation11 + $0x2c0] sm:$0xff]
        %v3177 = vld [vmem:[#allocation11 + $0x2c8] sm:$0xff]
        %v3178 = vld [vmem:[#allocation11 + $0x2d0] sm:$0xff]
        %v3179 = vld [vmem:[#allocation11 + $0x2d8] sm:$0xff]
        %v3180 = vld [vmem:[#allocation11 + $0x2e0] sm:$0xff]
        %v3181 = vld [vmem:[#allocation11 + $0x2e8] sm:$0xff]
        %v3182 = vld [vmem:[#allocation11 + $0x2f0] sm:$0xff]
        %v3183 = vld [vmem:[#allocation11 + $0x2f8] sm:$0xff]
        %v3184 = vld [vmem:[#allocation11 + $0x300] sm:$0xff]
        %v3185 = vld [vmem:[#allocation11 + $0x308] sm:$0xff]
        %v3186 = vld [vmem:[#allocation11 + $0x310] sm:$0xff]
        %v3187 = vld [vmem:[#allocation11 + $0x318] sm:$0xff]
        %v3188 = vld [vmem:[#allocation11 + $0x320] sm:$0xff]
        %v3189 = vld [vmem:[#allocation11 + $0x328] sm:$0xff]
        %v3190 = vld [vmem:[#allocation11 + $0x330] sm:$0xff]
        %v3191 = vld [vmem:[#allocation11 + $0x338] sm:$0xff]
        %v3192 = vld [vmem:[#allocation11 + $0x340] sm:$0xff]
        %v3193 = vld [vmem:[#allocation11 + $0x348] sm:$0xff]
        %v3194 = vld [vmem:[#allocation11 + $0x350] sm:$0xff]
        %v3195 = vld [vmem:[#allocation11 + $0x358] sm:$0xff]
        %v3196 = vld [vmem:[#allocation11 + $0x360] sm:$0xff]
        %v3197 = vld [vmem:[#allocation11 + $0x368] sm:$0xff]
        %v3198 = vld [vmem:[#allocation11 + $0x370] sm:$0xff]
        %v3199 = vld [vmem:[#allocation11 + $0x378] sm:$0xff]
        %v3200 = vld [vmem:[#allocation11 + $0x380] sm:$0xff]
        %v3201 = vld [vmem:[#allocation11 + $0x388] sm:$0xff]
        %v3202 = vld [vmem:[#allocation11 + $0x390] sm:$0xff]
        %v3203 = vld [vmem:[#allocation11 + $0x398] sm:$0xff]
        %v3204 = vld [vmem:[#allocation11 + $0x3a0] sm:$0xff]
        %v3205 = vld [vmem:[#allocation11 + $0x3a8] sm:$0xff]
        %v3206 = vld [vmem:[#allocation11 + $0x3b0] sm:$0xff]
        %v3207 = vld [vmem:[#allocation11 + $0x3b8] sm:$0xff]
        %v3208 = vld [vmem:[#allocation11 + $0x3c0] sm:$0xff]
        %v3209 = vld [vmem:[#allocation11 + $0x3c8] sm:$0xff]
        %v3210 = vld [vmem:[#allocation11 + $0x3d0] sm:$0xff]
        %v3211 = vld [vmem:[#allocation11 + $0x3d8] sm:$0xff]
        %v3212 = vld [vmem:[#allocation11 + $0x3e0] sm:$0xff]
        %v3213 = vld [vmem:[#allocation11 + $0x3e8] sm:$0xff]
        %v3214 = vld [vmem:[#allocation11 + $0x3f0] sm:$0xff]
        %v3215 = vld [vmem:[#allocation11 + $0x3f8] sm:$0xff]
        %3216 = vmatprep.subr.mxu0 0.0
        %3217 = vmatpush1.msra.mxu0 %v3088
        %3218 = vmatprep.subr.mxu0 0.0
        %3219 = vmatpush1.msra.mxu0 %v3089
        %3220 = vmatprep.subr.mxu0 0.0
        %3221 = vmatpush1.msra.mxu0 %v3090
        %3222 = vmatprep.subr.mxu0 0.0
        %3223 = vmatpush1.msra.mxu0 %v3091
        %3224 = vmatprep.subr.mxu0 0.0
        %3225 = vmatpush1.msra.mxu0 %v3092
        %3226 = vmatprep.subr.mxu0 0.0
        %3227 = vmatpush1.msra.mxu0 %v3093
        %3228 = vmatprep.subr.mxu0 0.0
        %3229 = vmatpush1.msra.mxu0 %v3094
        %3230 = vmatprep.subr.mxu0 0.0
        %3231 = vmatpush1.msra.mxu0 %v3095
        %3232 = vmatprep.subr.mxu0 0.0
        %3233 = vmatpush1.msra.mxu0 %v3096
        %3234 = vmatprep.subr.mxu0 0.0
        %3235 = vmatpush1.msra.mxu0 %v3097
        %3236 = vmatprep.subr.mxu0 0.0
        %3237 = vmatpush1.msra.mxu0 %v3098
        %3238 = vmatprep.subr.mxu0 0.0
        %3239 = vmatpush1.msra.mxu0 %v3099
        %3240 = vmatprep.subr.mxu0 0.0
        %3241 = vmatpush1.msra.mxu0 %v3100
        %3242 = vmatprep.subr.mxu0 0.0
        %3243 = vmatpush1.msra.mxu0 %v3101
        %3244 = vmatprep.subr.mxu0 0.0
        %3245 = vmatpush1.msra.mxu0 %v3102
        %3246 = vmatprep.subr.mxu0 0.0
        %3247 = vmatpush1.msra.mxu0 %v3103
        %3248 = vmatprep.subr.mxu0 0.0
        %3249 = vmatpush1.msra.mxu0 %v3104
        %3250 = vmatprep.subr.mxu0 0.0
        %3251 = vmatpush1.msra.mxu0 %v3105
        %3252 = vmatprep.subr.mxu0 0.0
        %3253 = vmatpush1.msra.mxu0 %v3106
        %3254 = vmatprep.subr.mxu0 0.0
        %3255 = vmatpush1.msra.mxu0 %v3107
        %3256 = vmatprep.subr.mxu0 0.0
        %3257 = vmatpush1.msra.mxu0 %v3108
        %3258 = vmatprep.subr.mxu0 0.0
        %3259 = vmatpush1.msra.mxu0 %v3109
        %3260 = vmatprep.subr.mxu0 0.0
        %3261 = vmatpush1.msra.mxu0 %v3110
        %3262 = vmatprep.subr.mxu0 0.0
        %3263 = vmatpush1.msra.mxu0 %v3111
        %3264 = vmatprep.subr.mxu0 0.0
        %3265 = vmatpush1.msra.mxu0 %v3112
        %3266 = vmatprep.subr.mxu0 0.0
        %3267 = vmatpush1.msra.mxu0 %v3113
        %3268 = vmatprep.subr.mxu0 0.0
        %3269 = vmatpush1.msra.mxu0 %v3114
        %3270 = vmatprep.subr.mxu0 0.0
        %3271 = vmatpush1.msra.mxu0 %v3115
        %3272 = vmatprep.subr.mxu0 0.0
        %3273 = vmatpush1.msra.mxu0 %v3116
        %3274 = vmatprep.subr.mxu0 0.0
        %3275 = vmatpush1.msra.mxu0 %v3117
        %3276 = vmatprep.subr.mxu0 0.0
        %3277 = vmatpush1.msra.mxu0 %v3118
        %3278 = vmatprep.subr.mxu0 0.0
        %3279 = vmatpush1.msra.mxu0 %v3119
        %3280 = vmatprep.mubr.f32.mxu0 %v2961
        %3281 = vmatmul.mubr.f32.gmra.mrb[0].mxu0 %v2960
        %v3282 = vpop.f32.mrb[0].mxu0
        %v3283 = vadd.f32 0.0, %v3282
        %v3284 = vpop.f32.mrb[0].mxu0
        %3285 = vmatprep.mubr.f32.mxu0 %v2969
        %3286 = vmatmul.mubr.f32.gmra.mrb[0].mxu0 %v2968
        %v3287 = vpop.f32.mrb[0].mxu0
        %v3288 = vadd.f32 0.0, %v3287
        %v3289 = vpop.f32.mrb[0].mxu0
        %3290 = vmatprep.mubr.f32.mxu0 %v2977
        %3291 = vmatmul.mubr.f32.gmra.mrb[0].mxu0 %v2976
        %v3292 = vpop.f32.mrb[0].mxu0
        %v3293 = vadd.f32 0.0, %v3292
        %v3294 = vpop.f32.mrb[0].mxu0
        %3295 = vmatprep.mubr.f32.mxu0 %v2985
        %3296 = vmatmul.mubr.f32.gmra.mrb[0].mxu0 %v2984
        %v3297 = vpop.f32.mrb[0].mxu0
        %v3298 = vadd.f32 0.0, %v3297
        %v3299 = vpop.f32.mrb[0].mxu0
        %3300 = vmatprep.mubr.f32.mxu0 %v2993
        %3301 = vmatmul.mubr.f32.gmra.mrb[0].mxu0 %v2992
        %v3302 = vpop.f32.mrb[0].mxu0
        %v3303 = vadd.f32 0.0, %v3302
        %v3304 = vpop.f32.mrb[0].mxu0
        %3305 = vmatprep.mubr.f32.mxu0 %v3001
        %3306 = vmatmul.mubr.f32.gmra.mrb[0].mxu0 %v3000
        %v3307 = vpop.f32.mrb[0].mxu0
        %v3308 = vadd.f32 0.0, %v3307
        %v3309 = vpop.f32.mrb[0].mxu0
        %3310 = vmatprep.mubr.f32.mxu0 %v3009
        %3311 = vmatmul.mubr.f32.gmra.mrb[0].mxu0 %v3008
        %v3312 = vpop.f32.mrb[0].mxu0
        %v3313 = vadd.f32 0.0, %v3312
        %v3314 = vpop.f32.mrb[0].mxu0
        %3315 = vmatprep.mubr.f32.mxu0 %v3017
        %3316 = vmatmul.mubr.f32.gmra.mrb[0].mxu0 %v3016
        %v3317 = vpop.f32.mrb[0].mxu0
        %v3318 = vadd.f32 0.0, %v3317
        %v3319 = vpop.f32.mrb[0].mxu0
        %3320 = vmatprep.mubr.f32.mxu0 %v3025
        %3321 = vmatmul.mubr.f32.gmra.mrb[0].mxu0 %v3024
        %v3322 = vpop.f32.mrb[0].mxu0
        %v3323 = vadd.f32 0.0, %v3322
        %v3324 = vpop.f32.mrb[0].mxu0
        %3325 = vmatprep.mubr.f32.mxu0 %v3033
        %3326 = vmatmul.mubr.f32.gmra.mrb[0].mxu0 %v3032
        %v3327 = vpop.f32.mrb[0].mxu0
        %v3328 = vadd.f32 0.0, %v3327
        %v3329 = vpop.f32.mrb[0].mxu0
        %3330 = vmatprep.mubr.f32.mxu0 %v3041
        %3331 = vmatmul.mubr.f32.gmra.mrb[0].mxu0 %v3040
        %v3332 = vpop.f32.mrb[0].mxu0
        %v3333 = vadd.f32 0.0, %v3332
        %v3334 = vpop.f32.mrb[0].mxu0
        %3335 = vmatprep.mubr.f32.mxu0 %v3049
        %3336 = vmatmul.mubr.f32.gmra.mrb[0].mxu0 %v3048
        %v3337 = vpop.f32.mrb[0].mxu0
        %v3338 = vadd.f32 0.0, %v3337
        %v3339 = vpop.f32.mrb[0].mxu0
        %3340 = vmatprep.mubr.f32.mxu0 %v3057
        %3341 = vmatmul.mubr.f32.gmra.mrb[0].mxu0 %v3056
        %v3342 = vpop.f32.mrb[0].mxu0
        %v3343 = vadd.f32 0.0, %v3342
        %v3344 = vpop.f32.mrb[0].mxu0
        %3345 = vmatprep.mubr.f32.mxu0 %v3065
        %3346 = vmatmul.mubr.f32.gmra.mrb[0].mxu0 %v3064
        %v3347 = vpop.f32.mrb[0].mxu0
        %v3348 = vadd.f32 0.0, %v3347
        %v3349 = vpop.f32.mrb[0].mxu0
        %3350 = vmatprep.mubr.f32.mxu0 %v3073
        %3351 = vmatmul.mubr.f32.gmra.mrb[0].mxu0 %v3072
        %v3352 = vpop.f32.mrb[0].mxu0
        %v3353 = vadd.f32 0.0, %v3352
        %v3354 = vpop.f32.mrb[0].mxu0
        %3355 = vmatprep.mubr.f32.mxu0 %v3081
        %3356 = vmatmul.mubr.f32.gmra.mrb[0].mxu0 %v3080
        %v3357 = vpop.f32.mrb[0].mxu0
        %v3358 = vadd.f32 0.0, %v3357
        %v3359 = vpop.f32.mrb[0].mxu0
        %3360 = vdwg.mxu0
        %3361 = vmatprep.subr.mxu0 0.0
        %3362 = vmatpush1.msra.mxu0 %v3120
        %3363 = vmatprep.subr.mxu0 0.0
        %3364 = vmatpush1.msra.mxu0 %v3121
        %3365 = vmatprep.subr.mxu0 0.0
        %3366 = vmatpush1.msra.mxu0 %v3122
        %3367 = vmatprep.subr.mxu0 0.0
        %3368 = vmatpush1.msra.mxu0 %v3123
        %3369 = vmatprep.subr.mxu0 0.0
        %3370 = vmatpush1.msra.mxu0 %v3124
        %3371 = vmatprep.subr.mxu0 0.0
        %3372 = vmatpush1.msra.mxu0 %v3125
        %3373 = vmatprep.subr.mxu0 0.0
        %3374 = vmatpush1.msra.mxu0 %v3126
        %3375 = vmatprep.subr.mxu0 0.0
        %3376 = vmatpush1.msra.mxu0 %v3127
        %3377 = vmatprep.subr.mxu0 0.0
        %3378 = vmatpush1.msra.mxu0 %v3128
        %3379 = vmatprep.subr.mxu0 0.0
        %3380 = vmatpush1.msra.mxu0 %v3129
        %3381 = vmatprep.subr.mxu0 0.0
        %3382 = vmatpush1.msra.mxu0 %v3130
        %3383 = vmatprep.subr.mxu0 0.0
        %3384 = vmatpush1.msra.mxu0 %v3131
        %3385 = vmatprep.subr.mxu0 0.0
        %3386 = vmatpush1.msra.mxu0 %v3132
        %3387 = vmatprep.subr.mxu0 0.0
        %3388 = vmatpush1.msra.mxu0 %v3133
        %3389 = vmatprep.subr.mxu0 0.0
        %3390 = vmatpush1.msra.mxu0 %v3134
        %3391 = vmatprep.subr.mxu0 0.0
        %3392 = vmatpush1.msra.mxu0 %v3135
        %3393 = vmatprep.subr.mxu0 0.0
        %3394 = vmatpush1.msra.mxu0 %v3136
        %3395 = vmatprep.subr.mxu0 0.0
        %3396 = vmatpush1.msra.mxu0 %v3137
        %3397 = vmatprep.subr.mxu0 0.0
        %3398 = vmatpush1.msra.mxu0 %v3138
        %3399 = vmatprep.subr.mxu0 0.0
        %3400 = vmatpush1.msra.mxu0 %v3139
        %3401 = vmatprep.subr.mxu0 0.0
        %3402 = vmatpush1.msra.mxu0 %v3140
        %3403 = vmatprep.subr.mxu0 0.0
        %3404 = vmatpush1.msra.mxu0 %v3141
        %3405 = vmatprep.subr.mxu0 0.0
        %3406 = vmatpush1.msra.mxu0 %v3142
        %3407 = vmatprep.subr.mxu0 0.0
        %3408 = vmatpush1.msra.mxu0 %v3143
        %3409 = vmatprep.subr.mxu0 0.0
        %3410 = vmatpush1.msra.mxu0 %v3144
        %3411 = vmatprep.subr.mxu0 0.0
        %3412 = vmatpush1.msra.mxu0 %v3145
        %3413 = vmatprep.subr.mxu0 0.0
        %3414 = vmatpush1.msra.mxu0 %v3146
        %3415 = vmatprep.subr.mxu0 0.0
        %3416 = vmatpush1.msra.mxu0 %v3147
        %3417 = vmatprep.subr.mxu0 0.0
        %3418 = vmatpush1.msra.mxu0 %v3148
        %3419 = vmatprep.subr.mxu0 0.0
        %3420 = vmatpush1.msra.mxu0 %v3149
        %3421 = vmatprep.subr.mxu0 0.0
        %3422 = vmatpush1.msra.mxu0 %v3150
        %3423 = vmatprep.subr.mxu0 0.0
        %3424 = vmatpush1.msra.mxu0 %v3151
        %3425 = vmatprep.mubr.f32.mxu0 %v2963
        %3426 = vmatmul.mubr.f32.gmra.mrb[0].mxu0 %v2962
        %v3427 = vpop.f32.mrb[0].mxu0
        %v3428 = vadd.f32 %v3283, %v3427
        %v3429 = vpop.f32.mrb[0].mxu0
        %3430 = vmatprep.mubr.f32.mxu0 %v2971
        %3431 = vmatmul.mubr.f32.gmra.mrb[0].mxu0 %v2970
        %v3432 = vpop.f32.mrb[0].mxu0
        %v3433 = vadd.f32 %v3288, %v3432
        %v3434 = vpop.f32.mrb[0].mxu0
        %3435 = vmatprep.mubr.f32.mxu0 %v2979
        %3436 = vmatmul.mubr.f32.gmra.mrb[0].mxu0 %v2978
        %v3437 = vpop.f32.mrb[0].mxu0
        %v3438 = vadd.f32 %v3293, %v3437
        %v3439 = vpop.f32.mrb[0].mxu0
        %3440 = vmatprep.mubr.f32.mxu0 %v2987
        %3441 = vmatmul.mubr.f32.gmra.mrb[0].mxu0 %v2986
        %v3442 = vpop.f32.mrb[0].mxu0
        %v3443 = vadd.f32 %v3298, %v3442
        %v3444 = vpop.f32.mrb[0].mxu0
        %3445 = vmatprep.mubr.f32.mxu0 %v2995
        %3446 = vmatmul.mubr.f32.gmra.mrb[0].mxu0 %v2994
        %v3447 = vpop.f32.mrb[0].mxu0
        %v3448 = vadd.f32 %v3303, %v3447
        %v3449 = vpop.f32.mrb[0].mxu0
        %3450 = vmatprep.mubr.f32.mxu0 %v3003
        %3451 = vmatmul.mubr.f32.gmra.mrb[0].mxu0 %v3002
        %v3452 = vpop.f32.mrb[0].mxu0
        %v3453 = vadd.f32 %v3308, %v3452
        %v3454 = vpop.f32.mrb[0].mxu0
        %3455 = vmatprep.mubr.f32.mxu0 %v3011
        %3456 = vmatmul.mubr.f32.gmra.mrb[0].mxu0 %v3010
        %v3457 = vpop.f32.mrb[0].mxu0
        %v3458 = vadd.f32 %v3313, %v3457
        %v3459 = vpop.f32.mrb[0].mxu0
        %3460 = vmatprep.mubr.f32.mxu0 %v3019
        %3461 = vmatmul.mubr.f32.gmra.mrb[0].mxu0 %v3018
        %v3462 = vpop.f32.mrb[0].mxu0
        %v3463 = vadd.f32 %v3318, %v3462
        %v3464 = vpop.f32.mrb[0].mxu0
        %3465 = vmatprep.mubr.f32.mxu0 %v3027
        %3466 = vmatmul.mubr.f32.gmra.mrb[0].mxu0 %v3026
        %v3467 = vpop.f32.mrb[0].mxu0
        %v3468 = vadd.f32 %v3323, %v3467
        %v3469 = vpop.f32.mrb[0].mxu0
        %3470 = vmatprep.mubr.f32.mxu0 %v3035
        %3471 = vmatmul.mubr.f32.gmra.mrb[0].mxu0 %v3034
        %v3472 = vpop.f32.mrb[0].mxu0
        %v3473 = vadd.f32 %v3328, %v3472
        %v3474 = vpop.f32.mrb[0].mxu0
        %3475 = vmatprep.mubr.f32.mxu0 %v3043
        %3476 = vmatmul.mubr.f32.gmra.mrb[0].mxu0 %v3042
        %v3477 = vpop.f32.mrb[0].mxu0
        %v3478 = vadd.f32 %v3333, %v3477
        %v3479 = vpop.f32.mrb[0].mxu0
        %3480 = vmatprep.mubr.f32.mxu0 %v3051
        %3481 = vmatmul.mubr.f32.gmra.mrb[0].mxu0 %v3050
        %v3482 = vpop.f32.mrb[0].mxu0
        %v3483 = vadd.f32 %v3338, %v3482
        %v3484 = vpop.f32.mrb[0].mxu0
        %3485 = vmatprep.mubr.f32.mxu0 %v3059
        %3486 = vmatmul.mubr.f32.gmra.mrb[0].mxu0 %v3058
        %v3487 = vpop.f32.mrb[0].mxu0
        %v3488 = vadd.f32 %v3343, %v3487
        %v3489 = vpop.f32.mrb[0].mxu0
        %3490 = vmatprep.mubr.f32.mxu0 %v3067
        %3491 = vmatmul.mubr.f32.gmra.mrb[0].mxu0 %v3066
        %v3492 = vpop.f32.mrb[0].mxu0
        %v3493 = vadd.f32 %v3348, %v3492
        %v3494 = vpop.f32.mrb[0].mxu0
        %3495 = vmatprep.mubr.f32.mxu0 %v3075
        %3496 = vmatmul.mubr.f32.gmra.mrb[0].mxu0 %v3074
        %v3497 = vpop.f32.mrb[0].mxu0
        %v3498 = vadd.f32 %v3353, %v3497
        %v3499 = vpop.f32.mrb[0].mxu0
        %3500 = vmatprep.mubr.f32.mxu0 %v3083
        %3501 = vmatmul.mubr.f32.gmra.mrb[0].mxu0 %v3082
        %v3502 = vpop.f32.mrb[0].mxu0
        %v3503 = vadd.f32 %v3358, %v3502
        %v3504 = vpop.f32.mrb[0].mxu0
        %3505 = vdwg.mxu0
        %3506 = vmatprep.subr.mxu0 0.0
        %3507 = vmatpush1.msra.mxu0 %v3152
        %3508 = vmatprep.subr.mxu0 0.0
        %3509 = vmatpush1.msra.mxu0 %v3153
        %3510 = vmatprep.subr.mxu0 0.0
        %3511 = vmatpush1.msra.mxu0 %v3154
        %3512 = vmatprep.subr.mxu0 0.0
        %3513 = vmatpush1.msra.mxu0 %v3155
        %3514 = vmatprep.subr.mxu0 0.0
        %3515 = vmatpush1.msra.mxu0 %v3156
        %3516 = vmatprep.subr.mxu0 0.0
        %3517 = vmatpush1.msra.mxu0 %v3157
        %3518 = vmatprep.subr.mxu0 0.0
        %3519 = vmatpush1.msra.mxu0 %v3158
        %3520 = vmatprep.subr.mxu0 0.0
        %3521 = vmatpush1.msra.mxu0 %v3159
        %3522 = vmatprep.subr.mxu0 0.0
        %3523 = vmatpush1.msra.mxu0 %v3160
        %3524 = vmatprep.subr.mxu0 0.0
        %3525 = vmatpush1.msra.mxu0 %v3161
        %3526 = vmatprep.subr.mxu0 0.0
        %3527 = vmatpush1.msra.mxu0 %v3162
        %3528 = vmatprep.subr.mxu0 0.0
        %3529 = vmatpush1.msra.mxu0 %v3163
        %3530 = vmatprep.subr.mxu0 0.0
        %3531 = vmatpush1.msra.mxu0 %v3164
        %3532 = vmatprep.subr.mxu0 0.0
        %3533 = vmatpush1.msra.mxu0 %v3165
        %3534 = vmatprep.subr.mxu0 0.0
        %3535 = vmatpush1.msra.mxu0 %v3166
        %3536 = vmatprep.subr.mxu0 0.0
        %3537 = vmatpush1.msra.mxu0 %v3167
        %3538 = vmatprep.subr.mxu0 0.0
        %3539 = vmatpush1.msra.mxu0 %v3168
        %3540 = vmatprep.subr.mxu0 0.0
        %3541 = vmatpush1.msra.mxu0 %v3169
        %3542 = vmatprep.subr.mxu0 0.0
        %3543 = vmatpush1.msra.mxu0 %v3170
        %3544 = vmatprep.subr.mxu0 0.0
        %3545 = vmatpush1.msra.mxu0 %v3171
        %3546 = vmatprep.subr.mxu0 0.0
        %3547 = vmatpush1.msra.mxu0 %v3172
        %3548 = vmatprep.subr.mxu0 0.0
        %3549 = vmatpush1.msra.mxu0 %v3173
        %3550 = vmatprep.subr.mxu0 0.0
        %3551 = vmatpush1.msra.mxu0 %v3174
        %3552 = vmatprep.subr.mxu0 0.0
        %3553 = vmatpush1.msra.mxu0 %v3175
        %3554 = vmatprep.subr.mxu0 0.0
        %3555 = vmatpush1.msra.mxu0 %v3176
        %3556 = vmatprep.subr.mxu0 0.0
        %3557 = vmatpush1.msra.mxu0 %v3177
        %3558 = vmatprep.subr.mxu0 0.0
        %3559 = vmatpush1.msra.mxu0 %v3178
        %3560 = vmatprep.subr.mxu0 0.0
        %3561 = vmatpush1.msra.mxu0 %v3179
        %3562 = vmatprep.subr.mxu0 0.0
        %3563 = vmatpush1.msra.mxu0 %v3180
        %3564 = vmatprep.subr.mxu0 0.0
        %3565 = vmatpush1.msra.mxu0 %v3181
        %3566 = vmatprep.subr.mxu0 0.0
        %3567 = vmatpush1.msra.mxu0 %v3182
        %3568 = vmatprep.subr.mxu0 0.0
        %3569 = vmatpush1.msra.mxu0 %v3183
        %3570 = vmatprep.mubr.f32.mxu0 %v2965
        %3571 = vmatmul.mubr.f32.gmra.mrb[0].mxu0 %v2964
        %v3572 = vpop.f32.mrb[0].mxu0
        %v3573 = vadd.f32 %v3428, %v3572
        %v3574 = vpop.f32.mrb[0].mxu0
        %3575 = vmatprep.mubr.f32.mxu0 %v2973
        %3576 = vmatmul.mubr.f32.gmra.mrb[0].mxu0 %v2972
        %v3577 = vpop.f32.mrb[0].mxu0
        %v3578 = vadd.f32 %v3433, %v3577
        %v3579 = vpop.f32.mrb[0].mxu0
        %3580 = vmatprep.mubr.f32.mxu0 %v2981
        %3581 = vmatmul.mubr.f32.gmra.mrb[0].mxu0 %v2980
        %v3582 = vpop.f32.mrb[0].mxu0
        %v3583 = vadd.f32 %v3438, %v3582
        %v3584 = vpop.f32.mrb[0].mxu0
        %3585 = vmatprep.mubr.f32.mxu0 %v2989
        %3586 = vmatmul.mubr.f32.gmra.mrb[0].mxu0 %v2988
        %v3587 = vpop.f32.mrb[0].mxu0
        %v3588 = vadd.f32 %v3443, %v3587
        %v3589 = vpop.f32.mrb[0].mxu0
        %3590 = vmatprep.mubr.f32.mxu0 %v2997
        %3591 = vmatmul.mubr.f32.gmra.mrb[0].mxu0 %v2996
        %v3592 = vpop.f32.mrb[0].mxu0
        %v3593 = vadd.f32 %v3448, %v3592
        %v3594 = vpop.f32.mrb[0].mxu0
        %3595 = vmatprep.mubr.f32.mxu0 %v3005
        %3596 = vmatmul.mubr.f32.gmra.mrb[0].mxu0 %v3004
        %v3597 = vpop.f32.mrb[0].mxu0
        %v3598 = vadd.f32 %v3453, %v3597
        %v3599 = vpop.f32.mrb[0].mxu0
        %3600 = vmatprep.mubr.f32.mxu0 %v3013
        %3601 = vmatmul.mubr.f32.gmra.mrb[0].mxu0 %v3012
        %v3602 = vpop.f32.mrb[0].mxu0
        %v3603 = vadd.f32 %v3458, %v3602
        %v3604 = vpop.f32.mrb[0].mxu0
        %3605 = vmatprep.mubr.f32.mxu0 %v3021
        %3606 = vmatmul.mubr.f32.gmra.mrb[0].mxu0 %v3020
        %v3607 = vpop.f32.mrb[0].mxu0
        %v3608 = vadd.f32 %v3463, %v3607
        %v3609 = vpop.f32.mrb[0].mxu0
        %3610 = vmatprep.mubr.f32.mxu0 %v3029
        %3611 = vmatmul.mubr.f32.gmra.mrb[0].mxu0 %v3028
        %v3612 = vpop.f32.mrb[0].mxu0
        %v3613 = vadd.f32 %v3468, %v3612
        %v3614 = vpop.f32.mrb[0].mxu0
        %3615 = vmatprep.mubr.f32.mxu0 %v3037
        %3616 = vmatmul.mubr.f32.gmra.mrb[0].mxu0 %v3036
        %v3617 = vpop.f32.mrb[0].mxu0
        %v3618 = vadd.f32 %v3473, %v3617
        %v3619 = vpop.f32.mrb[0].mxu0
        %3620 = vmatprep.mubr.f32.mxu0 %v3045
        %3621 = vmatmul.mubr.f32.gmra.mrb[0].mxu0 %v3044
        %v3622 = vpop.f32.mrb[0].mxu0
        %v3623 = vadd.f32 %v3478, %v3622
        %v3624 = vpop.f32.mrb[0].mxu0
        %3625 = vmatprep.mubr.f32.mxu0 %v3053
        %3626 = vmatmul.mubr.f32.gmra.mrb[0].mxu0 %v3052
        %v3627 = vpop.f32.mrb[0].mxu0
        %v3628 = vadd.f32 %v3483, %v3627
        %v3629 = vpop.f32.mrb[0].mxu0
        %3630 = vmatprep.mubr.f32.mxu0 %v3061
        %3631 = vmatmul.mubr.f32.gmra.mrb[0].mxu0 %v3060
        %v3632 = vpop.f32.mrb[0].mxu0
        %v3633 = vadd.f32 %v3488, %v3632
        %v3634 = vpop.f32.mrb[0].mxu0
        %3635 = vmatprep.mubr.f32.mxu0 %v3069
        %3636 = vmatmul.mubr.f32.gmra.mrb[0].mxu0 %v3068
        %v3637 = vpop.f32.mrb[0].mxu0
        %v3638 = vadd.f32 %v3493, %v3637
        %v3639 = vpop.f32.mrb[0].mxu0
        %3640 = vmatprep.mubr.f32.mxu0 %v3077
        %3641 = vmatmul.mubr.f32.gmra.mrb[0].mxu0 %v3076
        %v3642 = vpop.f32.mrb[0].mxu0
        %v3643 = vadd.f32 %v3498, %v3642
        %v3644 = vpop.f32.mrb[0].mxu0
        %3645 = vmatprep.mubr.f32.mxu0 %v3085
        %3646 = vmatmul.mubr.f32.gmra.mrb[0].mxu0 %v3084
        %v3647 = vpop.f32.mrb[0].mxu0
        %v3648 = vadd.f32 %v3503, %v3647
        %v3649 = vpop.f32.mrb[0].mxu0
        %3650 = vdwg.mxu0
        %3651 = vmatprep.subr.mxu0 0.0
        %3652 = vmatpush1.msra.mxu0 %v3184
        %3653 = vmatprep.subr.mxu0 0.0
        %3654 = vmatpush1.msra.mxu0 %v3185
        %3655 = vmatprep.subr.mxu0 0.0
        %3656 = vmatpush1.msra.mxu0 %v3186
        %3657 = vmatprep.subr.mxu0 0.0
        %3658 = vmatpush1.msra.mxu0 %v3187
        %3659 = vmatprep.subr.mxu0 0.0
        %3660 = vmatpush1.msra.mxu0 %v3188
        %3661 = vmatprep.subr.mxu0 0.0
        %3662 = vmatpush1.msra.mxu0 %v3189
        %3663 = vmatprep.subr.mxu0 0.0
        %3664 = vmatpush1.msra.mxu0 %v3190
        %3665 = vmatprep.subr.mxu0 0.0
        %3666 = vmatpush1.msra.mxu0 %v3191
        %3667 = vmatprep.subr.mxu0 0.0
        %3668 = vmatpush1.msra.mxu0 %v3192
        %3669 = vmatprep.subr.mxu0 0.0
        %3670 = vmatpush1.msra.mxu0 %v3193
        %3671 = vmatprep.subr.mxu0 0.0
        %3672 = vmatpush1.msra.mxu0 %v3194
        %3673 = vmatprep.subr.mxu0 0.0
        %3674 = vmatpush1.msra.mxu0 %v3195
        %3675 = vmatprep.subr.mxu0 0.0
        %3676 = vmatpush1.msra.mxu0 %v3196
        %3677 = vmatprep.subr.mxu0 0.0
        %3678 = vmatpush1.msra.mxu0 %v3197
        %3679 = vmatprep.subr.mxu0 0.0
        %3680 = vmatpush1.msra.mxu0 %v3198
        %3681 = vmatprep.subr.mxu0 0.0
        %3682 = vmatpush1.msra.mxu0 %v3199
        %3683 = vmatprep.subr.mxu0 0.0
        %3684 = vmatpush1.msra.mxu0 %v3200
        %3685 = vmatprep.subr.mxu0 0.0
        %3686 = vmatpush1.msra.mxu0 %v3201
        %3687 = vmatprep.subr.mxu0 0.0
        %3688 = vmatpush1.msra.mxu0 %v3202
        %3689 = vmatprep.subr.mxu0 0.0
        %3690 = vmatpush1.msra.mxu0 %v3203
        %3691 = vmatprep.subr.mxu0 0.0
        %3692 = vmatpush1.msra.mxu0 %v3204
        %3693 = vmatprep.subr.mxu0 0.0
        %3694 = vmatpush1.msra.mxu0 %v3205
        %3695 = vmatprep.subr.mxu0 0.0
        %3696 = vmatpush1.msra.mxu0 %v3206
        %3697 = vmatprep.subr.mxu0 0.0
        %3698 = vmatpush1.msra.mxu0 %v3207
        %3699 = vmatprep.subr.mxu0 0.0
        %3700 = vmatpush1.msra.mxu0 %v3208
        %3701 = vmatprep.subr.mxu0 0.0
        %3702 = vmatpush1.msra.mxu0 %v3209
        %3703 = vmatprep.subr.mxu0 0.0
        %3704 = vmatpush1.msra.mxu0 %v3210
        %3705 = vmatprep.subr.mxu0 0.0
        %3706 = vmatpush1.msra.mxu0 %v3211
        %3707 = vmatprep.subr.mxu0 0.0
        %3708 = vmatpush1.msra.mxu0 %v3212
        %3709 = vmatprep.subr.mxu0 0.0
        %3710 = vmatpush1.msra.mxu0 %v3213
        %3711 = vmatprep.subr.mxu0 0.0
        %3712 = vmatpush1.msra.mxu0 %v3214
        %3713 = vmatprep.subr.mxu0 0.0
        %3714 = vmatpush1.msra.mxu0 %v3215
        %3715 = vmatprep.mubr.f32.mxu0 %v2967
        %3716 = vmatmul.mubr.f32.gmra.mrb[0].mxu0 %v2966
        %v3717 = vpop.f32.mrb[0].mxu0
        %v3718 = vadd.f32 %v3573, %v3717
        %v3719 = vpop.f32.mrb[0].mxu0
        %3720 = vmatprep.mubr.f32.mxu0 %v2975
        %3721 = vmatmul.mubr.f32.gmra.mrb[0].mxu0 %v2974
        %v3722 = vpop.f32.mrb[0].mxu0
        %v3723 = vadd.f32 %v3578, %v3722
        %v3724 = vpop.f32.mrb[0].mxu0
        %3725 = vmatprep.mubr.f32.mxu0 %v2983
        %3726 = vmatmul.mubr.f32.gmra.mrb[0].mxu0 %v2982
        %v3727 = vpop.f32.mrb[0].mxu0
        %v3728 = vadd.f32 %v3583, %v3727
        %v3729 = vpop.f32.mrb[0].mxu0
        %3730 = vmatprep.mubr.f32.mxu0 %v2991
        %3731 = vmatmul.mubr.f32.gmra.mrb[0].mxu0 %v2990
        %v3732 = vpop.f32.mrb[0].mxu0
        %v3733 = vadd.f32 %v3588, %v3732
        %v3734 = vpop.f32.mrb[0].mxu0
        %3735 = vmatprep.mubr.f32.mxu0 %v2999
        %3736 = vmatmul.mubr.f32.gmra.mrb[0].mxu0 %v2998
        %v3737 = vpop.f32.mrb[0].mxu0
        %v3738 = vadd.f32 %v3593, %v3737
        %v3739 = vpop.f32.mrb[0].mxu0
        %3740 = vmatprep.mubr.f32.mxu0 %v3007
        %3741 = vmatmul.mubr.f32.gmra.mrb[0].mxu0 %v3006
        %v3742 = vpop.f32.mrb[0].mxu0
        %v3743 = vadd.f32 %v3598, %v3742
        %v3744 = vpop.f32.mrb[0].mxu0
        %3745 = vmatprep.mubr.f32.mxu0 %v3015
        %3746 = vmatmul.mubr.f32.gmra.mrb[0].mxu0 %v3014
        %v3747 = vpop.f32.mrb[0].mxu0
        %v3748 = vadd.f32 %v3603, %v3747
        %v3749 = vpop.f32.mrb[0].mxu0
        %3750 = vmatprep.mubr.f32.mxu0 %v3023
        %3751 = vmatmul.mubr.f32.gmra.mrb[0].mxu0 %v3022
        %v3752 = vpop.f32.mrb[0].mxu0
        %v3753 = vadd.f32 %v3608, %v3752
        %v3754 = vpop.f32.mrb[0].mxu0
        %3755 = vmatprep.mubr.f32.mxu0 %v3031
        %3756 = vmatmul.mubr.f32.gmra.mrb[0].mxu0 %v3030
        %v3757 = vpop.f32.mrb[0].mxu0
        %v3758 = vadd.f32 %v3613, %v3757
        %v3759 = vpop.f32.mrb[0].mxu0
        %3760 = vmatprep.mubr.f32.mxu0 %v3039
        %3761 = vmatmul.mubr.f32.gmra.mrb[0].mxu0 %v3038
        %v3762 = vpop.f32.mrb[0].mxu0
        %v3763 = vadd.f32 %v3618, %v3762
        %v3764 = vpop.f32.mrb[0].mxu0
        %3765 = vmatprep.mubr.f32.mxu0 %v3047
        %3766 = vmatmul.mubr.f32.gmra.mrb[0].mxu0 %v3046
        %v3767 = vpop.f32.mrb[0].mxu0
        %v3768 = vadd.f32 %v3623, %v3767
        %v3769 = vpop.f32.mrb[0].mxu0
        %3770 = vmatprep.mubr.f32.mxu0 %v3055
        %3771 = vmatmul.mubr.f32.gmra.mrb[0].mxu0 %v3054
        %v3772 = vpop.f32.mrb[0].mxu0
        %v3773 = vadd.f32 %v3628, %v3772
        %v3774 = vpop.f32.mrb[0].mxu0
        %3775 = vmatprep.mubr.f32.mxu0 %v3063
        %3776 = vmatmul.mubr.f32.gmra.mrb[0].mxu0 %v3062
        %v3777 = vpop.f32.mrb[0].mxu0
        %v3778 = vadd.f32 %v3633, %v3777
        %v3779 = vpop.f32.mrb[0].mxu0
        %3780 = vmatprep.mubr.f32.mxu0 %v3071
        %3781 = vmatmul.mubr.f32.gmra.mrb[0].mxu0 %v3070
        %v3782 = vpop.f32.mrb[0].mxu0
        %v3783 = vadd.f32 %v3638, %v3782
        %v3784 = vpop.f32.mrb[0].mxu0
        %3785 = vmatprep.mubr.f32.mxu0 %v3079
        %3786 = vmatmul.mubr.f32.gmra.mrb[0].mxu0 %v3078
        %v3787 = vpop.f32.mrb[0].mxu0
        %v3788 = vadd.f32 %v3643, %v3787
        %v3789 = vpop.f32.mrb[0].mxu0
        %3790 = vmatprep.mubr.f32.mxu0 %v3087
        %3791 = vmatmul.mubr.f32.gmra.mrb[0].mxu0 %v3086
        %v3792 = vpop.f32.mrb[0].mxu0
        %v3793 = vadd.f32 %v3648, %v3792
        %v3794 = vpop.f32.mrb[0].mxu0
        %3795 = vdwg.mxu0
        %3796 = vmatprep.subr.mxu0 0.0
        %3797 = vmatpush1.msra.mxu0 %v2832
        %3798 = vmatprep.subr.mxu0 0.0
        %3799 = vmatpush1.msra.mxu0 %v2833
        %3800 = vmatprep.subr.mxu0 0.0
        %3801 = vmatpush1.msra.mxu0 %v2834
        %3802 = vmatprep.subr.mxu0 0.0
        %3803 = vmatpush1.msra.mxu0 %v2835
        %3804 = vmatprep.subr.mxu0 0.0
        %3805 = vmatpush1.msra.mxu0 %v2836
        %3806 = vmatprep.subr.mxu0 0.0
        %3807 = vmatpush1.msra.mxu0 %v2837
        %3808 = vmatprep.subr.mxu0 0.0
        %3809 = vmatpush1.msra.mxu0 %v2838
        %3810 = vmatprep.subr.mxu0 0.0
        %3811 = vmatpush1.msra.mxu0 %v2839
        %3812 = vmatprep.subr.mxu0 0.0
        %3813 = vmatpush1.msra.mxu0 %v2840
        %3814 = vmatprep.subr.mxu0 0.0
        %3815 = vmatpush1.msra.mxu0 %v2841
        %3816 = vmatprep.subr.mxu0 0.0
        %3817 = vmatpush1.msra.mxu0 %v2842
        %3818 = vmatprep.subr.mxu0 0.0
        %3819 = vmatpush1.msra.mxu0 %v2843
        %3820 = vmatprep.subr.mxu0 0.0
        %3821 = vmatpush1.msra.mxu0 %v2844
        %3822 = vmatprep.subr.mxu0 0.0
        %3823 = vmatpush1.msra.mxu0 %v2845
        %3824 = vmatprep.subr.mxu0 0.0
        %3825 = vmatpush1.msra.mxu0 %v2846
        %3826 = vmatprep.subr.mxu0 0.0
        %3827 = vmatpush1.msra.mxu0 %v2847
        %3828 = vmatprep.subr.mxu0 0.0
        %3829 = vmatpush1.msra.mxu0 %v2848
        %3830 = vmatprep.subr.mxu0 0.0
        %3831 = vmatpush1.msra.mxu0 %v2849
        %3832 = vmatprep.subr.mxu0 0.0
        %3833 = vmatpush1.msra.mxu0 %v2850
        %3834 = vmatprep.subr.mxu0 0.0
        %3835 = vmatpush1.msra.mxu0 %v2851
        %3836 = vmatprep.subr.mxu0 0.0
        %3837 = vmatpush1.msra.mxu0 %v2852
        %3838 = vmatprep.subr.mxu0 0.0
        %3839 = vmatpush1.msra.mxu0 %v2853
        %3840 = vmatprep.subr.mxu0 0.0
        %3841 = vmatpush1.msra.mxu0 %v2854
        %3842 = vmatprep.subr.mxu0 0.0
        %3843 = vmatpush1.msra.mxu0 %v2855
        %3844 = vmatprep.subr.mxu0 0.0
        %3845 = vmatpush1.msra.mxu0 %v2856
        %3846 = vmatprep.subr.mxu0 0.0
        %3847 = vmatpush1.msra.mxu0 %v2857
        %3848 = vmatprep.subr.mxu0 0.0
        %3849 = vmatpush1.msra.mxu0 %v2858
        %3850 = vmatprep.subr.mxu0 0.0
        %3851 = vmatpush1.msra.mxu0 %v2859
        %3852 = vmatprep.subr.mxu0 0.0
        %3853 = vmatpush1.msra.mxu0 %v2860
        %3854 = vmatprep.subr.mxu0 0.0
        %3855 = vmatpush1.msra.mxu0 %v2861
        %3856 = vmatprep.subr.mxu0 0.0
        %3857 = vmatpush1.msra.mxu0 %v2862
        %3858 = vmatprep.subr.mxu0 0.0
        %3859 = vmatpush1.msra.mxu0 %v2863
        %3860 = vmatprep.mubr.f32.mxu0 %v2705
        %3861 = vmatmul.mubr.f32.gmra.mrb[0].mxu0 %v2704
        %v3862 = vpop.f32.mrb[0].mxu0
        %v3863 = vadd.f32 %v3718, %v3862
        %v3864 = vpop.f32.mrb[0].mxu0
        %3865 = vmatprep.mubr.f32.mxu0 %v2713
        %3866 = vmatmul.mubr.f32.gmra.mrb[0].mxu0 %v2712
        %v3867 = vpop.f32.mrb[0].mxu0
        %v3868 = vadd.f32 %v3723, %v3867
        %v3869 = vpop.f32.mrb[0].mxu0
        %3870 = vmatprep.mubr.f32.mxu0 %v2721
        %3871 = vmatmul.mubr.f32.gmra.mrb[0].mxu0 %v2720
        %v3872 = vpop.f32.mrb[0].mxu0
        %v3873 = vadd.f32 %v3728, %v3872
        %v3874 = vpop.f32.mrb[0].mxu0
        %3875 = vmatprep.mubr.f32.mxu0 %v2729
        %3876 = vmatmul.mubr.f32.gmra.mrb[0].mxu0 %v2728
        %v3877 = vpop.f32.mrb[0].mxu0
        %v3878 = vadd.f32 %v3733, %v3877
        %v3879 = vpop.f32.mrb[0].mxu0
        %3880 = vmatprep.mubr.f32.mxu0 %v2737
        %3881 = vmatmul.mubr.f32.gmra.mrb[0].mxu0 %v2736
        %v3882 = vpop.f32.mrb[0].mxu0
        %v3883 = vadd.f32 %v3738, %v3882
        %v3884 = vpop.f32.mrb[0].mxu0
        %3885 = vmatprep.mubr.f32.mxu0 %v2745
        %3886 = vmatmul.mubr.f32.gmra.mrb[0].mxu0 %v2744
        %v3887 = vpop.f32.mrb[0].mxu0
        %v3888 = vadd.f32 %v3743, %v3887
        %v3889 = vpop.f32.mrb[0].mxu0
        %3890 = vmatprep.mubr.f32.mxu0 %v2753
        %3891 = vmatmul.mubr.f32.gmra.mrb[0].mxu0 %v2752
        %v3892 = vpop.f32.mrb[0].mxu0
        %v3893 = vadd.f32 %v3748, %v3892
        %v3894 = vpop.f32.mrb[0].mxu0
        %3895 = vmatprep.mubr.f32.mxu0 %v2761
        %3896 = vmatmul.mubr.f32.gmra.mrb[0].mxu0 %v2760
        %v3897 = vpop.f32.mrb[0].mxu0
        %v3898 = vadd.f32 %v3753, %v3897
        %v3899 = vpop.f32.mrb[0].mxu0
        %3900 = vmatprep.mubr.f32.mxu0 %v2769
        %3901 = vmatmul.mubr.f32.gmra.mrb[0].mxu0 %v2768
        %v3902 = vpop.f32.mrb[0].mxu0
        %v3903 = vadd.f32 %v3758, %v3902
        %v3904 = vpop.f32.mrb[0].mxu0
        %3905 = vmatprep.mubr.f32.mxu0 %v2777
        %3906 = vmatmul.mubr.f32.gmra.mrb[0].mxu0 %v2776
        %v3907 = vpop.f32.mrb[0].mxu0
        %v3908 = vadd.f32 %v3763, %v3907
        %v3909 = vpop.f32.mrb[0].mxu0
        %3910 = vmatprep.mubr.f32.mxu0 %v2785
        %3911 = vmatmul.mubr.f32.gmra.mrb[0].mxu0 %v2784
        %v3912 = vpop.f32.mrb[0].mxu0
        %v3913 = vadd.f32 %v3768, %v3912
        %v3914 = vpop.f32.mrb[0].mxu0
        %3915 = vmatprep.mubr.f32.mxu0 %v2793
        %3916 = vmatmul.mubr.f32.gmra.mrb[0].mxu0 %v2792
        %v3917 = vpop.f32.mrb[0].mxu0
        %v3918 = vadd.f32 %v3773, %v3917
        %v3919 = vpop.f32.mrb[0].mxu0
        %3920 = vmatprep.mubr.f32.mxu0 %v2801
        %3921 = vmatmul.mubr.f32.gmra.mrb[0].mxu0 %v2800
        %v3922 = vpop.f32.mrb[0].mxu0
        %v3923 = vadd.f32 %v3778, %v3922
        %v3924 = vpop.f32.mrb[0].mxu0
        %3925 = vmatprep.mubr.f32.mxu0 %v2809
        %3926 = vmatmul.mubr.f32.gmra.mrb[0].mxu0 %v2808
        %v3927 = vpop.f32.mrb[0].mxu0
        %v3928 = vadd.f32 %v3783, %v3927
        %v3929 = vpop.f32.mrb[0].mxu0
        %3930 = vmatprep.mubr.f32.mxu0 %v2817
        %3931 = vmatmul.mubr.f32.gmra.mrb[0].mxu0 %v2816
        %v3932 = vpop.f32.mrb[0].mxu0
        %v3933 = vadd.f32 %v3788, %v3932
        %v3934 = vpop.f32.mrb[0].mxu0
        %3935 = vmatprep.mubr.f32.mxu0 %v2825
        %3936 = vmatmul.mubr.f32.gmra.mrb[0].mxu0 %v2824
        %v3937 = vpop.f32.mrb[0].mxu0
        %v3938 = vadd.f32 %v3793, %v3937
        %v3939 = vpop.f32.mrb[0].mxu0
        %3940 = vdwg.mxu0
        %3941 = vmatprep.subr.mxu0 0.0
        %3942 = vmatpush1.msra.mxu0 %v2864
        %3943 = vmatprep.subr.mxu0 0.0
        %3944 = vmatpush1.msra.mxu0 %v2865
        %3945 = vmatprep.subr.mxu0 0.0
        %3946 = vmatpush1.msra.mxu0 %v2866
        %3947 = vmatprep.subr.mxu0 0.0
        %3948 = vmatpush1.msra.mxu0 %v2867
        %3949 = vmatprep.subr.mxu0 0.0
        %3950 = vmatpush1.msra.mxu0 %v2868
        %3951 = vmatprep.subr.mxu0 0.0
        %3952 = vmatpush1.msra.mxu0 %v2869
        %3953 = vmatprep.subr.mxu0 0.0
        %3954 = vmatpush1.msra.mxu0 %v2870
        %3955 = vmatprep.subr.mxu0 0.0
        %3956 = vmatpush1.msra.mxu0 %v2871
        %3957 = vmatprep.subr.mxu0 0.0
        %3958 = vmatpush1.msra.mxu0 %v2872
        %3959 = vmatprep.subr.mxu0 0.0
        %3960 = vmatpush1.msra.mxu0 %v2873
        %3961 = vmatprep.subr.mxu0 0.0
        %3962 = vmatpush1.msra.mxu0 %v2874
        %3963 = vmatprep.subr.mxu0 0.0
        %3964 = vmatpush1.msra.mxu0 %v2875
        %3965 = vmatprep.subr.mxu0 0.0
        %3966 = vmatpush1.msra.mxu0 %v2876
        %3967 = vmatprep.subr.mxu0 0.0
        %3968 = vmatpush1.msra.mxu0 %v2877
        %3969 = vmatprep.subr.mxu0 0.0
        %3970 = vmatpush1.msra.mxu0 %v2878
        %3971 = vmatprep.subr.mxu0 0.0
        %3972 = vmatpush1.msra.mxu0 %v2879
        %3973 = vmatprep.subr.mxu0 0.0
        %3974 = vmatpush1.msra.mxu0 %v2880
        %3975 = vmatprep.subr.mxu0 0.0
        %3976 = vmatpush1.msra.mxu0 %v2881
        %3977 = vmatprep.subr.mxu0 0.0
        %3978 = vmatpush1.msra.mxu0 %v2882
        %3979 = vmatprep.subr.mxu0 0.0
        %3980 = vmatpush1.msra.mxu0 %v2883
        %3981 = vmatprep.subr.mxu0 0.0
        %3982 = vmatpush1.msra.mxu0 %v2884
        %3983 = vmatprep.subr.mxu0 0.0
        %3984 = vmatpush1.msra.mxu0 %v2885
        %3985 = vmatprep.subr.mxu0 0.0
        %3986 = vmatpush1.msra.mxu0 %v2886
        %3987 = vmatprep.subr.mxu0 0.0
        %3988 = vmatpush1.msra.mxu0 %v2887
        %3989 = vmatprep.subr.mxu0 0.0
        %3990 = vmatpush1.msra.mxu0 %v2888
        %3991 = vmatprep.subr.mxu0 0.0
        %3992 = vmatpush1.msra.mxu0 %v2889
        %3993 = vmatprep.subr.mxu0 0.0
        %3994 = vmatpush1.msra.mxu0 %v2890
        %3995 = vmatprep.subr.mxu0 0.0
        %3996 = vmatpush1.msra.mxu0 %v2891
        %3997 = vmatprep.subr.mxu0 0.0
        %3998 = vmatpush1.msra.mxu0 %v2892
        %3999 = vmatprep.subr.mxu0 0.0
        %4000 = vmatpush1.msra.mxu0 %v2893
        %4001 = vmatprep.subr.mxu0 0.0
        %4002 = vmatpush1.msra.mxu0 %v2894
        %4003 = vmatprep.subr.mxu0 0.0
        %4004 = vmatpush1.msra.mxu0 %v2895
        %4005 = vmatprep.mubr.f32.mxu0 %v2707
        %4006 = vmatmul.mubr.f32.gmra.mrb[0].mxu0 %v2706
        %v4007 = vpop.f32.mrb[0].mxu0
        %v4008 = vadd.f32 %v3863, %v4007
        %v4009 = vpop.f32.mrb[0].mxu0
        %4010 = vmatprep.mubr.f32.mxu0 %v2715
        %4011 = vmatmul.mubr.f32.gmra.mrb[0].mxu0 %v2714
        %v4012 = vpop.f32.mrb[0].mxu0
        %v4013 = vadd.f32 %v3868, %v4012
        %v4014 = vpop.f32.mrb[0].mxu0
        %4015 = vmatprep.mubr.f32.mxu0 %v2723
        %4016 = vmatmul.mubr.f32.gmra.mrb[0].mxu0 %v2722
        %v4017 = vpop.f32.mrb[0].mxu0
        %v4018 = vadd.f32 %v3873, %v4017
        %v4019 = vpop.f32.mrb[0].mxu0
        %4020 = vmatprep.mubr.f32.mxu0 %v2731
        %4021 = vmatmul.mubr.f32.gmra.mrb[0].mxu0 %v2730
        %v4022 = vpop.f32.mrb[0].mxu0
        %v4023 = vadd.f32 %v3878, %v4022
        %v4024 = vpop.f32.mrb[0].mxu0
        %4025 = vmatprep.mubr.f32.mxu0 %v2739
        %4026 = vmatmul.mubr.f32.gmra.mrb[0].mxu0 %v2738
        %v4027 = vpop.f32.mrb[0].mxu0
        %v4028 = vadd.f32 %v3883, %v4027
        %v4029 = vpop.f32.mrb[0].mxu0
        %4030 = vmatprep.mubr.f32.mxu0 %v2747
        %4031 = vmatmul.mubr.f32.gmra.mrb[0].mxu0 %v2746
        %v4032 = vpop.f32.mrb[0].mxu0
        %v4033 = vadd.f32 %v3888, %v4032
        %v4034 = vpop.f32.mrb[0].mxu0
        %4035 = vmatprep.mubr.f32.mxu0 %v2755
        %4036 = vmatmul.mubr.f32.gmra.mrb[0].mxu0 %v2754
        %v4037 = vpop.f32.mrb[0].mxu0
        %v4038 = vadd.f32 %v3893, %v4037
        %v4039 = vpop.f32.mrb[0].mxu0
        %4040 = vmatprep.mubr.f32.mxu0 %v2763
        %4041 = vmatmul.mubr.f32.gmra.mrb[0].mxu0 %v2762
        %v4042 = vpop.f32.mrb[0].mxu0
        %v4043 = vadd.f32 %v3898, %v4042
        %v4044 = vpop.f32.mrb[0].mxu0
        %4045 = vmatprep.mubr.f32.mxu0 %v2771
        %4046 = vmatmul.mubr.f32.gmra.mrb[0].mxu0 %v2770
        %v4047 = vpop.f32.mrb[0].mxu0
        %v4048 = vadd.f32 %v3903, %v4047
        %v4049 = vpop.f32.mrb[0].mxu0
        %4050 = vmatprep.mubr.f32.mxu0 %v2779
        %4051 = vmatmul.mubr.f32.gmra.mrb[0].mxu0 %v2778
        %v4052 = vpop.f32.mrb[0].mxu0
        %v4053 = vadd.f32 %v3908, %v4052
        %v4054 = vpop.f32.mrb[0].mxu0
        %4055 = vmatprep.mubr.f32.mxu0 %v2787
        %4056 = vmatmul.mubr.f32.gmra.mrb[0].mxu0 %v2786
        %v4057 = vpop.f32.mrb[0].mxu0
        %v4058 = vadd.f32 %v3913, %v4057
        %v4059 = vpop.f32.mrb[0].mxu0
        %4060 = vmatprep.mubr.f32.mxu0 %v2795
        %4061 = vmatmul.mubr.f32.gmra.mrb[0].mxu0 %v2794
        %v4062 = vpop.f32.mrb[0].mxu0
        %v4063 = vadd.f32 %v3918, %v4062
        %v4064 = vpop.f32.mrb[0].mxu0
        %4065 = vmatprep.mubr.f32.mxu0 %v2803
        %4066 = vmatmul.mubr.f32.gmra.mrb[0].mxu0 %v2802
        %v4067 = vpop.f32.mrb[0].mxu0
        %v4068 = vadd.f32 %v3923, %v4067
        %v4069 = vpop.f32.mrb[0].mxu0
        %4070 = vmatprep.mubr.f32.mxu0 %v2811
        %4071 = vmatmul.mubr.f32.gmra.mrb[0].mxu0 %v2810
        %v4072 = vpop.f32.mrb[0].mxu0
        %v4073 = vadd.f32 %v3928, %v4072
        %v4074 = vpop.f32.mrb[0].mxu0
        %4075 = vmatprep.mubr.f32.mxu0 %v2819
        %4076 = vmatmul.mubr.f32.gmra.mrb[0].mxu0 %v2818
        %v4077 = vpop.f32.mrb[0].mxu0
        %v4078 = vadd.f32 %v3933, %v4077
        %v4079 = vpop.f32.mrb[0].mxu0
        %4080 = vmatprep.mubr.f32.mxu0 %v2827
        %4081 = vmatmul.mubr.f32.gmra.mrb[0].mxu0 %v2826
        %v4082 = vpop.f32.mrb[0].mxu0
        %v4083 = vadd.f32 %v3938, %v4082
        %v4084 = vpop.f32.mrb[0].mxu0
        %4085 = vdwg.mxu0
        %4086 = vmatprep.subr.mxu0 0.0
        %4087 = vmatpush1.msra.mxu0 %v2896
        %4088 = vmatprep.subr.mxu0 0.0
        %4089 = vmatpush1.msra.mxu0 %v2897
        %4090 = vmatprep.subr.mxu0 0.0
        %4091 = vmatpush1.msra.mxu0 %v2898
        %4092 = vmatprep.subr.mxu0 0.0
        %4093 = vmatpush1.msra.mxu0 %v2899
        %4094 = vmatprep.subr.mxu0 0.0
        %4095 = vmatpush1.msra.mxu0 %v2900
        %4096 = vmatprep.subr.mxu0 0.0
        %4097 = vmatpush1.msra.mxu0 %v2901
        %4098 = vmatprep.subr.mxu0 0.0
        %4099 = vmatpush1.msra.mxu0 %v2902
        %4100 = vmatprep.subr.mxu0 0.0
        %4101 = vmatpush1.msra.mxu0 %v2903
        %4102 = vmatprep.subr.mxu0 0.0
        %4103 = vmatpush1.msra.mxu0 %v2904
        %4104 = vmatprep.subr.mxu0 0.0
        %4105 = vmatpush1.msra.mxu0 %v2905
        %4106 = vmatprep.subr.mxu0 0.0
        %4107 = vmatpush1.msra.mxu0 %v2906
        %4108 = vmatprep.subr.mxu0 0.0
        %4109 = vmatpush1.msra.mxu0 %v2907
        %4110 = vmatprep.subr.mxu0 0.0
        %4111 = vmatpush1.msra.mxu0 %v2908
        %4112 = vmatprep.subr.mxu0 0.0
        %4113 = vmatpush1.msra.mxu0 %v2909
        %4114 = vmatprep.subr.mxu0 0.0
        %4115 = vmatpush1.msra.mxu0 %v2910
        %4116 = vmatprep.subr.mxu0 0.0
        %4117 = vmatpush1.msra.mxu0 %v2911
        %4118 = vmatprep.subr.mxu0 0.0
        %4119 = vmatpush1.msra.mxu0 %v2912
        %4120 = vmatprep.subr.mxu0 0.0
        %4121 = vmatpush1.msra.mxu0 %v2913
        %4122 = vmatprep.subr.mxu0 0.0
        %4123 = vmatpush1.msra.mxu0 %v2914
        %4124 = vmatprep.subr.mxu0 0.0
        %4125 = vmatpush1.msra.mxu0 %v2915
        %4126 = vmatprep.subr.mxu0 0.0
        %4127 = vmatpush1.msra.mxu0 %v2916
        %4128 = vmatprep.subr.mxu0 0.0
        %4129 = vmatpush1.msra.mxu0 %v2917
        %4130 = vmatprep.subr.mxu0 0.0
        %4131 = vmatpush1.msra.mxu0 %v2918
        %4132 = vmatprep.subr.mxu0 0.0
        %4133 = vmatpush1.msra.mxu0 %v2919
        %4134 = vmatprep.subr.mxu0 0.0
        %4135 = vmatpush1.msra.mxu0 %v2920
        %4136 = vmatprep.subr.mxu0 0.0
        %4137 = vmatpush1.msra.mxu0 %v2921
        %4138 = vmatprep.subr.mxu0 0.0
        %4139 = vmatpush1.msra.mxu0 %v2922
        %4140 = vmatprep.subr.mxu0 0.0
        %4141 = vmatpush1.msra.mxu0 %v2923
        %4142 = vmatprep.subr.mxu0 0.0
        %4143 = vmatpush1.msra.mxu0 %v2924
        %4144 = vmatprep.subr.mxu0 0.0
        %4145 = vmatpush1.msra.mxu0 %v2925
        %4146 = vmatprep.subr.mxu0 0.0
        %4147 = vmatpush1.msra.mxu0 %v2926
        %4148 = vmatprep.subr.mxu0 0.0
        %4149 = vmatpush1.msra.mxu0 %v2927
        %4150 = vmatprep.mubr.f32.mxu0 %v2709
        %4151 = vmatmul.mubr.f32.gmra.mrb[0].mxu0 %v2708
        %v4152 = vpop.f32.mrb[0].mxu0
        %v4153 = vadd.f32 %v4008, %v4152
        %v4154 = vpop.f32.mrb[0].mxu0
        %4155 = vmatprep.mubr.f32.mxu0 %v2717
        %4156 = vmatmul.mubr.f32.gmra.mrb[0].mxu0 %v2716
        %v4157 = vpop.f32.mrb[0].mxu0
        %v4158 = vadd.f32 %v4013, %v4157
        %v4159 = vpop.f32.mrb[0].mxu0
        %4160 = vmatprep.mubr.f32.mxu0 %v2725
        %4161 = vmatmul.mubr.f32.gmra.mrb[0].mxu0 %v2724
        %v4162 = vpop.f32.mrb[0].mxu0
        %v4163 = vadd.f32 %v4018, %v4162
        %v4164 = vpop.f32.mrb[0].mxu0
        %4165 = vmatprep.mubr.f32.mxu0 %v2733
        %4166 = vmatmul.mubr.f32.gmra.mrb[0].mxu0 %v2732
        %v4167 = vpop.f32.mrb[0].mxu0
        %v4168 = vadd.f32 %v4023, %v4167
        %v4169 = vpop.f32.mrb[0].mxu0
        %4170 = vmatprep.mubr.f32.mxu0 %v2741
        %4171 = vmatmul.mubr.f32.gmra.mrb[0].mxu0 %v2740
        %v4172 = vpop.f32.mrb[0].mxu0
        %v4173 = vadd.f32 %v4028, %v4172
        %v4174 = vpop.f32.mrb[0].mxu0
        %4175 = vmatprep.mubr.f32.mxu0 %v2749
        %4176 = vmatmul.mubr.f32.gmra.mrb[0].mxu0 %v2748
        %v4177 = vpop.f32.mrb[0].mxu0
        %v4178 = vadd.f32 %v4033, %v4177
        %v4179 = vpop.f32.mrb[0].mxu0
        %4180 = vmatprep.mubr.f32.mxu0 %v2757
        %4181 = vmatmul.mubr.f32.gmra.mrb[0].mxu0 %v2756
        %v4182 = vpop.f32.mrb[0].mxu0
        %v4183 = vadd.f32 %v4038, %v4182
        %v4184 = vpop.f32.mrb[0].mxu0
        %4185 = vmatprep.mubr.f32.mxu0 %v2765
        %4186 = vmatmul.mubr.f32.gmra.mrb[0].mxu0 %v2764
        %v4187 = vpop.f32.mrb[0].mxu0
        %v4188 = vadd.f32 %v4043, %v4187
        %v4189 = vpop.f32.mrb[0].mxu0
        %4190 = vmatprep.mubr.f32.mxu0 %v2773
        %4191 = vmatmul.mubr.f32.gmra.mrb[0].mxu0 %v2772
        %v4192 = vpop.f32.mrb[0].mxu0
        %v4193 = vadd.f32 %v4048, %v4192
        %v4194 = vpop.f32.mrb[0].mxu0
        %4195 = vmatprep.mubr.f32.mxu0 %v2781
        %4196 = vmatmul.mubr.f32.gmra.mrb[0].mxu0 %v2780
        %v4197 = vpop.f32.mrb[0].mxu0
        %v4198 = vadd.f32 %v4053, %v4197
        %v4199 = vpop.f32.mrb[0].mxu0
        %4200 = vmatprep.mubr.f32.mxu0 %v2789
        %4201 = vmatmul.mubr.f32.gmra.mrb[0].mxu0 %v2788
        %v4202 = vpop.f32.mrb[0].mxu0
        %v4203 = vadd.f32 %v4058, %v4202
        %v4204 = vpop.f32.mrb[0].mxu0
        %4205 = vmatprep.mubr.f32.mxu0 %v2797
        %4206 = vmatmul.mubr.f32.gmra.mrb[0].mxu0 %v2796
        %v4207 = vpop.f32.mrb[0].mxu0
        %v4208 = vadd.f32 %v4063, %v4207
        %v4209 = vpop.f32.mrb[0].mxu0
        %4210 = vmatprep.mubr.f32.mxu0 %v2805
        %4211 = vmatmul.mubr.f32.gmra.mrb[0].mxu0 %v2804
        %v4212 = vpop.f32.mrb[0].mxu0
        %v4213 = vadd.f32 %v4068, %v4212
        %v4214 = vpop.f32.mrb[0].mxu0
        %4215 = vmatprep.mubr.f32.mxu0 %v2813
        %4216 = vmatmul.mubr.f32.gmra.mrb[0].mxu0 %v2812
        %v4217 = vpop.f32.mrb[0].mxu0
        %v4218 = vadd.f32 %v4073, %v4217
        %v4219 = vpop.f32.mrb[0].mxu0
        %4220 = vmatprep.mubr.f32.mxu0 %v2821
        %4221 = vmatmul.mubr.f32.gmra.mrb[0].mxu0 %v2820
        %v4222 = vpop.f32.mrb[0].mxu0
        %v4223 = vadd.f32 %v4078, %v4222
        %v4224 = vpop.f32.mrb[0].mxu0
        %4225 = vmatprep.mubr.f32.mxu0 %v2829
        %4226 = vmatmul.mubr.f32.gmra.mrb[0].mxu0 %v2828
        %v4227 = vpop.f32.mrb[0].mxu0
        %v4228 = vadd.f32 %v4083, %v4227
        %v4229 = vpop.f32.mrb[0].mxu0
        %4230 = vdwg.mxu0
        %4231 = vmatprep.subr.mxu0 0.0
        %4232 = vmatpush1.msra.mxu0 %v2928
        %4233 = vmatprep.subr.mxu0 0.0
        %4234 = vmatpush1.msra.mxu0 %v2929
        %4235 = vmatprep.subr.mxu0 0.0
        %4236 = vmatpush1.msra.mxu0 %v2930
        %4237 = vmatprep.subr.mxu0 0.0
        %4238 = vmatpush1.msra.mxu0 %v2931
        %4239 = vmatprep.subr.mxu0 0.0
        %4240 = vmatpush1.msra.mxu0 %v2932
        %4241 = vmatprep.subr.mxu0 0.0
        %4242 = vmatpush1.msra.mxu0 %v2933
        %4243 = vmatprep.subr.mxu0 0.0
        %4244 = vmatpush1.msra.mxu0 %v2934
        %4245 = vmatprep.subr.mxu0 0.0
        %4246 = vmatpush1.msra.mxu0 %v2935
        %4247 = vmatprep.subr.mxu0 0.0
        %4248 = vmatpush1.msra.mxu0 %v2936
        %4249 = vmatprep.subr.mxu0 0.0
        %4250 = vmatpush1.msra.mxu0 %v2937
        %4251 = vmatprep.subr.mxu0 0.0
        %4252 = vmatpush1.msra.mxu0 %v2938
        %4253 = vmatprep.subr.mxu0 0.0
        %4254 = vmatpush1.msra.mxu0 %v2939
        %4255 = vmatprep.subr.mxu0 0.0
        %4256 = vmatpush1.msra.mxu0 %v2940
        %4257 = vmatprep.subr.mxu0 0.0
        %4258 = vmatpush1.msra.mxu0 %v2941
        %4259 = vmatprep.subr.mxu0 0.0
        %4260 = vmatpush1.msra.mxu0 %v2942
        %4261 = vmatprep.subr.mxu0 0.0
        %4262 = vmatpush1.msra.mxu0 %v2943
        %4263 = vmatprep.subr.mxu0 0.0
        %4264 = vmatpush1.msra.mxu0 %v2944
        %4265 = vmatprep.subr.mxu0 0.0
        %4266 = vmatpush1.msra.mxu0 %v2945
        %4267 = vmatprep.subr.mxu0 0.0
        %4268 = vmatpush1.msra.mxu0 %v2946
        %4269 = vmatprep.subr.mxu0 0.0
        %4270 = vmatpush1.msra.mxu0 %v2947
        %4271 = vmatprep.subr.mxu0 0.0
        %4272 = vmatpush1.msra.mxu0 %v2948
        %4273 = vmatprep.subr.mxu0 0.0
        %4274 = vmatpush1.msra.mxu0 %v2949
        %4275 = vmatprep.subr.mxu0 0.0
        %4276 = vmatpush1.msra.mxu0 %v2950
        %4277 = vmatprep.subr.mxu0 0.0
        %4278 = vmatpush1.msra.mxu0 %v2951
        %4279 = vmatprep.subr.mxu0 0.0
        %4280 = vmatpush1.msra.mxu0 %v2952
        %4281 = vmatprep.subr.mxu0 0.0
        %4282 = vmatpush1.msra.mxu0 %v2953
        %4283 = vmatprep.subr.mxu0 0.0
        %4284 = vmatpush1.msra.mxu0 %v2954
        %4285 = vmatprep.subr.mxu0 0.0
        %4286 = vmatpush1.msra.mxu0 %v2955
        %4287 = vmatprep.subr.mxu0 0.0
        %4288 = vmatpush1.msra.mxu0 %v2956
        %4289 = vmatprep.subr.mxu0 0.0
        %4290 = vmatpush1.msra.mxu0 %v2957
        %4291 = vmatprep.subr.mxu0 0.0
        %4292 = vmatpush1.msra.mxu0 %v2958
        %4293 = vmatprep.subr.mxu0 0.0
        %4294 = vmatpush1.msra.mxu0 %v2959
        %4295 = vmatprep.mubr.f32.mxu0 %v2711
        %4296 = vmatmul.mubr.f32.gmra.mrb[0].mxu0 %v2710
        %v4297 = vpop.f32.mrb[0].mxu0
        %v4298 = vadd.f32 %v4153, %v4297
        %v4299 = vpop.f32.mrb[0].mxu0
        %4300 = vmatprep.mubr.f32.mxu0 %v2719
        %4301 = vmatmul.mubr.f32.gmra.mrb[0].mxu0 %v2718
        %v4302 = vpop.f32.mrb[0].mxu0
        %v4303 = vadd.f32 %v4158, %v4302
        %v4304 = vpop.f32.mrb[0].mxu0
        %4305 = vmatprep.mubr.f32.mxu0 %v2727
        %4306 = vmatmul.mubr.f32.gmra.mrb[0].mxu0 %v2726
        %v4307 = vpop.f32.mrb[0].mxu0
        %v4308 = vadd.f32 %v4163, %v4307
        %v4309 = vpop.f32.mrb[0].mxu0
        %4310 = vmatprep.mubr.f32.mxu0 %v2735
        %4311 = vmatmul.mubr.f32.gmra.mrb[0].mxu0 %v2734
        %v4312 = vpop.f32.mrb[0].mxu0
        %v4313 = vadd.f32 %v4168, %v4312
        %v4314 = vpop.f32.mrb[0].mxu0
        %4315 = vmatprep.mubr.f32.mxu0 %v2743
        %4316 = vmatmul.mubr.f32.gmra.mrb[0].mxu0 %v2742
        %v4317 = vpop.f32.mrb[0].mxu0
        %v4318 = vadd.f32 %v4173, %v4317
        %v4319 = vpop.f32.mrb[0].mxu0
        %4320 = vmatprep.mubr.f32.mxu0 %v2751
        %4321 = vmatmul.mubr.f32.gmra.mrb[0].mxu0 %v2750
        %v4322 = vpop.f32.mrb[0].mxu0
        %v4323 = vadd.f32 %v4178, %v4322
        %v4324 = vpop.f32.mrb[0].mxu0
        %4325 = vmatprep.mubr.f32.mxu0 %v2759
        %4326 = vmatmul.mubr.f32.gmra.mrb[0].mxu0 %v2758
        %v4327 = vpop.f32.mrb[0].mxu0
        %v4328 = vadd.f32 %v4183, %v4327
        %v4329 = vpop.f32.mrb[0].mxu0
        %4330 = vmatprep.mubr.f32.mxu0 %v2767
        %4331 = vmatmul.mubr.f32.gmra.mrb[0].mxu0 %v2766
        %v4332 = vpop.f32.mrb[0].mxu0
        %v4333 = vadd.f32 %v4188, %v4332
        %v4334 = vpop.f32.mrb[0].mxu0
        %4335 = vmatprep.mubr.f32.mxu0 %v2775
        %4336 = vmatmul.mubr.f32.gmra.mrb[0].mxu0 %v2774
        %v4337 = vpop.f32.mrb[0].mxu0
        %v4338 = vadd.f32 %v4193, %v4337
        %v4339 = vpop.f32.mrb[0].mxu0
        %4340 = vmatprep.mubr.f32.mxu0 %v2783
        %4341 = vmatmul.mubr.f32.gmra.mrb[0].mxu0 %v2782
        %v4342 = vpop.f32.mrb[0].mxu0
        %v4343 = vadd.f32 %v4198, %v4342
        %v4344 = vpop.f32.mrb[0].mxu0
        %4345 = vmatprep.mubr.f32.mxu0 %v2791
        %4346 = vmatmul.mubr.f32.gmra.mrb[0].mxu0 %v2790
        %v4347 = vpop.f32.mrb[0].mxu0
        %v4348 = vadd.f32 %v4203, %v4347
        %v4349 = vpop.f32.mrb[0].mxu0
        %4350 = vmatprep.mubr.f32.mxu0 %v2799
        %4351 = vmatmul.mubr.f32.gmra.mrb[0].mxu0 %v2798
        %v4352 = vpop.f32.mrb[0].mxu0
        %v4353 = vadd.f32 %v4208, %v4352
        %v4354 = vpop.f32.mrb[0].mxu0
        %4355 = vmatprep.mubr.f32.mxu0 %v2807
        %4356 = vmatmul.mubr.f32.gmra.mrb[0].mxu0 %v2806
        %v4357 = vpop.f32.mrb[0].mxu0
        %v4358 = vadd.f32 %v4213, %v4357
        %v4359 = vpop.f32.mrb[0].mxu0
        %4360 = vmatprep.mubr.f32.mxu0 %v2815
        %4361 = vmatmul.mubr.f32.gmra.mrb[0].mxu0 %v2814
        %v4362 = vpop.f32.mrb[0].mxu0
        %v4363 = vadd.f32 %v4218, %v4362
        %v4364 = vpop.f32.mrb[0].mxu0
        %4365 = vmatprep.mubr.f32.mxu0 %v2823
        %4366 = vmatmul.mubr.f32.gmra.mrb[0].mxu0 %v2822
        %v4367 = vpop.f32.mrb[0].mxu0
        %v4368 = vadd.f32 %v4223, %v4367
        %v4369 = vpop.f32.mrb[0].mxu0
        %4370 = vmatprep.mubr.f32.mxu0 %v2831
        %4371 = vmatmul.mubr.f32.gmra.mrb[0].mxu0 %v2830
        %v4372 = vpop.f32.mrb[0].mxu0
        %v4373 = vadd.f32 %v4228, %v4372
        %v4374 = vpop.f32.mrb[0].mxu0
        %4375 = vdwg.mxu0
        %v4376 = vld [vmem:[%s6] sm:$0xff]
        %v4377 = vlaneseq
        %v4378 = vshrl.u32 %v4377, 7
        %v4379 = vsub.s32 0, %v4378
        %v4380 = vrot.slane %v4376, %v4379
        %v4381 = vadd.f32 %v4298, %v4380
        %v4382 = vadd.f32 %v4303, %v4380
        %v4383 = vadd.f32 %v4308, %v4380
        %v4384 = vadd.f32 %v4313, %v4380
        %v4385 = vadd.f32 %v4318, %v4380
        %v4386 = vadd.f32 %v4323, %v4380
        %v4387 = vadd.f32 %v4328, %v4380
        %v4388 = vadd.f32 %v4333, %v4380
        %v4389 = vadd.f32 %v4338, %v4380
        %v4390 = vadd.f32 %v4343, %v4380
        %v4391 = vadd.f32 %v4348, %v4380
        %v4392 = vadd.f32 %v4353, %v4380
        %v4393 = vadd.f32 %v4358, %v4380
        %v4394 = vadd.f32 %v4363, %v4380
        %v4395 = vadd.f32 %v4368, %v4380
        %v4396 = vadd.f32 %v4373, %v4380
        %vm4397 = vcmp.ge.f32.partialorder %v4381, 0.0
        %vm4398 = vcmp.ge.f32.partialorder %v4382, 0.0
        %vm4399 = vcmp.ge.f32.partialorder %v4383, 0.0
        %vm4400 = vcmp.ge.f32.partialorder %v4384, 0.0
        %vm4401 = vcmp.ge.f32.partialorder %v4385, 0.0
        %vm4402 = vcmp.ge.f32.partialorder %v4386, 0.0
        %vm4403 = vcmp.ge.f32.partialorder %v4387, 0.0
        %vm4404 = vcmp.ge.f32.partialorder %v4388, 0.0
        %vm4405 = vcmp.ge.f32.partialorder %v4389, 0.0
        %vm4406 = vcmp.ge.f32.partialorder %v4390, 0.0
        %vm4407 = vcmp.ge.f32.partialorder %v4391, 0.0
        %vm4408 = vcmp.ge.f32.partialorder %v4392, 0.0
        %vm4409 = vcmp.ge.f32.partialorder %v4393, 0.0
        %vm4410 = vcmp.ge.f32.partialorder %v4394, 0.0
        %vm4411 = vcmp.ge.f32.partialorder %v4395, 0.0
        %vm4412 = vcmp.ge.f32.partialorder %v4396, 0.0
        %v4413 = vlaneseq
        %v4414 = vshrl.u32 %v4413, 7
        %v4415 = vsub.s32 1, %v4414
        %v4416 = vrot.slane %v4376, %v4415
        %v4417 = vmul.f32 %v4416, %v4381
        %v4418 = vmul.f32 %v4416, %v4382
        %v4419 = vmul.f32 %v4416, %v4383
        %v4420 = vmul.f32 %v4416, %v4384
        %v4421 = vmul.f32 %v4416, %v4385
        %v4422 = vmul.f32 %v4416, %v4386
        %v4423 = vmul.f32 %v4416, %v4387
        %v4424 = vmul.f32 %v4416, %v4388
        %v4425 = vmul.f32 %v4416, %v4389
        %v4426 = vmul.f32 %v4416, %v4390
        %v4427 = vmul.f32 %v4416, %v4391
        %v4428 = vmul.f32 %v4416, %v4392
        %v4429 = vmul.f32 %v4416, %v4393
        %v4430 = vmul.f32 %v4416, %v4394
        %v4431 = vmul.f32 %v4416, %v4395
        %v4432 = vmul.f32 %v4416, %v4396
        %v4433 = vsel %vm4397, %v4381, %v4417
        %v4434 = vsel %vm4398, %v4382, %v4418
        %v4435 = vsel %vm4399, %v4383, %v4419
        %v4436 = vsel %vm4400, %v4384, %v4420
        %v4437 = vsel %vm4401, %v4385, %v4421
        %v4438 = vsel %vm4402, %v4386, %v4422
        %v4439 = vsel %vm4403, %v4387, %v4423
        %v4440 = vsel %vm4404, %v4388, %v4424
        %v4441 = vsel %vm4405, %v4389, %v4425
        %v4442 = vsel %vm4406, %v4390, %v4426
        %v4443 = vsel %vm4407, %v4391, %v4427
        %v4444 = vsel %vm4408, %v4392, %v4428
        %v4445 = vsel %vm4409, %v4393, %v4429
        %v4446 = vsel %vm4410, %v4394, %v4430
        %v4447 = vsel %vm4411, %v4395, %v4431
        %v4448 = vsel %vm4412, %v4396, %v4432
        %4449 = vst [vmem:[%s369] sm:$0xff] %v4433
        %4450 = vst [vmem:[%s369 + $0x8] sm:$0xff] %v4434
        %4451 = vst [vmem:[%s369 + $0x10] sm:$0xff] %v4435
        %4452 = vst [vmem:[%s369 + $0x18] sm:$0xff] %v4436
        %4453 = vst [vmem:[%s369 + $0x20] sm:$0xff] %v4437
        %4454 = vst [vmem:[%s369 + $0x28] sm:$0xff] %v4438
        %4455 = vst [vmem:[%s369 + $0x30] sm:$0xff] %v4439
        %4456 = vst [vmem:[%s369 + $0x38] sm:$0xff] %v4440
        %4457 = vst [vmem:[%s369 + $0x40] sm:$0xff] %v4441
        %4458 = vst [vmem:[%s369 + $0x48] sm:$0xff] %v4442
        %4459 = vst [vmem:[%s369 + $0x50] sm:$0xff] %v4443
        %4460 = vst [vmem:[%s369 + $0x58] sm:$0xff] %v4444
        %4461 = vst [vmem:[%s369 + $0x60] sm:$0xff] %v4445
        %4462 = vst [vmem:[%s369 + $0x68] sm:$0xff] %v4446
        %4463 = vst [vmem:[%s369 + $0x70] sm:$0xff] %v4447
        %4464 = vst [vmem:[%s369 + $0x78] sm:$0xff] %v4448
        %s4465 = sand.u32 %s187, 1
        %s4466 = scalar_lea.sflag [#allocation4], %s4465
        %s4467 = sand.u32 %s187, 1
        %s4468 = smul.addr %s4467, 128
        %s4469 = scalar_lea.vmem [#allocation13], %s4468
        // Predicated region
        $region73: #{tpu_custom_call.1} parent=47 // pred_check
          %p4470 = pneg %p197
        $region74: #{tpu_custom_call.1} parent=47 // pred_check_branch
          %4472 = sbr.rel (%p4470) target = $region76
        $region75: #{tpu_custom_call.1} parent=47 // pred_region
          %s4473 = smul.u32 16, %s27
          %s4475 = ssub.s32 2048, 2048
          %4476 = vsyncadd %s4466, %s4475
          %s4477 = smul.addr %s4473, 128
          %s4478 = scalar_lea.hbm %s7, %s4477
          %s4479 = sshll.u32 %s4469, 4
          %s4480 = int_to_ptr.vmem [resolvable:$true] %s4479
          %4485 = dma.vmem_to_hbm [thread:$0]  %s4480, 2048, %s4478, %s4466, 128, 128, 8
        $region76: #{tpu_custom_call.1} parent=47 // pred_fallthru
          _
      $region48: #{tpu_custom_call.1} parent=5 // pred_fallthru
        _
      %p4486 = scmp.le.s32.totalorder 2, %s22
      // Predicated region
      $region77: #{tpu_custom_call.1} parent=5 // pred_check
        %p4487 = pneg %p4486
      $region78: #{tpu_custom_call.1} parent=5 // pred_check_branch
        %4489 = sbr.rel (%p4487) target = $region80
      $region79: #{tpu_custom_call.1} parent=5 // pred_region
        %s4490 = ssub.s32 %s22, 2
        // Predicated region
        $region81: #{tpu_custom_call.1} parent=79 // pred_check
          %p4491 = pneg %p203
        $region82: #{tpu_custom_call.1} parent=79 // pred_check_branch
          %4493 = sbr.rel (%p4491) target = $region84
        $region83: #{tpu_custom_call.1} parent=79 // pred_region
          %s4494 = sand.u32 %s188, 1
          %s4495 = scalar_lea.sflag [#allocation4], %s4494
          %s4496 = sand.u32 %s188, 1
          %s4497 = smul.addr %s4496, 128
          %s4498 = scalar_lea.vmem [#allocation13], %s4497
          %4499 = dma.done %s4495, 2048
        $region84: #{tpu_custom_call.1} parent=79 // pred_fallthru
          _
      $region80: #{tpu_custom_call.1} parent=5 // pred_fallthru
        _
    $region6: #{tpu_custom_call.1} parent=1 // loop_footer
      %s26 = sadd.s32 1, %s22
    $region7: #{tpu_custom_call.1} parent=1 // loop_footer_branch
      %21 = sbr.rel target = $region3
    $region8: #{tpu_custom_call.1} parent=1 // loop_exit
      _
    %4500 = vsyncpa [#allocation3], 1
    %s4501 = scalar_lea.sflag [#allocation3], 1
    %4502 = vsyncpa %s4501, 1
    %4503 = vsyncpa [#allocation6], 1
    %4504 = vsyncpa [#allocation9], 1
    %4505 = vsyncpa [#allocation12], 1
    %4506 = vsyncpa [#allocation4], 1
    %s4507 = scalar_lea.sflag [#allocation4], 1
    %4508 = vsyncpa %s4507, 1

</llo_original>
